<compile_context>
chip_gen: v5e
topology: v5e:2x2
jax: 0.10.0
libtpu: 0.0.40
codegen_flags: <defaults>
</compile_context>

<pallas_src>
import functools

import jax
import jax.numpy as jnp
import numpy as np
from jax.experimental import pallas as pl
from jax.experimental.pallas import tpu as pltpu


# ------------------------------ Fused CBAM kernel (TB batch elements per step) ------------------------------
def cbam_kernel(x_ref, w1m_ref, b1m_ref, w2m_ref, b2m_ref,
                w1a_ref, b1a_ref, w2a_ref, b2a_ref,
                masks_ref, wc_ref, bc_ref, o_ref, *, C, H, W):
    HW = H * W
    x = x_ref[...].astype(jnp.float32)            # (TB, C, HW), lane-dense
    TB = x.shape[0]

    # ---------------- Channel attention ----------------
    # Global max / avg pool: a single lane reduce per (tb, c) row.
    mx = jnp.max(x, axis=2)                       # (TB, C)
    av = jnp.sum(x, axis=2) * (1.0 / HW)          # (TB, C)

    def branch(v, w1, b1, w2, b2):
        h = jnp.dot(v, w1[...], preferred_element_type=jnp.float32) + b1[...]
        h = jnp.maximum(h, 0.0)                   # ReLU
        return jax.nn.sigmoid(
            jnp.dot(h, w2[...], preferred_element_type=jnp.float32) + b2[...])

    mc = jax.nn.sigmoid(
        branch(mx, w1m_ref, b1m_ref, w2m_ref, b2m_ref)
        + branch(av, w1a_ref, b1a_ref, w2a_ref, b2a_ref))       # (TB, C)

    y = x * mc[:, :, None]                        # (TB, C, HW), stays on-chip

    # ---------------- Spatial attention ----------------
    mp = jnp.max(y, axis=1)                       # (TB, HW)  channel max  (VALU)
    ap = jnp.sum(y, axis=1) * (1.0 / C)           # (TB, HW)  channel mean (VALU)

    # Conv2d(in=2, out=1, k=7, pad=3) on the flattened maps: tap (ci, di, dj)
    # reads padded[:, di*W+dj : di*W+dj+HW]; the per-dj column mask (built on
    # the host) zeroes the horizontally-wrapped lanes, the zero halo handles
    # the vertical out-of-range rows.
    masks = masks_ref[...]                        # (7, HW) f32 in {0, 1}
    zpad = jnp.zeros((TB, 3 * W + 3), jnp.float32)
    padded = (jnp.concatenate([zpad, mp, zpad], axis=1),        # (TB, HW + 6W + 6)
              jnp.concatenate([zpad, ap, zpad], axis=1))

    partials = []                                 # 7 independent accumulation chains
    for dj in range(7):
        acc = None
        for ci in range(2):
            p = padded[ci]
            for di in range(7):
                w = wc_ref[ci * 49 + di * 7 + dj]               # scalar from SMEM
                s = di * W + dj
                term = w * p[:, s:s + HW]
                acc = term if acc is None else acc + term
        partials.append(acc * masks[dj:dj + 1, :])
    conv = (((partials[0] + partials[1]) + (partials[2] + partials[3]))
            + ((partials[4] + partials[5]) + partials[6])) + bc_ref[0]
    ms = jax.nn.sigmoid(conv)                     # (TB, HW) spatial weights

    o_ref[...] = (y * ms[:, None, :]).astype(o_ref.dtype)


# ---------------------------------------- Wrapper ----------------------------------------
_VMEM_DATA_BUDGET = 40 * 1024 * 1024   # data-tile budget, sized for v7x's 64 MiB VMEM


def _pick_tb(B, C, HW, in_bytes, out_bytes):
    # Per batch element: double-buffered in/out tiles + ~3 f32 on-chip intermediates.
    per_b = C * HW * (2 * (in_bytes + out_bytes) + 3 * 4)
    cap = max(1, _VMEM_DATA_BUDGET // per_b)
    if B >= 2:
        cap = min(cap, B // 2)     # keep >= 2 "parallel" grid steps for v7x's two TCs
    tb = 1
    for d in range(1, B + 1):
        if B % d == 0 and d <= cap:
            tb = d
    return tb


def cbam_forward(x, params, *, storage_dtype=jnp.bfloat16, tb=None):
    B, C, H, W = x.shape
    HW = H * W

    in_bytes = jnp.dtype(storage_dtype).itemsize
    out_bytes = in_bytes
    if tb is None:
        tb = _pick_tb(B, C, HW, in_bytes, out_bytes)
    assert B % tb == 0

    # Lane-dense (B, C, H*W) layout; optional bf16 HBM storage (compute stays f32).
    xs = x.reshape(B, C, HW).astype(storage_dtype)

    # Per-dj column-validity masks for the flattened 7x7 conv (host precomputed).
    cols = np.arange(HW, dtype=np.int64) % W
    masks = jnp.asarray(np.stack(
        [((cols + dj - 3 >= 0) & (cols + dj - 3 < W)).astype(np.float32)
         for dj in range(7)], axis=0))                          # (7, HW)

    kernel = functools.partial(cbam_kernel, C=C, H=H, W=W)

    def full_vmem(shape):
        return pl.BlockSpec(shape, lambda b: (0,) * len(shape))

    smem = pl.BlockSpec(memory_space=pltpu.MemorySpace.SMEM)

    weight_names = ("w1m", "b1m", "w2m", "b2m", "w1a", "b1a", "w2a", "b2a")
    weight_bytes = 4 * (sum(int(np.prod(params[k].shape)) for k in weight_names)
                        + 7 * HW)
    need = (tb * C * HW * (2 * (in_bytes + out_bytes) + 3 * 4)
            + 2 * weight_bytes + (2 << 20))
    vmem_limit = int(min(max(need, 32 << 20), 56 << 20))

    out = pl.pallas_call(
        kernel,
        out_shape=jax.ShapeDtypeStruct((B, C, HW), storage_dtype),
        grid=(B // tb,),
        in_specs=[
            pl.BlockSpec((tb, C, HW), lambda b: (b, 0, 0)),     # x tile (lane-dense)
            full_vmem(params["w1m"].shape), full_vmem(params["b1m"].shape),
            full_vmem(params["w2m"].shape), full_vmem(params["b2m"].shape),
            full_vmem(params["w1a"].shape), full_vmem(params["b1a"].shape),
            full_vmem(params["w2a"].shape), full_vmem(params["b2a"].shape),
            full_vmem(masks.shape),                             # conv column masks
            smem,                                               # conv weights (98,)
            smem,                                               # conv bias (1,)
        ],
        out_specs=pl.BlockSpec((tb, C, HW), lambda b: (b, 0, 0)),
        compiler_params=pltpu.CompilerParams(
            dimension_semantics=("parallel",),
            vmem_limit_bytes=vmem_limit,
        ),
    )(xs, params["w1m"], params["b1m"], params["w2m"], params["b2m"],
      params["w1a"], params["b1a"], params["w2a"], params["b2a"],
      masks, params["wconv_flat"], params["bconv"])

    return out.reshape(B, C, H, W).astype(x.dtype)


# ------------------------------- Deterministic parameter init -------------------------------
def init_params(key, C):
    hid = int(C * 0.5)  # reduction ratio r = 0.5
    ks = jax.random.split(key, 10)

    def n(k, shape, scale=0.2):
        return (scale * jax.random.normal(k, shape)).astype(jnp.float32)

    return dict(
        # max-pool branch MLP (Linear(C, hid) -> ReLU -> Linear(hid, C) -> Sigmoid)
        w1m=n(ks[0], (C, hid)), b1m=n(ks[1], (1, hid)),
        w2m=n(ks[2], (hid, C)), b2m=n(ks[3], (1, C)),
        # avg-pool branch MLP
        w1a=n(ks[4], (C, hid)), b1a=n(ks[5], (1, hid)),
        w2a=n(ks[6], (hid, C)), b2a=n(ks[7], (1, C)),
        # spatial Conv2d(2, 1, 7, padding=3): weight (1,2,7,7) flattened, bias (1,)
        wconv_flat=n(ks[8], (2 * 7 * 7,)),
        bconv=n(ks[9], (1,)),
    )


# -------------------------------- Pure-JAX reference (for check) --------------------------------
def cbam_reference(x, p):
    mx = jnp.max(x, axis=(2, 3))
    av = jnp.mean(x, axis=(2, 3))

    def mlp(v, w1, b1, w2, b2):
        return jax.nn.sigmoid(jnp.maximum(v @ w1 + b1, 0.0) @ w2 + b2)

    mc = jax.nn.sigmoid(mlp(mx, p["w1m"], p["b1m"], p["w2m"], p["b2m"]) +
                        mlp(av, p["w1a"], p["b1a"], p["w2a"], p["b2a"]))
    y = x * mc[:, :, None, None]

    mp = jnp.max(y, axis=1)
    ap = jnp.mean(y, axis=1)
    cat = jnp.stack([mp, ap], axis=1)                        # (B, 2, H, W)
    wconv = p["wconv_flat"].reshape(1, 2, 7, 7)
    conv = jax.lax.conv_general_dilated(
        cat, wconv, window_strides=(1, 1), padding=((3, 3), (3, 3)),
        dimension_numbers=("NCHW", "OIHW", "NCHW"))
    ms = jax.nn.sigmoid(conv + p["bconv"][0])                # (B, 1, H, W)
    return y * ms


if __name__ == "__main__":
    B, C, H, W = 2, 4, 16, 16
    key = jax.random.PRNGKey(0)
    kx, kp = jax.random.split(key)
    x = jax.random.normal(kx, (B, C, H, W), dtype=jnp.float32)
    params = init_params(kp, C)

    ref = jax.block_until_ready(cbam_reference(x, params))

    # f32 HBM storage: matches the reference to float32 accuracy.
    out_f32 = jax.block_until_ready(
        cbam_forward(x, params, storage_dtype=jnp.float32))
    assert out_f32.shape == (B, C, H, W)
    np.testing.assert_allclose(np.asarray(out_f32), np.asarray(ref),
                               rtol=1e-4, atol=1e-5)

    # bf16 HBM storage (f32 compute): halves DMA bytes for the memory-bound bulk traffic.
    out_bf16 = jax.block_until_ready(
        cbam_forward(x, params, storage_dtype=jnp.bfloat16))
    assert out_bf16.shape == (B, C, H, W)
    np.testing.assert_allclose(np.asarray(out_bf16), np.asarray(ref),
                               rtol=2e-2, atol=5e-3)

    print("KERNEL_OK")
</pallas_src>

<mosaic_0001>
module attributes {stable_mosaic.version = 11 : i64} {
  func.func @cbam_kernel(%arg0: i32, %arg1: memref<1x4x256xf32, #tpu.memory_space<vmem>>, %arg2: memref<4x2xf32, #tpu.memory_space<vmem>>, %arg3: memref<1x2xf32, #tpu.memory_space<vmem>>, %arg4: memref<2x4xf32, #tpu.memory_space<vmem>>, %arg5: memref<1x4xf32, #tpu.memory_space<vmem>>, %arg6: memref<4x2xf32, #tpu.memory_space<vmem>>, %arg7: memref<1x2xf32, #tpu.memory_space<vmem>>, %arg8: memref<2x4xf32, #tpu.memory_space<vmem>>, %arg9: memref<1x4xf32, #tpu.memory_space<vmem>>, %arg10: memref<7x256xf32, #tpu.memory_space<vmem>>, %arg11: memref<98xf32, #tpu.memory_space<smem>>, %arg12: memref<1xf32, #tpu.memory_space<smem>>, %arg13: memref<1x4x256xf32, #tpu.memory_space<vmem>>) attributes {dimension_semantics = [#tpu.dimension_semantics<parallel>], iteration_bounds = array<i64: 2>, scalar_prefetch = 0 : i64, scratch_operands = 0 : i64, tpu.core_type = #tpu.core_type<tc>, window_params = [{transform_indices = @transform_0, window_bounds = array<i64: 1, 4, 256>}, {pipeline_mode = #tpu.pipeline_mode<synchronous>, transform_indices = @transform_1, window_bounds = array<i64: 4, 2>}, {pipeline_mode = #tpu.pipeline_mode<synchronous>, transform_indices = @transform_2, window_bounds = array<i64: 1, 2>}, {pipeline_mode = #tpu.pipeline_mode<synchronous>, transform_indices = @transform_3, window_bounds = array<i64: 2, 4>}, {pipeline_mode = #tpu.pipeline_mode<synchronous>, transform_indices = @transform_4, window_bounds = array<i64: 1, 4>}, {pipeline_mode = #tpu.pipeline_mode<synchronous>, transform_indices = @transform_5, window_bounds = array<i64: 4, 2>}, {pipeline_mode = #tpu.pipeline_mode<synchronous>, transform_indices = @transform_6, window_bounds = array<i64: 1, 2>}, {pipeline_mode = #tpu.pipeline_mode<synchronous>, transform_indices = @transform_7, window_bounds = array<i64: 2, 4>}, {pipeline_mode = #tpu.pipeline_mode<synchronous>, transform_indices = @transform_8, window_bounds = array<i64: 1, 4>}, {pipeline_mode = #tpu.pipeline_mode<synchronous>, transform_indices = @transform_9, window_bounds = array<i64: 7, 256>}, {transform_indices = @transform_10, window_bounds = array<i64: 98>}, {transform_indices = @transform_11, window_bounds = array<i64: 1>}, {transform_indices = @transform_12, window_bounds = array<i64: 1, 4, 256>}]} {
    %c0 = arith.constant 0 : index
    %c0_0 = arith.constant 0 : index
    %c0_1 = arith.constant 0 : index
    %0 = vector.load %arg1[%c0, %c0_0, %c0_1] : memref<1x4x256xf32, #tpu.memory_space<vmem>>, vector<1x4x256xf32>
    %cst = arith.constant dense<0xFF800000> : vector<1x4xf32>
    %1 = vector.multi_reduction <maximumf>, %0, %cst [2] : vector<1x4x256xf32> to vector<1x4xf32>
    %cst_2 = arith.constant dense<0.000000e+00> : vector<1x4xf32>
    %2 = vector.multi_reduction <add>, %0, %cst_2 [2] : vector<1x4x256xf32> to vector<1x4xf32>
    %cst_3 = arith.constant 3.906250e-03 : f32
    %3 = vector.broadcast %cst_3 : f32 to vector<1x4xf32>
    %4 = arith.mulf %2, %3 : vector<1x4xf32>
    %c0_4 = arith.constant 0 : index
    %c0_5 = arith.constant 0 : index
    %5 = vector.load %arg2[%c0_4, %c0_5] : memref<4x2xf32, #tpu.memory_space<vmem>>, vector<4x2xf32>
    %cst_6 = arith.constant dense<0.000000e+00> : vector<1x2xf32>
    %6 = tpu.matmul %1, %5, %cst_6 {dimension_numbers = #tpu.dot_dimension_numbers<[1], [0], [0], [1], [0, 0, 1, 1], [], []>} : vector<1x4xf32>, vector<4x2xf32>, vector<1x2xf32> -> vector<1x2xf32>
    %c0_7 = arith.constant 0 : index
    %c0_8 = arith.constant 0 : index
    %7 = vector.load %arg3[%c0_7, %c0_8] : memref<1x2xf32, #tpu.memory_space<vmem>>, vector<1x2xf32>
    %8 = arith.addf %6, %7 : vector<1x2xf32>
    %cst_9 = arith.constant 0.000000e+00 : f32
    %9 = vector.broadcast %cst_9 : f32 to vector<1x2xf32>
    %10 = arith.maximumf %8, %9 : vector<1x2xf32>
    %c0_10 = arith.constant 0 : index
    %c0_11 = arith.constant 0 : index
    %11 = vector.load %arg4[%c0_10, %c0_11] : memref<2x4xf32, #tpu.memory_space<vmem>>, vector<2x4xf32>
    %cst_12 = arith.constant dense<0.000000e+00> : vector<1x4xf32>
    %12 = tpu.matmul %10, %11, %cst_12 {dimension_numbers = #tpu.dot_dimension_numbers<[1], [0], [0], [1], [0, 0, 1, 1], [], []>} : vector<1x2xf32>, vector<2x4xf32>, vector<1x4xf32> -> vector<1x4xf32>
    %c0_13 = arith.constant 0 : index
    %c0_14 = arith.constant 0 : index
    %13 = vector.load %arg5[%c0_13, %c0_14] : memref<1x4xf32, #tpu.memory_space<vmem>>, vector<1x4xf32>
    %14 = arith.addf %12, %13 : vector<1x4xf32>
    %15 = arith.negf %14 : vector<1x4xf32>
    %16 = math.exp %15 : vector<1x4xf32>
    %cst_15 = arith.constant 1.000000e+00 : f32
    %17 = vector.broadcast %cst_15 : f32 to vector<1x4xf32>
    %18 = arith.addf %17, %16 : vector<1x4xf32>
    %19 = arith.divf %17, %18 : vector<1x4xf32>
    %c0_16 = arith.constant 0 : index
    %c0_17 = arith.constant 0 : index
    %20 = vector.load %arg6[%c0_16, %c0_17] : memref<4x2xf32, #tpu.memory_space<vmem>>, vector<4x2xf32>
    %cst_18 = arith.constant dense<0.000000e+00> : vector<1x2xf32>
    %21 = tpu.matmul %4, %20, %cst_18 {dimension_numbers = #tpu.dot_dimension_numbers<[1], [0], [0], [1], [0, 0, 1, 1], [], []>} : vector<1x4xf32>, vector<4x2xf32>, vector<1x2xf32> -> vector<1x2xf32>
    %c0_19 = arith.constant 0 : index
    %c0_20 = arith.constant 0 : index
    %22 = vector.load %arg7[%c0_19, %c0_20] : memref<1x2xf32, #tpu.memory_space<vmem>>, vector<1x2xf32>
    %23 = arith.addf %21, %22 : vector<1x2xf32>
    %cst_21 = arith.constant 0.000000e+00 : f32
    %24 = vector.broadcast %cst_21 : f32 to vector<1x2xf32>
    %25 = arith.maximumf %23, %24 : vector<1x2xf32>
    %c0_22 = arith.constant 0 : index
    %c0_23 = arith.constant 0 : index
    %26 = vector.load %arg8[%c0_22, %c0_23] : memref<2x4xf32, #tpu.memory_space<vmem>>, vector<2x4xf32>
    %cst_24 = arith.constant dense<0.000000e+00> : vector<1x4xf32>
    %27 = tpu.matmul %25, %26, %cst_24 {dimension_numbers = #tpu.dot_dimension_numbers<[1], [0], [0], [1], [0, 0, 1, 1], [], []>} : vector<1x2xf32>, vector<2x4xf32>, vector<1x4xf32> -> vector<1x4xf32>
    %c0_25 = arith.constant 0 : index
    %c0_26 = arith.constant 0 : index
    %28 = vector.load %arg9[%c0_25, %c0_26] : memref<1x4xf32, #tpu.memory_space<vmem>>, vector<1x4xf32>
    %29 = arith.addf %27, %28 : vector<1x4xf32>
    %30 = arith.negf %29 : vector<1x4xf32>
    %31 = math.exp %30 : vector<1x4xf32>
    %cst_27 = arith.constant 1.000000e+00 : f32
    %32 = vector.broadcast %cst_27 : f32 to vector<1x4xf32>
    %33 = arith.addf %32, %31 : vector<1x4xf32>
    %34 = arith.divf %32, %33 : vector<1x4xf32>
    %35 = arith.addf %19, %34 : vector<1x4xf32>
    %36 = arith.negf %35 : vector<1x4xf32>
    %37 = math.exp %36 : vector<1x4xf32>
    %cst_28 = arith.constant 1.000000e+00 : f32
    %38 = vector.broadcast %cst_28 : f32 to vector<1x4xf32>
    %39 = arith.addf %38, %37 : vector<1x4xf32>
    %40 = arith.divf %38, %39 : vector<1x4xf32>
    %41 = vector.shape_cast %40 : vector<1x4xf32> to vector<1x4x1xf32>
    %42 = vector.broadcast %41 : vector<1x4x1xf32> to vector<1x4x256xf32>
    %43 = arith.mulf %0, %42 : vector<1x4x256xf32>
    %cst_29 = arith.constant dense<0xFF800000> : vector<1x256xf32>
    %44 = vector.multi_reduction <maximumf>, %43, %cst_29 [1] : vector<1x4x256xf32> to vector<1x256xf32>
    %cst_30 = arith.constant dense<0.000000e+00> : vector<1x256xf32>
    %45 = vector.multi_reduction <add>, %43, %cst_30 [1] : vector<1x4x256xf32> to vector<1x256xf32>
    %cst_31 = arith.constant 2.500000e-01 : f32
    %46 = vector.broadcast %cst_31 : f32 to vector<1x256xf32>
    %47 = arith.mulf %45, %46 : vector<1x256xf32>
    %c0_32 = arith.constant 0 : index
    %c0_33 = arith.constant 0 : index
    %48 = vector.load %arg10[%c0_32, %c0_33] : memref<7x256xf32, #tpu.memory_space<vmem>>, vector<7x256xf32>
    %cst_34 = arith.constant 0.000000e+00 : f32
    %49 = vector.broadcast %cst_34 : f32 to vector<1x51xf32>
    %50 = tpu.concatenate %49, %44, %49 in 1 : vector<1x51xf32>, vector<1x256xf32>, vector<1x51xf32> -> vector<1x358xf32>
    %51 = tpu.concatenate %49, %47, %49 in 1 : vector<1x51xf32>, vector<1x256xf32>, vector<1x51xf32> -> vector<1x358xf32>
    %c0_35 = arith.constant 0 : index
    %52 = memref.load %arg11[%c0_35] : memref<98xf32, #tpu.memory_space<smem>>
    %53 = vector.extract_strided_slice %50 {offsets = [0, 0], sizes = [1, 256], strides = [1, 1]} : vector<1x358xf32> to vector<1x256xf32>
    %54 = vector.broadcast %52 : f32 to vector<1x256xf32>
    %55 = arith.mulf %54, %53 : vector<1x256xf32>
    %c7 = arith.constant 7 : index
    %56 = memref.load %arg11[%c7] : memref<98xf32, #tpu.memory_space<smem>>
    %57 = vector.extract_strided_slice %50 {offsets = [0, 16], sizes = [1, 256], strides = [1, 1]} : vector<1x358xf32> to vector<1x256xf32>
    %58 = vector.broadcast %56 : f32 to vector<1x256xf32>
    %59 = arith.mulf %58, %57 : vector<1x256xf32>
    %60 = arith.addf %55, %59 : vector<1x256xf32>
    %c14 = arith.constant 14 : index
    %61 = memref.load %arg11[%c14] : memref<98xf32, #tpu.memory_space<smem>>
    %62 = vector.extract_strided_slice %50 {offsets = [0, 32], sizes = [1, 256], strides = [1, 1]} : vector<1x358xf32> to vector<1x256xf32>
    %63 = vector.broadcast %61 : f32 to vector<1x256xf32>
    %64 = arith.mulf %63, %62 : vector<1x256xf32>
    %65 = arith.addf %60, %64 : vector<1x256xf32>
    %c21 = arith.constant 21 : index
    %66 = memref.load %arg11[%c21] : memref<98xf32, #tpu.memory_space<smem>>
    %67 = vector.extract_strided_slice %50 {offsets = [0, 48], sizes = [1, 256], strides = [1, 1]} : vector<1x358xf32> to vector<1x256xf32>
    %68 = vector.broadcast %66 : f32 to vector<1x256xf32>
    %69 = arith.mulf %68, %67 : vector<1x256xf32>
    %70 = arith.addf %65, %69 : vector<1x256xf32>
    %c28 = arith.constant 28 : index
    %71 = memref.load %arg11[%c28] : memref<98xf32, #tpu.memory_space<smem>>
    %72 = vector.extract_strided_slice %50 {offsets = [0, 64], sizes = [1, 256], strides = [1, 1]} : vector<1x358xf32> to vector<1x256xf32>
    %73 = vector.broadcast %71 : f32 to vector<1x256xf32>
    %74 = arith.mulf %73, %72 : vector<1x256xf32>
    %75 = arith.addf %70, %74 : vector<1x256xf32>
    %c35 = arith.constant 35 : index
    %76 = memref.load %arg11[%c35] : memref<98xf32, #tpu.memory_space<smem>>
    %77 = vector.extract_strided_slice %50 {offsets = [0, 80], sizes = [1, 256], strides = [1, 1]} : vector<1x358xf32> to vector<1x256xf32>
    %78 = vector.broadcast %76 : f32 to vector<1x256xf32>
    %79 = arith.mulf %78, %77 : vector<1x256xf32>
    %80 = arith.addf %75, %79 : vector<1x256xf32>
    %c42 = arith.constant 42 : index
    %81 = memref.load %arg11[%c42] : memref<98xf32, #tpu.memory_space<smem>>
    %82 = vector.extract_strided_slice %50 {offsets = [0, 96], sizes = [1, 256], strides = [1, 1]} : vector<1x358xf32> to vector<1x256xf32>
    %83 = vector.broadcast %81 : f32 to vector<1x256xf32>
    %84 = arith.mulf %83, %82 : vector<1x256xf32>
    %85 = arith.addf %80, %84 : vector<1x256xf32>
    %c49 = arith.constant 49 : index
    %86 = memref.load %arg11[%c49] : memref<98xf32, #tpu.memory_space<smem>>
    %87 = vector.extract_strided_slice %51 {offsets = [0, 0], sizes = [1, 256], strides = [1, 1]} : vector<1x358xf32> to vector<1x256xf32>
    %88 = vector.broadcast %86 : f32 to vector<1x256xf32>
    %89 = arith.mulf %88, %87 : vector<1x256xf32>
    %90 = arith.addf %85, %89 : vector<1x256xf32>
    %c56 = arith.constant 56 : index
    %91 = memref.load %arg11[%c56] : memref<98xf32, #tpu.memory_space<smem>>
    %92 = vector.extract_strided_slice %51 {offsets = [0, 16], sizes = [1, 256], strides = [1, 1]} : vector<1x358xf32> to vector<1x256xf32>
    %93 = vector.broadcast %91 : f32 to vector<1x256xf32>
    %94 = arith.mulf %93, %92 : vector<1x256xf32>
    %95 = arith.addf %90, %94 : vector<1x256xf32>
    %c63 = arith.constant 63 : index
    %96 = memref.load %arg11[%c63] : memref<98xf32, #tpu.memory_space<smem>>
    %97 = vector.extract_strided_slice %51 {offsets = [0, 32], sizes = [1, 256], strides = [1, 1]} : vector<1x358xf32> to vector<1x256xf32>
    %98 = vector.broadcast %96 : f32 to vector<1x256xf32>
    %99 = arith.mulf %98, %97 : vector<1x256xf32>
    %100 = arith.addf %95, %99 : vector<1x256xf32>
    %c70 = arith.constant 70 : index
    %101 = memref.load %arg11[%c70] : memref<98xf32, #tpu.memory_space<smem>>
    %102 = vector.extract_strided_slice %51 {offsets = [0, 48], sizes = [1, 256], strides = [1, 1]} : vector<1x358xf32> to vector<1x256xf32>
    %103 = vector.broadcast %101 : f32 to vector<1x256xf32>
    %104 = arith.mulf %103, %102 : vector<1x256xf32>
    %105 = arith.addf %100, %104 : vector<1x256xf32>
    %c77 = arith.constant 77 : index
    %106 = memref.load %arg11[%c77] : memref<98xf32, #tpu.memory_space<smem>>
    %107 = vector.extract_strided_slice %51 {offsets = [0, 64], sizes = [1, 256], strides = [1, 1]} : vector<1x358xf32> to vector<1x256xf32>
    %108 = vector.broadcast %106 : f32 to vector<1x256xf32>
    %109 = arith.mulf %108, %107 : vector<1x256xf32>
    %110 = arith.addf %105, %109 : vector<1x256xf32>
    %c84 = arith.constant 84 : index
    %111 = memref.load %arg11[%c84] : memref<98xf32, #tpu.memory_space<smem>>
    %112 = vector.extract_strided_slice %51 {offsets = [0, 80], sizes = [1, 256], strides = [1, 1]} : vector<1x358xf32> to vector<1x256xf32>
    %113 = vector.broadcast %111 : f32 to vector<1x256xf32>
    %114 = arith.mulf %113, %112 : vector<1x256xf32>
    %115 = arith.addf %110, %114 : vector<1x256xf32>
    %c91 = arith.constant 91 : index
    %116 = memref.load %arg11[%c91] : memref<98xf32, #tpu.memory_space<smem>>
    %117 = vector.extract_strided_slice %51 {offsets = [0, 96], sizes = [1, 256], strides = [1, 1]} : vector<1x358xf32> to vector<1x256xf32>
    %118 = vector.broadcast %116 : f32 to vector<1x256xf32>
    %119 = arith.mulf %118, %117 : vector<1x256xf32>
    %120 = arith.addf %115, %119 : vector<1x256xf32>
    %121 = vector.extract_strided_slice %48 {offsets = [0, 0], sizes = [1, 256], strides = [1, 1]} : vector<7x256xf32> to vector<1x256xf32>
    %122 = arith.mulf %120, %121 : vector<1x256xf32>
    %c1 = arith.constant 1 : index
    %123 = memref.load %arg11[%c1] : memref<98xf32, #tpu.memory_space<smem>>
    %124 = vector.extract_strided_slice %50 {offsets = [0, 1], sizes = [1, 256], strides = [1, 1]} : vector<1x358xf32> to vector<1x256xf32>
    %125 = vector.broadcast %123 : f32 to vector<1x256xf32>
    %126 = arith.mulf %125, %124 : vector<1x256xf32>
    %c8 = arith.constant 8 : index
    %127 = memref.load %arg11[%c8] : memref<98xf32, #tpu.memory_space<smem>>
    %128 = vector.extract_strided_slice %50 {offsets = [0, 17], sizes = [1, 256], strides = [1, 1]} : vector<1x358xf32> to vector<1x256xf32>
    %129 = vector.broadcast %127 : f32 to vector<1x256xf32>
    %130 = arith.mulf %129, %128 : vector<1x256xf32>
    %131 = arith.addf %126, %130 : vector<1x256xf32>
    %c15 = arith.constant 15 : index
    %132 = memref.load %arg11[%c15] : memref<98xf32, #tpu.memory_space<smem>>
    %133 = vector.extract_strided_slice %50 {offsets = [0, 33], sizes = [1, 256], strides = [1, 1]} : vector<1x358xf32> to vector<1x256xf32>
    %134 = vector.broadcast %132 : f32 to vector<1x256xf32>
    %135 = arith.mulf %134, %133 : vector<1x256xf32>
    %136 = arith.addf %131, %135 : vector<1x256xf32>
    %c22 = arith.constant 22 : index
    %137 = memref.load %arg11[%c22] : memref<98xf32, #tpu.memory_space<smem>>
    %138 = vector.extract_strided_slice %50 {offsets = [0, 49], sizes = [1, 256], strides = [1, 1]} : vector<1x358xf32> to vector<1x256xf32>
    %139 = vector.broadcast %137 : f32 to vector<1x256xf32>
    %140 = arith.mulf %139, %138 : vector<1x256xf32>
    %141 = arith.addf %136, %140 : vector<1x256xf32>
    %c29 = arith.constant 29 : index
    %142 = memref.load %arg11[%c29] : memref<98xf32, #tpu.memory_space<smem>>
    %143 = vector.extract_strided_slice %50 {offsets = [0, 65], sizes = [1, 256], strides = [1, 1]} : vector<1x358xf32> to vector<1x256xf32>
    %144 = vector.broadcast %142 : f32 to vector<1x256xf32>
    %145 = arith.mulf %144, %143 : vector<1x256xf32>
    %146 = arith.addf %141, %145 : vector<1x256xf32>
    %c36 = arith.constant 36 : index
    %147 = memref.load %arg11[%c36] : memref<98xf32, #tpu.memory_space<smem>>
    %148 = vector.extract_strided_slice %50 {offsets = [0, 81], sizes = [1, 256], strides = [1, 1]} : vector<1x358xf32> to vector<1x256xf32>
    %149 = vector.broadcast %147 : f32 to vector<1x256xf32>
    %150 = arith.mulf %149, %148 : vector<1x256xf32>
    %151 = arith.addf %146, %150 : vector<1x256xf32>
    %c43 = arith.constant 43 : index
    %152 = memref.load %arg11[%c43] : memref<98xf32, #tpu.memory_space<smem>>
    %153 = vector.extract_strided_slice %50 {offsets = [0, 97], sizes = [1, 256], strides = [1, 1]} : vector<1x358xf32> to vector<1x256xf32>
    %154 = vector.broadcast %152 : f32 to vector<1x256xf32>
    %155 = arith.mulf %154, %153 : vector<1x256xf32>
    %156 = arith.addf %151, %155 : vector<1x256xf32>
    %c50 = arith.constant 50 : index
    %157 = memref.load %arg11[%c50] : memref<98xf32, #tpu.memory_space<smem>>
    %158 = vector.extract_strided_slice %51 {offsets = [0, 1], sizes = [1, 256], strides = [1, 1]} : vector<1x358xf32> to vector<1x256xf32>
    %159 = vector.broadcast %157 : f32 to vector<1x256xf32>
    %160 = arith.mulf %159, %158 : vector<1x256xf32>
    %161 = arith.addf %156, %160 : vector<1x256xf32>
    %c57 = arith.constant 57 : index
    %162 = memref.load %arg11[%c57] : memref<98xf32, #tpu.memory_space<smem>>
    %163 = vector.extract_strided_slice %51 {offsets = [0, 17], sizes = [1, 256], strides = [1, 1]} : vector<1x358xf32> to vector<1x256xf32>
    %164 = vector.broadcast %162 : f32 to vector<1x256xf32>
    %165 = arith.mulf %164, %163 : vector<1x256xf32>
    %166 = arith.addf %161, %165 : vector<1x256xf32>
    %c64 = arith.constant 64 : index
    %167 = memref.load %arg11[%c64] : memref<98xf32, #tpu.memory_space<smem>>
    %168 = vector.extract_strided_slice %51 {offsets = [0, 33], sizes = [1, 256], strides = [1, 1]} : vector<1x358xf32> to vector<1x256xf32>
    %169 = vector.broadcast %167 : f32 to vector<1x256xf32>
    %170 = arith.mulf %169, %168 : vector<1x256xf32>
    %171 = arith.addf %166, %170 : vector<1x256xf32>
    %c71 = arith.constant 71 : index
    %172 = memref.load %arg11[%c71] : memref<98xf32, #tpu.memory_space<smem>>
    %173 = vector.extract_strided_slice %51 {offsets = [0, 49], sizes = [1, 256], strides = [1, 1]} : vector<1x358xf32> to vector<1x256xf32>
    %174 = vector.broadcast %172 : f32 to vector<1x256xf32>
    %175 = arith.mulf %174, %173 : vector<1x256xf32>
    %176 = arith.addf %171, %175 : vector<1x256xf32>
    %c78 = arith.constant 78 : index
    %177 = memref.load %arg11[%c78] : memref<98xf32, #tpu.memory_space<smem>>
    %178 = vector.extract_strided_slice %51 {offsets = [0, 65], sizes = [1, 256], strides = [1, 1]} : vector<1x358xf32> to vector<1x256xf32>
    %179 = vector.broadcast %177 : f32 to vector<1x256xf32>
    %180 = arith.mulf %179, %178 : vector<1x256xf32>
    %181 = arith.addf %176, %180 : vector<1x256xf32>
    %c85 = arith.constant 85 : index
    %182 = memref.load %arg11[%c85] : memref<98xf32, #tpu.memory_space<smem>>
    %183 = vector.extract_strided_slice %51 {offsets = [0, 81], sizes = [1, 256], strides = [1, 1]} : vector<1x358xf32> to vector<1x256xf32>
    %184 = vector.broadcast %182 : f32 to vector<1x256xf32>
    %185 = arith.mulf %184, %183 : vector<1x256xf32>
    %186 = arith.addf %181, %185 : vector<1x256xf32>
    %c92 = arith.constant 92 : index
    %187 = memref.load %arg11[%c92] : memref<98xf32, #tpu.memory_space<smem>>
    %188 = vector.extract_strided_slice %51 {offsets = [0, 97], sizes = [1, 256], strides = [1, 1]} : vector<1x358xf32> to vector<1x256xf32>
    %189 = vector.broadcast %187 : f32 to vector<1x256xf32>
    %190 = arith.mulf %189, %188 : vector<1x256xf32>
    %191 = arith.addf %186, %190 : vector<1x256xf32>
    %192 = vector.extract_strided_slice %48 {offsets = [1, 0], sizes = [1, 256], strides = [1, 1]} : vector<7x256xf32> to vector<1x256xf32>
    %193 = arith.mulf %191, %192 : vector<1x256xf32>
    %c2 = arith.constant 2 : index
    %194 = memref.load %arg11[%c2] : memref<98xf32, #tpu.memory_space<smem>>
    %195 = vector.extract_strided_slice %50 {offsets = [0, 2], sizes = [1, 256], strides = [1, 1]} : vector<1x358xf32> to vector<1x256xf32>
    %196 = vector.broadcast %194 : f32 to vector<1x256xf32>
    %197 = arith.mulf %196, %195 : vector<1x256xf32>
    %c9 = arith.constant 9 : index
    %198 = memref.load %arg11[%c9] : memref<98xf32, #tpu.memory_space<smem>>
    %199 = vector.extract_strided_slice %50 {offsets = [0, 18], sizes = [1, 256], strides = [1, 1]} : vector<1x358xf32> to vector<1x256xf32>
    %200 = vector.broadcast %198 : f32 to vector<1x256xf32>
    %201 = arith.mulf %200, %199 : vector<1x256xf32>
    %202 = arith.addf %197, %201 : vector<1x256xf32>
    %c16 = arith.constant 16 : index
    %203 = memref.load %arg11[%c16] : memref<98xf32, #tpu.memory_space<smem>>
    %204 = vector.extract_strided_slice %50 {offsets = [0, 34], sizes = [1, 256], strides = [1, 1]} : vector<1x358xf32> to vector<1x256xf32>
    %205 = vector.broadcast %203 : f32 to vector<1x256xf32>
    %206 = arith.mulf %205, %204 : vector<1x256xf32>
    %207 = arith.addf %202, %206 : vector<1x256xf32>
    %c23 = arith.constant 23 : index
    %208 = memref.load %arg11[%c23] : memref<98xf32, #tpu.memory_space<smem>>
    %209 = vector.extract_strided_slice %50 {offsets = [0, 50], sizes = [1, 256], strides = [1, 1]} : vector<1x358xf32> to vector<1x256xf32>
    %210 = vector.broadcast %208 : f32 to vector<1x256xf32>
    %211 = arith.mulf %210, %209 : vector<1x256xf32>
    %212 = arith.addf %207, %211 : vector<1x256xf32>
    %c30 = arith.constant 30 : index
    %213 = memref.load %arg11[%c30] : memref<98xf32, #tpu.memory_space<smem>>
    %214 = vector.extract_strided_slice %50 {offsets = [0, 66], sizes = [1, 256], strides = [1, 1]} : vector<1x358xf32> to vector<1x256xf32>
    %215 = vector.broadcast %213 : f32 to vector<1x256xf32>
    %216 = arith.mulf %215, %214 : vector<1x256xf32>
    %217 = arith.addf %212, %216 : vector<1x256xf32>
    %c37 = arith.constant 37 : index
    %218 = memref.load %arg11[%c37] : memref<98xf32, #tpu.memory_space<smem>>
    %219 = vector.extract_strided_slice %50 {offsets = [0, 82], sizes = [1, 256], strides = [1, 1]} : vector<1x358xf32> to vector<1x256xf32>
    %220 = vector.broadcast %218 : f32 to vector<1x256xf32>
    %221 = arith.mulf %220, %219 : vector<1x256xf32>
    %222 = arith.addf %217, %221 : vector<1x256xf32>
    %c44 = arith.constant 44 : index
    %223 = memref.load %arg11[%c44] : memref<98xf32, #tpu.memory_space<smem>>
    %224 = vector.extract_strided_slice %50 {offsets = [0, 98], sizes = [1, 256], strides = [1, 1]} : vector<1x358xf32> to vector<1x256xf32>
    %225 = vector.broadcast %223 : f32 to vector<1x256xf32>
    %226 = arith.mulf %225, %224 : vector<1x256xf32>
    %227 = arith.addf %222, %226 : vector<1x256xf32>
    %c51 = arith.constant 51 : index
    %228 = memref.load %arg11[%c51] : memref<98xf32, #tpu.memory_space<smem>>
    %229 = vector.extract_strided_slice %51 {offsets = [0, 2], sizes = [1, 256], strides = [1, 1]} : vector<1x358xf32> to vector<1x256xf32>
    %230 = vector.broadcast %228 : f32 to vector<1x256xf32>
    %231 = arith.mulf %230, %229 : vector<1x256xf32>
    %232 = arith.addf %227, %231 : vector<1x256xf32>
    %c58 = arith.constant 58 : index
    %233 = memref.load %arg11[%c58] : memref<98xf32, #tpu.memory_space<smem>>
    %234 = vector.extract_strided_slice %51 {offsets = [0, 18], sizes = [1, 256], strides = [1, 1]} : vector<1x358xf32> to vector<1x256xf32>
    %235 = vector.broadcast %233 : f32 to vector<1x256xf32>
    %236 = arith.mulf %235, %234 : vector<1x256xf32>
    %237 = arith.addf %232, %236 : vector<1x256xf32>
    %c65 = arith.constant 65 : index
    %238 = memref.load %arg11[%c65] : memref<98xf32, #tpu.memory_space<smem>>
    %239 = vector.extract_strided_slice %51 {offsets = [0, 34], sizes = [1, 256], strides = [1, 1]} : vector<1x358xf32> to vector<1x256xf32>
    %240 = vector.broadcast %238 : f32 to vector<1x256xf32>
    %241 = arith.mulf %240, %239 : vector<1x256xf32>
    %242 = arith.addf %237, %241 : vector<1x256xf32>
    %c72 = arith.constant 72 : index
    %243 = memref.load %arg11[%c72] : memref<98xf32, #tpu.memory_space<smem>>
    %244 = vector.extract_strided_slice %51 {offsets = [0, 50], sizes = [1, 256], strides = [1, 1]} : vector<1x358xf32> to vector<1x256xf32>
    %245 = vector.broadcast %243 : f32 to vector<1x256xf32>
    %246 = arith.mulf %245, %244 : vector<1x256xf32>
    %247 = arith.addf %242, %246 : vector<1x256xf32>
    %c79 = arith.constant 79 : index
    %248 = memref.load %arg11[%c79] : memref<98xf32, #tpu.memory_space<smem>>
    %249 = vector.extract_strided_slice %51 {offsets = [0, 66], sizes = [1, 256], strides = [1, 1]} : vector<1x358xf32> to vector<1x256xf32>
    %250 = vector.broadcast %248 : f32 to vector<1x256xf32>
    %251 = arith.mulf %250, %249 : vector<1x256xf32>
    %252 = arith.addf %247, %251 : vector<1x256xf32>
    %c86 = arith.constant 86 : index
    %253 = memref.load %arg11[%c86] : memref<98xf32, #tpu.memory_space<smem>>
    %254 = vector.extract_strided_slice %51 {offsets = [0, 82], sizes = [1, 256], strides = [1, 1]} : vector<1x358xf32> to vector<1x256xf32>
    %255 = vector.broadcast %253 : f32 to vector<1x256xf32>
    %256 = arith.mulf %255, %254 : vector<1x256xf32>
    %257 = arith.addf %252, %256 : vector<1x256xf32>
    %c93 = arith.constant 93 : index
    %258 = memref.load %arg11[%c93] : memref<98xf32, #tpu.memory_space<smem>>
    %259 = vector.extract_strided_slice %51 {offsets = [0, 98], sizes = [1, 256], strides = [1, 1]} : vector<1x358xf32> to vector<1x256xf32>
    %260 = vector.broadcast %258 : f32 to vector<1x256xf32>
    %261 = arith.mulf %260, %259 : vector<1x256xf32>
    %262 = arith.addf %257, %261 : vector<1x256xf32>
    %263 = vector.extract_strided_slice %48 {offsets = [2, 0], sizes = [1, 256], strides = [1, 1]} : vector<7x256xf32> to vector<1x256xf32>
    %264 = arith.mulf %262, %263 : vector<1x256xf32>
    %c3 = arith.constant 3 : index
    %265 = memref.load %arg11[%c3] : memref<98xf32, #tpu.memory_space<smem>>
    %266 = vector.extract_strided_slice %50 {offsets = [0, 3], sizes = [1, 256], strides = [1, 1]} : vector<1x358xf32> to vector<1x256xf32>
    %267 = vector.broadcast %265 : f32 to vector<1x256xf32>
    %268 = arith.mulf %267, %266 : vector<1x256xf32>
    %c10 = arith.constant 10 : index
    %269 = memref.load %arg11[%c10] : memref<98xf32, #tpu.memory_space<smem>>
    %270 = vector.extract_strided_slice %50 {offsets = [0, 19], sizes = [1, 256], strides = [1, 1]} : vector<1x358xf32> to vector<1x256xf32>
    %271 = vector.broadcast %269 : f32 to vector<1x256xf32>
    %272 = arith.mulf %271, %270 : vector<1x256xf32>
    %273 = arith.addf %268, %272 : vector<1x256xf32>
    %c17 = arith.constant 17 : index
    %274 = memref.load %arg11[%c17] : memref<98xf32, #tpu.memory_space<smem>>
    %275 = vector.extract_strided_slice %50 {offsets = [0, 35], sizes = [1, 256], strides = [1, 1]} : vector<1x358xf32> to vector<1x256xf32>
    %276 = vector.broadcast %274 : f32 to vector<1x256xf32>
    %277 = arith.mulf %276, %275 : vector<1x256xf32>
    %278 = arith.addf %273, %277 : vector<1x256xf32>
    %c24 = arith.constant 24 : index
    %279 = memref.load %arg11[%c24] : memref<98xf32, #tpu.memory_space<smem>>
    %280 = vector.extract_strided_slice %50 {offsets = [0, 51], sizes = [1, 256], strides = [1, 1]} : vector<1x358xf32> to vector<1x256xf32>
    %281 = vector.broadcast %279 : f32 to vector<1x256xf32>
    %282 = arith.mulf %281, %280 : vector<1x256xf32>
    %283 = arith.addf %278, %282 : vector<1x256xf32>
    %c31 = arith.constant 31 : index
    %284 = memref.load %arg11[%c31] : memref<98xf32, #tpu.memory_space<smem>>
    %285 = vector.extract_strided_slice %50 {offsets = [0, 67], sizes = [1, 256], strides = [1, 1]} : vector<1x358xf32> to vector<1x256xf32>
    %286 = vector.broadcast %284 : f32 to vector<1x256xf32>
    %287 = arith.mulf %286, %285 : vector<1x256xf32>
    %288 = arith.addf %283, %287 : vector<1x256xf32>
    %c38 = arith.constant 38 : index
    %289 = memref.load %arg11[%c38] : memref<98xf32, #tpu.memory_space<smem>>
    %290 = vector.extract_strided_slice %50 {offsets = [0, 83], sizes = [1, 256], strides = [1, 1]} : vector<1x358xf32> to vector<1x256xf32>
    %291 = vector.broadcast %289 : f32 to vector<1x256xf32>
    %292 = arith.mulf %291, %290 : vector<1x256xf32>
    %293 = arith.addf %288, %292 : vector<1x256xf32>
    %c45 = arith.constant 45 : index
    %294 = memref.load %arg11[%c45] : memref<98xf32, #tpu.memory_space<smem>>
    %295 = vector.extract_strided_slice %50 {offsets = [0, 99], sizes = [1, 256], strides = [1, 1]} : vector<1x358xf32> to vector<1x256xf32>
    %296 = vector.broadcast %294 : f32 to vector<1x256xf32>
    %297 = arith.mulf %296, %295 : vector<1x256xf32>
    %298 = arith.addf %293, %297 : vector<1x256xf32>
    %c52 = arith.constant 52 : index
    %299 = memref.load %arg11[%c52] : memref<98xf32, #tpu.memory_space<smem>>
    %300 = vector.extract_strided_slice %51 {offsets = [0, 3], sizes = [1, 256], strides = [1, 1]} : vector<1x358xf32> to vector<1x256xf32>
    %301 = vector.broadcast %299 : f32 to vector<1x256xf32>
    %302 = arith.mulf %301, %300 : vector<1x256xf32>
    %303 = arith.addf %298, %302 : vector<1x256xf32>
    %c59 = arith.constant 59 : index
    %304 = memref.load %arg11[%c59] : memref<98xf32, #tpu.memory_space<smem>>
    %305 = vector.extract_strided_slice %51 {offsets = [0, 19], sizes = [1, 256], strides = [1, 1]} : vector<1x358xf32> to vector<1x256xf32>
    %306 = vector.broadcast %304 : f32 to vector<1x256xf32>
    %307 = arith.mulf %306, %305 : vector<1x256xf32>
    %308 = arith.addf %303, %307 : vector<1x256xf32>
    %c66 = arith.constant 66 : index
    %309 = memref.load %arg11[%c66] : memref<98xf32, #tpu.memory_space<smem>>
    %310 = vector.extract_strided_slice %51 {offsets = [0, 35], sizes = [1, 256], strides = [1, 1]} : vector<1x358xf32> to vector<1x256xf32>
    %311 = vector.broadcast %309 : f32 to vector<1x256xf32>
    %312 = arith.mulf %311, %310 : vector<1x256xf32>
    %313 = arith.addf %308, %312 : vector<1x256xf32>
    %c73 = arith.constant 73 : index
    %314 = memref.load %arg11[%c73] : memref<98xf32, #tpu.memory_space<smem>>
    %315 = vector.extract_strided_slice %51 {offsets = [0, 51], sizes = [1, 256], strides = [1, 1]} : vector<1x358xf32> to vector<1x256xf32>
    %316 = vector.broadcast %314 : f32 to vector<1x256xf32>
    %317 = arith.mulf %316, %315 : vector<1x256xf32>
    %318 = arith.addf %313, %317 : vector<1x256xf32>
    %c80 = arith.constant 80 : index
    %319 = memref.load %arg11[%c80] : memref<98xf32, #tpu.memory_space<smem>>
    %320 = vector.extract_strided_slice %51 {offsets = [0, 67], sizes = [1, 256], strides = [1, 1]} : vector<1x358xf32> to vector<1x256xf32>
    %321 = vector.broadcast %319 : f32 to vector<1x256xf32>
    %322 = arith.mulf %321, %320 : vector<1x256xf32>
    %323 = arith.addf %318, %322 : vector<1x256xf32>
    %c87 = arith.constant 87 : index
    %324 = memref.load %arg11[%c87] : memref<98xf32, #tpu.memory_space<smem>>
    %325 = vector.extract_strided_slice %51 {offsets = [0, 83], sizes = [1, 256], strides = [1, 1]} : vector<1x358xf32> to vector<1x256xf32>
    %326 = vector.broadcast %324 : f32 to vector<1x256xf32>
    %327 = arith.mulf %326, %325 : vector<1x256xf32>
    %328 = arith.addf %323, %327 : vector<1x256xf32>
    %c94 = arith.constant 94 : index
    %329 = memref.load %arg11[%c94] : memref<98xf32, #tpu.memory_space<smem>>
    %330 = vector.extract_strided_slice %51 {offsets = [0, 99], sizes = [1, 256], strides = [1, 1]} : vector<1x358xf32> to vector<1x256xf32>
    %331 = vector.broadcast %329 : f32 to vector<1x256xf32>
    %332 = arith.mulf %331, %330 : vector<1x256xf32>
    %333 = arith.addf %328, %332 : vector<1x256xf32>
    %334 = vector.extract_strided_slice %48 {offsets = [3, 0], sizes = [1, 256], strides = [1, 1]} : vector<7x256xf32> to vector<1x256xf32>
    %335 = arith.mulf %333, %334 : vector<1x256xf32>
    %c4 = arith.constant 4 : index
    %336 = memref.load %arg11[%c4] : memref<98xf32, #tpu.memory_space<smem>>
    %337 = vector.extract_strided_slice %50 {offsets = [0, 4], sizes = [1, 256], strides = [1, 1]} : vector<1x358xf32> to vector<1x256xf32>
    %338 = vector.broadcast %336 : f32 to vector<1x256xf32>
    %339 = arith.mulf %338, %337 : vector<1x256xf32>
    %c11 = arith.constant 11 : index
    %340 = memref.load %arg11[%c11] : memref<98xf32, #tpu.memory_space<smem>>
    %341 = vector.extract_strided_slice %50 {offsets = [0, 20], sizes = [1, 256], strides = [1, 1]} : vector<1x358xf32> to vector<1x256xf32>
    %342 = vector.broadcast %340 : f32 to vector<1x256xf32>
    %343 = arith.mulf %342, %341 : vector<1x256xf32>
    %344 = arith.addf %339, %343 : vector<1x256xf32>
    %c18 = arith.constant 18 : index
    %345 = memref.load %arg11[%c18] : memref<98xf32, #tpu.memory_space<smem>>
    %346 = vector.extract_strided_slice %50 {offsets = [0, 36], sizes = [1, 256], strides = [1, 1]} : vector<1x358xf32> to vector<1x256xf32>
    %347 = vector.broadcast %345 : f32 to vector<1x256xf32>
    %348 = arith.mulf %347, %346 : vector<1x256xf32>
    %349 = arith.addf %344, %348 : vector<1x256xf32>
    %c25 = arith.constant 25 : index
    %350 = memref.load %arg11[%c25] : memref<98xf32, #tpu.memory_space<smem>>
    %351 = vector.extract_strided_slice %50 {offsets = [0, 52], sizes = [1, 256], strides = [1, 1]} : vector<1x358xf32> to vector<1x256xf32>
    %352 = vector.broadcast %350 : f32 to vector<1x256xf32>
    %353 = arith.mulf %352, %351 : vector<1x256xf32>
    %354 = arith.addf %349, %353 : vector<1x256xf32>
    %c32 = arith.constant 32 : index
    %355 = memref.load %arg11[%c32] : memref<98xf32, #tpu.memory_space<smem>>
    %356 = vector.extract_strided_slice %50 {offsets = [0, 68], sizes = [1, 256], strides = [1, 1]} : vector<1x358xf32> to vector<1x256xf32>
    %357 = vector.broadcast %355 : f32 to vector<1x256xf32>
    %358 = arith.mulf %357, %356 : vector<1x256xf32>
    %359 = arith.addf %354, %358 : vector<1x256xf32>
    %c39 = arith.constant 39 : index
    %360 = memref.load %arg11[%c39] : memref<98xf32, #tpu.memory_space<smem>>
    %361 = vector.extract_strided_slice %50 {offsets = [0, 84], sizes = [1, 256], strides = [1, 1]} : vector<1x358xf32> to vector<1x256xf32>
    %362 = vector.broadcast %360 : f32 to vector<1x256xf32>
    %363 = arith.mulf %362, %361 : vector<1x256xf32>
    %364 = arith.addf %359, %363 : vector<1x256xf32>
    %c46 = arith.constant 46 : index
    %365 = memref.load %arg11[%c46] : memref<98xf32, #tpu.memory_space<smem>>
    %366 = vector.extract_strided_slice %50 {offsets = [0, 100], sizes = [1, 256], strides = [1, 1]} : vector<1x358xf32> to vector<1x256xf32>
    %367 = vector.broadcast %365 : f32 to vector<1x256xf32>
    %368 = arith.mulf %367, %366 : vector<1x256xf32>
    %369 = arith.addf %364, %368 : vector<1x256xf32>
    %c53 = arith.constant 53 : index
    %370 = memref.load %arg11[%c53] : memref<98xf32, #tpu.memory_space<smem>>
    %371 = vector.extract_strided_slice %51 {offsets = [0, 4], sizes = [1, 256], strides = [1, 1]} : vector<1x358xf32> to vector<1x256xf32>
    %372 = vector.broadcast %370 : f32 to vector<1x256xf32>
    %373 = arith.mulf %372, %371 : vector<1x256xf32>
    %374 = arith.addf %369, %373 : vector<1x256xf32>
    %c60 = arith.constant 60 : index
    %375 = memref.load %arg11[%c60] : memref<98xf32, #tpu.memory_space<smem>>
    %376 = vector.extract_strided_slice %51 {offsets = [0, 20], sizes = [1, 256], strides = [1, 1]} : vector<1x358xf32> to vector<1x256xf32>
    %377 = vector.broadcast %375 : f32 to vector<1x256xf32>
    %378 = arith.mulf %377, %376 : vector<1x256xf32>
    %379 = arith.addf %374, %378 : vector<1x256xf32>
    %c67 = arith.constant 67 : index
    %380 = memref.load %arg11[%c67] : memref<98xf32, #tpu.memory_space<smem>>
    %381 = vector.extract_strided_slice %51 {offsets = [0, 36], sizes = [1, 256], strides = [1, 1]} : vector<1x358xf32> to vector<1x256xf32>
    %382 = vector.broadcast %380 : f32 to vector<1x256xf32>
    %383 = arith.mulf %382, %381 : vector<1x256xf32>
    %384 = arith.addf %379, %383 : vector<1x256xf32>
    %c74 = arith.constant 74 : index
    %385 = memref.load %arg11[%c74] : memref<98xf32, #tpu.memory_space<smem>>
    %386 = vector.extract_strided_slice %51 {offsets = [0, 52], sizes = [1, 256], strides = [1, 1]} : vector<1x358xf32> to vector<1x256xf32>
    %387 = vector.broadcast %385 : f32 to vector<1x256xf32>
    %388 = arith.mulf %387, %386 : vector<1x256xf32>
    %389 = arith.addf %384, %388 : vector<1x256xf32>
    %c81 = arith.constant 81 : index
    %390 = memref.load %arg11[%c81] : memref<98xf32, #tpu.memory_space<smem>>
    %391 = vector.extract_strided_slice %51 {offsets = [0, 68], sizes = [1, 256], strides = [1, 1]} : vector<1x358xf32> to vector<1x256xf32>
    %392 = vector.broadcast %390 : f32 to vector<1x256xf32>
    %393 = arith.mulf %392, %391 : vector<1x256xf32>
    %394 = arith.addf %389, %393 : vector<1x256xf32>
    %c88 = arith.constant 88 : index
    %395 = memref.load %arg11[%c88] : memref<98xf32, #tpu.memory_space<smem>>
    %396 = vector.extract_strided_slice %51 {offsets = [0, 84], sizes = [1, 256], strides = [1, 1]} : vector<1x358xf32> to vector<1x256xf32>
    %397 = vector.broadcast %395 : f32 to vector<1x256xf32>
    %398 = arith.mulf %397, %396 : vector<1x256xf32>
    %399 = arith.addf %394, %398 : vector<1x256xf32>
    %c95 = arith.constant 95 : index
    %400 = memref.load %arg11[%c95] : memref<98xf32, #tpu.memory_space<smem>>
    %401 = vector.extract_strided_slice %51 {offsets = [0, 100], sizes = [1, 256], strides = [1, 1]} : vector<1x358xf32> to vector<1x256xf32>
    %402 = vector.broadcast %400 : f32 to vector<1x256xf32>
    %403 = arith.mulf %402, %401 : vector<1x256xf32>
    %404 = arith.addf %399, %403 : vector<1x256xf32>
    %405 = vector.extract_strided_slice %48 {offsets = [4, 0], sizes = [1, 256], strides = [1, 1]} : vector<7x256xf32> to vector<1x256xf32>
    %406 = arith.mulf %404, %405 : vector<1x256xf32>
    %c5 = arith.constant 5 : index
    %407 = memref.load %arg11[%c5] : memref<98xf32, #tpu.memory_space<smem>>
    %408 = vector.extract_strided_slice %50 {offsets = [0, 5], sizes = [1, 256], strides = [1, 1]} : vector<1x358xf32> to vector<1x256xf32>
    %409 = vector.broadcast %407 : f32 to vector<1x256xf32>
    %410 = arith.mulf %409, %408 : vector<1x256xf32>
    %c12 = arith.constant 12 : index
    %411 = memref.load %arg11[%c12] : memref<98xf32, #tpu.memory_space<smem>>
    %412 = vector.extract_strided_slice %50 {offsets = [0, 21], sizes = [1, 256], strides = [1, 1]} : vector<1x358xf32> to vector<1x256xf32>
    %413 = vector.broadcast %411 : f32 to vector<1x256xf32>
    %414 = arith.mulf %413, %412 : vector<1x256xf32>
    %415 = arith.addf %410, %414 : vector<1x256xf32>
    %c19 = arith.constant 19 : index
    %416 = memref.load %arg11[%c19] : memref<98xf32, #tpu.memory_space<smem>>
    %417 = vector.extract_strided_slice %50 {offsets = [0, 37], sizes = [1, 256], strides = [1, 1]} : vector<1x358xf32> to vector<1x256xf32>
    %418 = vector.broadcast %416 : f32 to vector<1x256xf32>
    %419 = arith.mulf %418, %417 : vector<1x256xf32>
    %420 = arith.addf %415, %419 : vector<1x256xf32>
    %c26 = arith.constant 26 : index
    %421 = memref.load %arg11[%c26] : memref<98xf32, #tpu.memory_space<smem>>
    %422 = vector.extract_strided_slice %50 {offsets = [0, 53], sizes = [1, 256], strides = [1, 1]} : vector<1x358xf32> to vector<1x256xf32>
    %423 = vector.broadcast %421 : f32 to vector<1x256xf32>
    %424 = arith.mulf %423, %422 : vector<1x256xf32>
    %425 = arith.addf %420, %424 : vector<1x256xf32>
    %c33 = arith.constant 33 : index
    %426 = memref.load %arg11[%c33] : memref<98xf32, #tpu.memory_space<smem>>
    %427 = vector.extract_strided_slice %50 {offsets = [0, 69], sizes = [1, 256], strides = [1, 1]} : vector<1x358xf32> to vector<1x256xf32>
    %428 = vector.broadcast %426 : f32 to vector<1x256xf32>
    %429 = arith.mulf %428, %427 : vector<1x256xf32>
    %430 = arith.addf %425, %429 : vector<1x256xf32>
    %c40 = arith.constant 40 : index
    %431 = memref.load %arg11[%c40] : memref<98xf32, #tpu.memory_space<smem>>
    %432 = vector.extract_strided_slice %50 {offsets = [0, 85], sizes = [1, 256], strides = [1, 1]} : vector<1x358xf32> to vector<1x256xf32>
    %433 = vector.broadcast %431 : f32 to vector<1x256xf32>
    %434 = arith.mulf %433, %432 : vector<1x256xf32>
    %435 = arith.addf %430, %434 : vector<1x256xf32>
    %c47 = arith.constant 47 : index
    %436 = memref.load %arg11[%c47] : memref<98xf32, #tpu.memory_space<smem>>
    %437 = vector.extract_strided_slice %50 {offsets = [0, 101], sizes = [1, 256], strides = [1, 1]} : vector<1x358xf32> to vector<1x256xf32>
    %438 = vector.broadcast %436 : f32 to vector<1x256xf32>
    %439 = arith.mulf %438, %437 : vector<1x256xf32>
    %440 = arith.addf %435, %439 : vector<1x256xf32>
    %c54 = arith.constant 54 : index
    %441 = memref.load %arg11[%c54] : memref<98xf32, #tpu.memory_space<smem>>
    %442 = vector.extract_strided_slice %51 {offsets = [0, 5], sizes = [1, 256], strides = [1, 1]} : vector<1x358xf32> to vector<1x256xf32>
    %443 = vector.broadcast %441 : f32 to vector<1x256xf32>
    %444 = arith.mulf %443, %442 : vector<1x256xf32>
    %445 = arith.addf %440, %444 : vector<1x256xf32>
    %c61 = arith.constant 61 : index
    %446 = memref.load %arg11[%c61] : memref<98xf32, #tpu.memory_space<smem>>
    %447 = vector.extract_strided_slice %51 {offsets = [0, 21], sizes = [1, 256], strides = [1, 1]} : vector<1x358xf32> to vector<1x256xf32>
    %448 = vector.broadcast %446 : f32 to vector<1x256xf32>
    %449 = arith.mulf %448, %447 : vector<1x256xf32>
    %450 = arith.addf %445, %449 : vector<1x256xf32>
    %c68 = arith.constant 68 : index
    %451 = memref.load %arg11[%c68] : memref<98xf32, #tpu.memory_space<smem>>
    %452 = vector.extract_strided_slice %51 {offsets = [0, 37], sizes = [1, 256], strides = [1, 1]} : vector<1x358xf32> to vector<1x256xf32>
    %453 = vector.broadcast %451 : f32 to vector<1x256xf32>
    %454 = arith.mulf %453, %452 : vector<1x256xf32>
    %455 = arith.addf %450, %454 : vector<1x256xf32>
    %c75 = arith.constant 75 : index
    %456 = memref.load %arg11[%c75] : memref<98xf32, #tpu.memory_space<smem>>
    %457 = vector.extract_strided_slice %51 {offsets = [0, 53], sizes = [1, 256], strides = [1, 1]} : vector<1x358xf32> to vector<1x256xf32>
    %458 = vector.broadcast %456 : f32 to vector<1x256xf32>
    %459 = arith.mulf %458, %457 : vector<1x256xf32>
    %460 = arith.addf %455, %459 : vector<1x256xf32>
    %c82 = arith.constant 82 : index
    %461 = memref.load %arg11[%c82] : memref<98xf32, #tpu.memory_space<smem>>
    %462 = vector.extract_strided_slice %51 {offsets = [0, 69], sizes = [1, 256], strides = [1, 1]} : vector<1x358xf32> to vector<1x256xf32>
    %463 = vector.broadcast %461 : f32 to vector<1x256xf32>
    %464 = arith.mulf %463, %462 : vector<1x256xf32>
    %465 = arith.addf %460, %464 : vector<1x256xf32>
    %c89 = arith.constant 89 : index
    %466 = memref.load %arg11[%c89] : memref<98xf32, #tpu.memory_space<smem>>
    %467 = vector.extract_strided_slice %51 {offsets = [0, 85], sizes = [1, 256], strides = [1, 1]} : vector<1x358xf32> to vector<1x256xf32>
    %468 = vector.broadcast %466 : f32 to vector<1x256xf32>
    %469 = arith.mulf %468, %467 : vector<1x256xf32>
    %470 = arith.addf %465, %469 : vector<1x256xf32>
    %c96 = arith.constant 96 : index
    %471 = memref.load %arg11[%c96] : memref<98xf32, #tpu.memory_space<smem>>
    %472 = vector.extract_strided_slice %51 {offsets = [0, 101], sizes = [1, 256], strides = [1, 1]} : vector<1x358xf32> to vector<1x256xf32>
    %473 = vector.broadcast %471 : f32 to vector<1x256xf32>
    %474 = arith.mulf %473, %472 : vector<1x256xf32>
    %475 = arith.addf %470, %474 : vector<1x256xf32>
    %476 = vector.extract_strided_slice %48 {offsets = [5, 0], sizes = [1, 256], strides = [1, 1]} : vector<7x256xf32> to vector<1x256xf32>
    %477 = arith.mulf %475, %476 : vector<1x256xf32>
    %c6 = arith.constant 6 : index
    %478 = memref.load %arg11[%c6] : memref<98xf32, #tpu.memory_space<smem>>
    %479 = vector.extract_strided_slice %50 {offsets = [0, 6], sizes = [1, 256], strides = [1, 1]} : vector<1x358xf32> to vector<1x256xf32>
    %480 = vector.broadcast %478 : f32 to vector<1x256xf32>
    %481 = arith.mulf %480, %479 : vector<1x256xf32>
    %c13 = arith.constant 13 : index
    %482 = memref.load %arg11[%c13] : memref<98xf32, #tpu.memory_space<smem>>
    %483 = vector.extract_strided_slice %50 {offsets = [0, 22], sizes = [1, 256], strides = [1, 1]} : vector<1x358xf32> to vector<1x256xf32>
    %484 = vector.broadcast %482 : f32 to vector<1x256xf32>
    %485 = arith.mulf %484, %483 : vector<1x256xf32>
    %486 = arith.addf %481, %485 : vector<1x256xf32>
    %c20 = arith.constant 20 : index
    %487 = memref.load %arg11[%c20] : memref<98xf32, #tpu.memory_space<smem>>
    %488 = vector.extract_strided_slice %50 {offsets = [0, 38], sizes = [1, 256], strides = [1, 1]} : vector<1x358xf32> to vector<1x256xf32>
    %489 = vector.broadcast %487 : f32 to vector<1x256xf32>
    %490 = arith.mulf %489, %488 : vector<1x256xf32>
    %491 = arith.addf %486, %490 : vector<1x256xf32>
    %c27 = arith.constant 27 : index
    %492 = memref.load %arg11[%c27] : memref<98xf32, #tpu.memory_space<smem>>
    %493 = vector.extract_strided_slice %50 {offsets = [0, 54], sizes = [1, 256], strides = [1, 1]} : vector<1x358xf32> to vector<1x256xf32>
    %494 = vector.broadcast %492 : f32 to vector<1x256xf32>
    %495 = arith.mulf %494, %493 : vector<1x256xf32>
    %496 = arith.addf %491, %495 : vector<1x256xf32>
    %c34 = arith.constant 34 : index
    %497 = memref.load %arg11[%c34] : memref<98xf32, #tpu.memory_space<smem>>
    %498 = vector.extract_strided_slice %50 {offsets = [0, 70], sizes = [1, 256], strides = [1, 1]} : vector<1x358xf32> to vector<1x256xf32>
    %499 = vector.broadcast %497 : f32 to vector<1x256xf32>
    %500 = arith.mulf %499, %498 : vector<1x256xf32>
    %501 = arith.addf %496, %500 : vector<1x256xf32>
    %c41 = arith.constant 41 : index
    %502 = memref.load %arg11[%c41] : memref<98xf32, #tpu.memory_space<smem>>
    %503 = vector.extract_strided_slice %50 {offsets = [0, 86], sizes = [1, 256], strides = [1, 1]} : vector<1x358xf32> to vector<1x256xf32>
    %504 = vector.broadcast %502 : f32 to vector<1x256xf32>
    %505 = arith.mulf %504, %503 : vector<1x256xf32>
    %506 = arith.addf %501, %505 : vector<1x256xf32>
    %c48 = arith.constant 48 : index
    %507 = memref.load %arg11[%c48] : memref<98xf32, #tpu.memory_space<smem>>
    %508 = vector.extract_strided_slice %50 {offsets = [0, 102], sizes = [1, 256], strides = [1, 1]} : vector<1x358xf32> to vector<1x256xf32>
    %509 = vector.broadcast %507 : f32 to vector<1x256xf32>
    %510 = arith.mulf %509, %508 : vector<1x256xf32>
    %511 = arith.addf %506, %510 : vector<1x256xf32>
    %c55 = arith.constant 55 : index
    %512 = memref.load %arg11[%c55] : memref<98xf32, #tpu.memory_space<smem>>
    %513 = vector.extract_strided_slice %51 {offsets = [0, 6], sizes = [1, 256], strides = [1, 1]} : vector<1x358xf32> to vector<1x256xf32>
    %514 = vector.broadcast %512 : f32 to vector<1x256xf32>
    %515 = arith.mulf %514, %513 : vector<1x256xf32>
    %516 = arith.addf %511, %515 : vector<1x256xf32>
    %c62 = arith.constant 62 : index
    %517 = memref.load %arg11[%c62] : memref<98xf32, #tpu.memory_space<smem>>
    %518 = vector.extract_strided_slice %51 {offsets = [0, 22], sizes = [1, 256], strides = [1, 1]} : vector<1x358xf32> to vector<1x256xf32>
    %519 = vector.broadcast %517 : f32 to vector<1x256xf32>
    %520 = arith.mulf %519, %518 : vector<1x256xf32>
    %521 = arith.addf %516, %520 : vector<1x256xf32>
    %c69 = arith.constant 69 : index
    %522 = memref.load %arg11[%c69] : memref<98xf32, #tpu.memory_space<smem>>
    %523 = vector.extract_strided_slice %51 {offsets = [0, 38], sizes = [1, 256], strides = [1, 1]} : vector<1x358xf32> to vector<1x256xf32>
    %524 = vector.broadcast %522 : f32 to vector<1x256xf32>
    %525 = arith.mulf %524, %523 : vector<1x256xf32>
    %526 = arith.addf %521, %525 : vector<1x256xf32>
    %c76 = arith.constant 76 : index
    %527 = memref.load %arg11[%c76] : memref<98xf32, #tpu.memory_space<smem>>
    %528 = vector.extract_strided_slice %51 {offsets = [0, 54], sizes = [1, 256], strides = [1, 1]} : vector<1x358xf32> to vector<1x256xf32>
    %529 = vector.broadcast %527 : f32 to vector<1x256xf32>
    %530 = arith.mulf %529, %528 : vector<1x256xf32>
    %531 = arith.addf %526, %530 : vector<1x256xf32>
    %c83 = arith.constant 83 : index
    %532 = memref.load %arg11[%c83] : memref<98xf32, #tpu.memory_space<smem>>
    %533 = vector.extract_strided_slice %51 {offsets = [0, 70], sizes = [1, 256], strides = [1, 1]} : vector<1x358xf32> to vector<1x256xf32>
    %534 = vector.broadcast %532 : f32 to vector<1x256xf32>
    %535 = arith.mulf %534, %533 : vector<1x256xf32>
    %536 = arith.addf %531, %535 : vector<1x256xf32>
    %c90 = arith.constant 90 : index
    %537 = memref.load %arg11[%c90] : memref<98xf32, #tpu.memory_space<smem>>
    %538 = vector.extract_strided_slice %51 {offsets = [0, 86], sizes = [1, 256], strides = [1, 1]} : vector<1x358xf32> to vector<1x256xf32>
    %539 = vector.broadcast %537 : f32 to vector<1x256xf32>
    %540 = arith.mulf %539, %538 : vector<1x256xf32>
    %541 = arith.addf %536, %540 : vector<1x256xf32>
    %c97 = arith.constant 97 : index
    %542 = memref.load %arg11[%c97] : memref<98xf32, #tpu.memory_space<smem>>
    %543 = vector.extract_strided_slice %51 {offsets = [0, 102], sizes = [1, 256], strides = [1, 1]} : vector<1x358xf32> to vector<1x256xf32>
    %544 = vector.broadcast %542 : f32 to vector<1x256xf32>
    %545 = arith.mulf %544, %543 : vector<1x256xf32>
    %546 = arith.addf %541, %545 : vector<1x256xf32>
    %547 = vector.extract_strided_slice %48 {offsets = [6, 0], sizes = [1, 256], strides = [1, 1]} : vector<7x256xf32> to vector<1x256xf32>
    %548 = arith.mulf %546, %547 : vector<1x256xf32>
    %549 = arith.addf %122, %193 : vector<1x256xf32>
    %550 = arith.addf %264, %335 : vector<1x256xf32>
    %551 = arith.addf %549, %550 : vector<1x256xf32>
    %552 = arith.addf %406, %477 : vector<1x256xf32>
    %553 = arith.addf %552, %548 : vector<1x256xf32>
    %554 = arith.addf %551, %553 : vector<1x256xf32>
    %c0_36 = arith.constant 0 : index
    %555 = memref.load %arg12[%c0_36] : memref<1xf32, #tpu.memory_space<smem>>
    %556 = vector.broadcast %555 : f32 to vector<1x256xf32>
    %557 = arith.addf %554, %556 : vector<1x256xf32>
    %558 = arith.negf %557 : vector<1x256xf32>
    %559 = math.exp %558 : vector<1x256xf32>
    %cst_37 = arith.constant 1.000000e+00 : f32
    %560 = vector.broadcast %cst_37 : f32 to vector<1x256xf32>
    %561 = arith.addf %560, %559 : vector<1x256xf32>
    %562 = arith.divf %560, %561 : vector<1x256xf32>
    %563 = vector.shape_cast %562 : vector<1x256xf32> to vector<1x1x256xf32>
    %564 = vector.broadcast %563 : vector<1x1x256xf32> to vector<1x4x256xf32>
    %565 = arith.mulf %43, %564 : vector<1x4x256xf32>
    %c0_38 = arith.constant 0 : index
    %c0_39 = arith.constant 0 : index
    %c0_40 = arith.constant 0 : index
    %566 = vector.load %arg13[%c0_38, %c0_39, %c0_40] : memref<1x4x256xf32, #tpu.memory_space<vmem>>, vector<1x4x256xf32>
    tpu.vector_store %arg13[%c0_38, %c0_39, %c0_40], %565 {strides = array<i32>} : memref<1x4x256xf32, #tpu.memory_space<vmem>>, vector<1x4x256xf32>,
    return
  }
  func.func @transform_0(%arg0: i32) -> (i32, i32, i32) {
    %c0_i32 = arith.constant 0 : i32
    %c0_i32_0 = arith.constant 0 : i32
    %c0_i32_1 = arith.constant 0 : i32
    return %arg0, %c0_i32, %c0_i32_0 : i32, i32, i32
  }
  func.func @transform_1(%arg0: i32) -> (i32, i32) {
    %c0_i32 = arith.constant 0 : i32
    %c0_i32_0 = arith.constant 0 : i32
    %c0_i32_1 = arith.constant 0 : i32
    return %c0_i32, %c0_i32_0 : i32, i32
  }
  func.func @transform_2(%arg0: i32) -> (i32, i32) {
    %c0_i32 = arith.constant 0 : i32
    %c0_i32_0 = arith.constant 0 : i32
    %c0_i32_1 = arith.constant 0 : i32
    return %c0_i32, %c0_i32_0 : i32, i32
  }
  func.func @transform_3(%arg0: i32) -> (i32, i32) {
    %c0_i32 = arith.constant 0 : i32
    %c0_i32_0 = arith.constant 0 : i32
    %c0_i32_1 = arith.constant 0 : i32
    return %c0_i32, %c0_i32_0 : i32, i32
  }
  func.func @transform_4(%arg0: i32) -> (i32, i32) {
    %c0_i32 = arith.constant 0 : i32
    %c0_i32_0 = arith.constant 0 : i32
    %c0_i32_1 = arith.constant 0 : i32
    return %c0_i32, %c0_i32_0 : i32, i32
  }
  func.func @transform_5(%arg0: i32) -> (i32, i32) {
    %c0_i32 = arith.constant 0 : i32
    %c0_i32_0 = arith.constant 0 : i32
    %c0_i32_1 = arith.constant 0 : i32
    return %c0_i32, %c0_i32_0 : i32, i32
  }
  func.func @transform_6(%arg0: i32) -> (i32, i32) {
    %c0_i32 = arith.constant 0 : i32
    %c0_i32_0 = arith.constant 0 : i32
    %c0_i32_1 = arith.constant 0 : i32
    return %c0_i32, %c0_i32_0 : i32, i32
  }
  func.func @transform_7(%arg0: i32) -> (i32, i32) {
    %c0_i32 = arith.constant 0 : i32
    %c0_i32_0 = arith.constant 0 : i32
    %c0_i32_1 = arith.constant 0 : i32
    return %c0_i32, %c0_i32_0 : i32, i32
  }
  func.func @transform_8(%arg0: i32) -> (i32, i32) {
    %c0_i32 = arith.constant 0 : i32
    %c0_i32_0 = arith.constant 0 : i32
    %c0_i32_1 = arith.constant 0 : i32
    return %c0_i32, %c0_i32_0 : i32, i32
  }
  func.func @transform_9(%arg0: i32) -> (i32, i32) {
    %c0_i32 = arith.constant 0 : i32
    %c0_i32_0 = arith.constant 0 : i32
    %c0_i32_1 = arith.constant 0 : i32
    return %c0_i32, %c0_i32_0 : i32, i32
  }
  func.func @transform_10(%arg0: i32) -> i32 {
    %c0_i32 = arith.constant 0 : i32
    %c0_i32_0 = arith.constant 0 : i32
    return %c0_i32 : i32
  }
  func.func @transform_11(%arg0: i32) -> i32 {
    %c0_i32 = arith.constant 0 : i32
    %c0_i32_0 = arith.constant 0 : i32
    return %c0_i32 : i32
  }
  func.func @transform_12(%arg0: i32) -> (i32, i32, i32) {
    %c0_i32 = arith.constant 0 : i32
    %c0_i32_0 = arith.constant 0 : i32
    %c0_i32_1 = arith.constant 0 : i32
    return %arg0, %c0_i32, %c0_i32_0 : i32, i32, i32
  }
}

</mosaic_0001>

<llo_original>
// kernel: tpu_custom_call.1
$region0: #{tpu_custom_call.1}
  #allocation0 [shape = 'u32[]', space=smem, size = 0x4, offset = 0x4, fixed_abs, tag = 'smem constant byte address 0x4 - core index']
  #allocation1 [shape = 'u32[72,128]{1,0:T(1,128)}', space=vmem, size = 0x9000, scoped, tag = 'internal scratch']
  #allocation2 [shape = 'f32[1]{0:T(128)S(6)}', space=smem, size = 0x200, scoped, tag = 'scoped memory for tpu_custom_call.1']
  %s0 = inlined_call_operand.hbm [shape: f32[2,4,256], index: 0, kind: input, shape index: {}]
  %s1 = inlined_call_operand.vmem [shape: f32[4,2], index: 1, kind: input, shape index: {}]
  %s2 = inlined_call_operand.vmem [shape: f32[1,2], index: 2, kind: input, shape index: {}]
  %s3 = inlined_call_operand.vmem [shape: f32[2,4], index: 3, kind: input, shape index: {}]
  %s4 = inlined_call_operand.vmem [shape: f32[1,4], index: 4, kind: input, shape index: {}]
  %s5 = inlined_call_operand.vmem [shape: f32[4,2], index: 5, kind: input, shape index: {}]
  %s6 = inlined_call_operand.vmem [shape: f32[1,2], index: 6, kind: input, shape index: {}]
  %s7 = inlined_call_operand.vmem [shape: f32[2,4], index: 7, kind: input, shape index: {}]
  %s8 = inlined_call_operand.vmem [shape: f32[1,4], index: 8, kind: input, shape index: {}]
  %s9 = inlined_call_operand.hbm [shape: f32[7,256], index: 9, kind: input, shape index: {}]
  %s10 = inlined_call_operand.vmem [shape: f32[98], index: 10, kind: input, shape index: {}]
  %s11 = inlined_call_operand.<no memory space> [shape: f32[1], index: 11, kind: input, shape index: {}]
  %s12 = inlined_call_operand.hbm [shape: f32[2,4,256], index: 12, kind: output, shape index: {}]
  %s13 = sld [smem:[#allocation0]]
  $region93: #{tpu_custom_call.1} parent=0
    _
  %s15 = ssub.s32 1, %s13
  %s16 = scalar_select 0, %s15, %s13
  %17 = sst [smem:[#allocation2]] %s11
  $region1: #{tpu_custom_call.1} parent=0
    #allocation3 [shape = 'u8[8192]{0}', space=vmem, size = 0x2000, scoped, tag = 'input window, operand 0']
    #allocation4 [shape = 's32[2]{0}', space=sflag, size = 0x8, scoped, tag = 'scoped memory for tpu_custom_call.1']
    #allocation5 [shape = 's32[2]{0}', space=sflag, size = 0x8, scoped, tag = 'scoped memory for tpu_custom_call.1']
    #allocation6 [shape = 's32[2]{0}', space=sflag, size = 0x8, scoped, tag = 'scoped memory for tpu_custom_call.1']
    #allocation7 [shape = 'u8[8192]{0}', space=vmem, size = 0x2000, scoped, tag = 'input window, operand 9, single buffered']
    #allocation8 [shape = 's32[1]{0}', space=sflag, size = 0x4, scoped, tag = 'scoped memory for tpu_custom_call.1']
    #allocation9 [shape = 'u8[512]{0}', space=smem, size = 0x200, scoped, tag = 'input window, operand 10, single buffered']
    #allocation10 [shape = 'u8[8192]{0}', space=vmem, size = 0x2000, scoped, tag = 'output window, operand 0']
    %18 = vsyncpa [#allocation4], 0
    %s19 = scalar_lea.sflag [#allocation4], 1
    %20 = vsyncpa %s19, 0
    %21 = vsyncpa [#allocation8], 0
    %22 = vsyncpa [#allocation6], 0
    %23 = vsyncpa [#allocation5], 0
    %s24 = scalar_lea.sflag [#allocation5], 1
    %25 = vsyncpa %s24, 0
    loop: start=0, step=1, limit=4
    $region2: #{tpu_custom_call.1} parent=1 // loop_pre_header
      _
    $region3: #{tpu_custom_call.1} parent=1 // loop_header
      %s27 = sphi 0, %s31
      %p28 = scmp.ge.s32.totalorder %s27, 4
      %s37 = sphi 0, %s39
      %s40 = sphi 0, %s37
      %s41 = sphi 0, %s40
      %s57 = sphi 0, %s41
      %s61 = sphi 0, %s61
      %s63 = sphi 0, %s61
      %s64 = sphi 0, %s63
      %s78 = sphi 0, %s64
      %s82 = sphi 0, %s82
      %s84 = sphi 0, %s82
      %s85 = sphi 0, %s84
      %s99 = sphi 0, %s85
      %s103 = sphi 0, %s103
      %s105 = sphi 0, %s103
      %s106 = sphi 0, %s105
      %s120 = sphi 0, %s106
      %s124 = sphi 0, %s124
      %s126 = sphi 0, %s124
      %s127 = sphi 0, %s126
      %s141 = sphi 0, %s127
      %s145 = sphi 0, %s145
      %s147 = sphi 0, %s145
      %s148 = sphi 0, %s147
      %s162 = sphi 0, %s148
      %s166 = sphi 0, %s166
      %s168 = sphi 0, %s166
      %s169 = sphi 0, %s168
      %s183 = sphi 0, %s169
      %s187 = sphi 0, %s187
      %s189 = sphi 0, %s187
      %s190 = sphi 0, %s189
      %s204 = sphi 0, %s190
      %s208 = sphi 0, %s208
      %s210 = sphi 0, %s208
      %s211 = sphi 0, %s210
      %s225 = sphi 0, %s211
      %s229 = sphi 0, %s229
      %s231 = sphi 0, %s229
      %s232 = sphi 0, %s231
      %s246 = sphi 0, %s232
      %s250 = sphi 0, %s250
      %s252 = sphi 0, %s250
      %s253 = sphi 0, %s252
      %s267 = sphi 0, %s253
      %s271 = sphi 0, %s271
      %s273 = sphi 0, %s271
      %s274 = sphi 0, %s273
      %s288 = sphi 0, %s274
      %s294 = sphi 0, %s296
      %s297 = sphi 0, %s294
      %s298 = sphi 0, %s297
      %s314 = sphi 0, %s298
    $region4: #{tpu_custom_call.1} parent=1 // loop_header_branch
      %30 = sbr.rel (%p28) target = $region8
    $region5: #{tpu_custom_call.1} parent=1 // loop_body
      %s32 = ssub.s32 %s27, 1
      %s33 = ssub.s32 %s27, 2
      %s34 = sadd.s32 %s27, 1
      %s35 = ssub.s32 %s27, %s34
      %p36 = scmp.eq.s32.totalorder %s35, 0
      %s38 = sadd.s32 %s37, 1
      %s39 = scalar_select %p36, %s37, %s38
      %p42 = pneg %p36
      %p43 = scmp.eq.s32.totalorder %s27, 1
      %p44 = por %p42, %p43
      %p45 = scmp.ne.s32.totalorder %s37, %s40
      %p46 = scmp.eq.s32.totalorder %s27, 0
      %p47 = por %p45, %p46
      %p48 = scmp.ne.s32.totalorder %s37, %s40
      %p49 = scmp.eq.s32.totalorder %s32, 1
      %p50 = por %p48, %p49
      %p51 = scmp.ne.s32.totalorder %s40, %s41
      %p52 = scmp.eq.s32.totalorder %s32, 0
      %p53 = por %p51, %p52
      %p54 = scmp.ne.s32.totalorder %s40, %s41
      %p55 = scmp.eq.s32.totalorder %s33, 1
      %p56 = por %p54, %p55
      %p58 = scmp.ne.s32.totalorder %s41, %s57
      %p59 = scmp.eq.s32.totalorder %s33, 0
      %p60 = por %p58, %p59
      %s62 = sadd.s32 %s61, 1
      %p65 = scmp.eq.s32.totalorder %s27, 1
      %p66 = scmp.ne.s32.totalorder %s61, %s63
      %p67 = scmp.eq.s32.totalorder %s27, 0
      %p68 = por %p66, %p67
      %p69 = scmp.ne.s32.totalorder %s61, %s63
      %p70 = scmp.eq.s32.totalorder %s32, 1
      %p71 = por %p69, %p70
      %p72 = scmp.ne.s32.totalorder %s63, %s64
      %p73 = scmp.eq.s32.totalorder %s32, 0
      %p74 = por %p72, %p73
      %p75 = scmp.ne.s32.totalorder %s63, %s64
      %p76 = scmp.eq.s32.totalorder %s33, 1
      %p77 = por %p75, %p76
      %p79 = scmp.ne.s32.totalorder %s64, %s78
      %p80 = scmp.eq.s32.totalorder %s33, 0
      %p81 = por %p79, %p80
      %s83 = sadd.s32 %s82, 1
      %p86 = scmp.eq.s32.totalorder %s27, 1
      %p87 = scmp.ne.s32.totalorder %s82, %s84
      %p88 = scmp.eq.s32.totalorder %s27, 0
      %p89 = por %p87, %p88
      %p90 = scmp.ne.s32.totalorder %s82, %s84
      %p91 = scmp.eq.s32.totalorder %s32, 1
      %p92 = por %p90, %p91
      %p93 = scmp.ne.s32.totalorder %s84, %s85
      %p94 = scmp.eq.s32.totalorder %s32, 0
      %p95 = por %p93, %p94
      %p96 = scmp.ne.s32.totalorder %s84, %s85
      %p97 = scmp.eq.s32.totalorder %s33, 1
      %p98 = por %p96, %p97
      %p100 = scmp.ne.s32.totalorder %s85, %s99
      %p101 = scmp.eq.s32.totalorder %s33, 0
      %p102 = por %p100, %p101
      %s104 = sadd.s32 %s103, 1
      %p107 = scmp.eq.s32.totalorder %s27, 1
      %p108 = scmp.ne.s32.totalorder %s103, %s105
      %p109 = scmp.eq.s32.totalorder %s27, 0
      %p110 = por %p108, %p109
      %p111 = scmp.ne.s32.totalorder %s103, %s105
      %p112 = scmp.eq.s32.totalorder %s32, 1
      %p113 = por %p111, %p112
      %p114 = scmp.ne.s32.totalorder %s105, %s106
      %p115 = scmp.eq.s32.totalorder %s32, 0
      %p116 = por %p114, %p115
      %p117 = scmp.ne.s32.totalorder %s105, %s106
      %p118 = scmp.eq.s32.totalorder %s33, 1
      %p119 = por %p117, %p118
      %p121 = scmp.ne.s32.totalorder %s106, %s120
      %p122 = scmp.eq.s32.totalorder %s33, 0
      %p123 = por %p121, %p122
      %s125 = sadd.s32 %s124, 1
      %p128 = scmp.eq.s32.totalorder %s27, 1
      %p129 = scmp.ne.s32.totalorder %s124, %s126
      %p130 = scmp.eq.s32.totalorder %s27, 0
      %p131 = por %p129, %p130
      %p132 = scmp.ne.s32.totalorder %s124, %s126
      %p133 = scmp.eq.s32.totalorder %s32, 1
      %p134 = por %p132, %p133
      %p135 = scmp.ne.s32.totalorder %s126, %s127
      %p136 = scmp.eq.s32.totalorder %s32, 0
      %p137 = por %p135, %p136
      %p138 = scmp.ne.s32.totalorder %s126, %s127
      %p139 = scmp.eq.s32.totalorder %s33, 1
      %p140 = por %p138, %p139
      %p142 = scmp.ne.s32.totalorder %s127, %s141
      %p143 = scmp.eq.s32.totalorder %s33, 0
      %p144 = por %p142, %p143
      %s146 = sadd.s32 %s145, 1
      %p149 = scmp.eq.s32.totalorder %s27, 1
      %p150 = scmp.ne.s32.totalorder %s145, %s147
      %p151 = scmp.eq.s32.totalorder %s27, 0
      %p152 = por %p150, %p151
      %p153 = scmp.ne.s32.totalorder %s145, %s147
      %p154 = scmp.eq.s32.totalorder %s32, 1
      %p155 = por %p153, %p154
      %p156 = scmp.ne.s32.totalorder %s147, %s148
      %p157 = scmp.eq.s32.totalorder %s32, 0
      %p158 = por %p156, %p157
      %p159 = scmp.ne.s32.totalorder %s147, %s148
      %p160 = scmp.eq.s32.totalorder %s33, 1
      %p161 = por %p159, %p160
      %p163 = scmp.ne.s32.totalorder %s148, %s162
      %p164 = scmp.eq.s32.totalorder %s33, 0
      %p165 = por %p163, %p164
      %s167 = sadd.s32 %s166, 1
      %p170 = scmp.eq.s32.totalorder %s27, 1
      %p171 = scmp.ne.s32.totalorder %s166, %s168
      %p172 = scmp.eq.s32.totalorder %s27, 0
      %p173 = por %p171, %p172
      %p174 = scmp.ne.s32.totalorder %s166, %s168
      %p175 = scmp.eq.s32.totalorder %s32, 1
      %p176 = por %p174, %p175
      %p177 = scmp.ne.s32.totalorder %s168, %s169
      %p178 = scmp.eq.s32.totalorder %s32, 0
      %p179 = por %p177, %p178
      %p180 = scmp.ne.s32.totalorder %s168, %s169
      %p181 = scmp.eq.s32.totalorder %s33, 1
      %p182 = por %p180, %p181
      %p184 = scmp.ne.s32.totalorder %s169, %s183
      %p185 = scmp.eq.s32.totalorder %s33, 0
      %p186 = por %p184, %p185
      %s188 = sadd.s32 %s187, 1
      %p191 = scmp.eq.s32.totalorder %s27, 1
      %p192 = scmp.ne.s32.totalorder %s187, %s189
      %p193 = scmp.eq.s32.totalorder %s27, 0
      %p194 = por %p192, %p193
      %p195 = scmp.ne.s32.totalorder %s187, %s189
      %p196 = scmp.eq.s32.totalorder %s32, 1
      %p197 = por %p195, %p196
      %p198 = scmp.ne.s32.totalorder %s189, %s190
      %p199 = scmp.eq.s32.totalorder %s32, 0
      %p200 = por %p198, %p199
      %p201 = scmp.ne.s32.totalorder %s189, %s190
      %p202 = scmp.eq.s32.totalorder %s33, 1
      %p203 = por %p201, %p202
      %p205 = scmp.ne.s32.totalorder %s190, %s204
      %p206 = scmp.eq.s32.totalorder %s33, 0
      %p207 = por %p205, %p206
      %s209 = sadd.s32 %s208, 1
      %p212 = scmp.eq.s32.totalorder %s27, 1
      %p213 = scmp.ne.s32.totalorder %s208, %s210
      %p214 = scmp.eq.s32.totalorder %s27, 0
      %p215 = por %p213, %p214
      %p216 = scmp.ne.s32.totalorder %s208, %s210
      %p217 = scmp.eq.s32.totalorder %s32, 1
      %p218 = por %p216, %p217
      %p219 = scmp.ne.s32.totalorder %s210, %s211
      %p220 = scmp.eq.s32.totalorder %s32, 0
      %p221 = por %p219, %p220
      %p222 = scmp.ne.s32.totalorder %s210, %s211
      %p223 = scmp.eq.s32.totalorder %s33, 1
      %p224 = por %p222, %p223
      %p226 = scmp.ne.s32.totalorder %s211, %s225
      %p227 = scmp.eq.s32.totalorder %s33, 0
      %p228 = por %p226, %p227
      %s230 = sadd.s32 %s229, 1
      %p233 = scmp.eq.s32.totalorder %s27, 1
      %p234 = scmp.ne.s32.totalorder %s229, %s231
      %p235 = scmp.eq.s32.totalorder %s27, 0
      %p236 = por %p234, %p235
      %p237 = scmp.ne.s32.totalorder %s229, %s231
      %p238 = scmp.eq.s32.totalorder %s32, 1
      %p239 = por %p237, %p238
      %p240 = scmp.ne.s32.totalorder %s231, %s232
      %p241 = scmp.eq.s32.totalorder %s32, 0
      %p242 = por %p240, %p241
      %p243 = scmp.ne.s32.totalorder %s231, %s232
      %p244 = scmp.eq.s32.totalorder %s33, 1
      %p245 = por %p243, %p244
      %p247 = scmp.ne.s32.totalorder %s232, %s246
      %p248 = scmp.eq.s32.totalorder %s33, 0
      %p249 = por %p247, %p248
      %s251 = sadd.s32 %s250, 1
      %p254 = scmp.eq.s32.totalorder %s27, 1
      %p255 = scmp.ne.s32.totalorder %s250, %s252
      %p256 = scmp.eq.s32.totalorder %s27, 0
      %p257 = por %p255, %p256
      %p258 = scmp.ne.s32.totalorder %s250, %s252
      %p259 = scmp.eq.s32.totalorder %s32, 1
      %p260 = por %p258, %p259
      %p261 = scmp.ne.s32.totalorder %s252, %s253
      %p262 = scmp.eq.s32.totalorder %s32, 0
      %p263 = por %p261, %p262
      %p264 = scmp.ne.s32.totalorder %s252, %s253
      %p265 = scmp.eq.s32.totalorder %s33, 1
      %p266 = por %p264, %p265
      %p268 = scmp.ne.s32.totalorder %s253, %s267
      %p269 = scmp.eq.s32.totalorder %s33, 0
      %p270 = por %p268, %p269
      %s272 = sadd.s32 %s271, 1
      %p275 = scmp.eq.s32.totalorder %s27, 1
      %p276 = scmp.ne.s32.totalorder %s271, %s273
      %p277 = scmp.eq.s32.totalorder %s27, 0
      %p278 = por %p276, %p277
      %p279 = scmp.ne.s32.totalorder %s271, %s273
      %p280 = scmp.eq.s32.totalorder %s32, 1
      %p281 = por %p279, %p280
      %p282 = scmp.ne.s32.totalorder %s273, %s274
      %p283 = scmp.eq.s32.totalorder %s32, 0
      %p284 = por %p282, %p283
      %p285 = scmp.ne.s32.totalorder %s273, %s274
      %p286 = scmp.eq.s32.totalorder %s33, 1
      %p287 = por %p285, %p286
      %p289 = scmp.ne.s32.totalorder %s274, %s288
      %p290 = scmp.eq.s32.totalorder %s33, 0
      %p291 = por %p289, %p290
      %s292 = ssub.s32 %s27, %s34
      %p293 = scmp.eq.s32.totalorder %s292, 0
      %s295 = sadd.s32 %s294, 1
      %s296 = scalar_select %p293, %s294, %s295
      %p299 = pneg %p293
      %p300 = scmp.eq.s32.totalorder %s27, 1
      %p301 = por %p299, %p300
      %p302 = scmp.ne.s32.totalorder %s294, %s297
      %p303 = scmp.eq.s32.totalorder %s27, 0
      %p304 = por %p302, %p303
      %p305 = scmp.ne.s32.totalorder %s294, %s297
      %p306 = scmp.eq.s32.totalorder %s32, 1
      %p307 = por %p305, %p306
      %p308 = scmp.ne.s32.totalorder %s297, %s298
      %p309 = scmp.eq.s32.totalorder %s32, 0
      %p310 = por %p308, %p309
      %p311 = scmp.ne.s32.totalorder %s297, %s298
      %p312 = scmp.eq.s32.totalorder %s33, 1
      %p313 = por %p311, %p312
      %p315 = scmp.ne.s32.totalorder %s298, %s314
      %p316 = scmp.eq.s32.totalorder %s33, 0
      %p317 = por %p315, %p316
      %p318 = scmp.le.s32.totalorder 1, %s27
      %p319 = scmp.lt.s32.totalorder %s27, 3
      %p320 = pnand %p318, %p319
      %p321 = pneg %p320
      // Predicated region
      $region9: #{tpu_custom_call.1} parent=5 // pred_check
        _
      $region10: #{tpu_custom_call.1} parent=5 // pred_check_branch
        %323 = sbr.rel (%p320) target = $region12
      $region11: #{tpu_custom_call.1} parent=5 // pred_region
        %s324 = ssub.s32 %s27, 1
        // Predicated region
        $region13: #{tpu_custom_call.1} parent=11 // pred_check
          %p325 = pneg %p74
        $region14: #{tpu_custom_call.1} parent=11 // pred_check_branch
          %327 = sbr.rel (%p325) target = $region16
        $region15: #{tpu_custom_call.1} parent=11 // pred_region
          _
        $region16: #{tpu_custom_call.1} parent=11 // pred_fallthru
          _
        // Predicated region
        $region17: #{tpu_custom_call.1} parent=11 // pred_check
          %p328 = pneg %p95
        $region18: #{tpu_custom_call.1} parent=11 // pred_check_branch
          %330 = sbr.rel (%p328) target = $region20
        $region19: #{tpu_custom_call.1} parent=11 // pred_region
          _
        $region20: #{tpu_custom_call.1} parent=11 // pred_fallthru
          _
        // Predicated region
        $region21: #{tpu_custom_call.1} parent=11 // pred_check
          %p331 = pneg %p116
        $region22: #{tpu_custom_call.1} parent=11 // pred_check_branch
          %333 = sbr.rel (%p331) target = $region24
        $region23: #{tpu_custom_call.1} parent=11 // pred_region
          _
        $region24: #{tpu_custom_call.1} parent=11 // pred_fallthru
          _
        // Predicated region
        $region25: #{tpu_custom_call.1} parent=11 // pred_check
          %p334 = pneg %p137
        $region26: #{tpu_custom_call.1} parent=11 // pred_check_branch
          %336 = sbr.rel (%p334) target = $region28
        $region27: #{tpu_custom_call.1} parent=11 // pred_region
          _
        $region28: #{tpu_custom_call.1} parent=11 // pred_fallthru
          _
        // Predicated region
        $region29: #{tpu_custom_call.1} parent=11 // pred_check
          %p337 = pneg %p158
        $region30: #{tpu_custom_call.1} parent=11 // pred_check_branch
          %339 = sbr.rel (%p337) target = $region32
        $region31: #{tpu_custom_call.1} parent=11 // pred_region
          _
        $region32: #{tpu_custom_call.1} parent=11 // pred_fallthru
          _
        // Predicated region
        $region33: #{tpu_custom_call.1} parent=11 // pred_check
          %p340 = pneg %p179
        $region34: #{tpu_custom_call.1} parent=11 // pred_check_branch
          %342 = sbr.rel (%p340) target = $region36
        $region35: #{tpu_custom_call.1} parent=11 // pred_region
          _
        $region36: #{tpu_custom_call.1} parent=11 // pred_fallthru
          _
        // Predicated region
        $region37: #{tpu_custom_call.1} parent=11 // pred_check
          %p343 = pneg %p200
        $region38: #{tpu_custom_call.1} parent=11 // pred_check_branch
          %345 = sbr.rel (%p343) target = $region40
        $region39: #{tpu_custom_call.1} parent=11 // pred_region
          _
        $region40: #{tpu_custom_call.1} parent=11 // pred_fallthru
          _
        // Predicated region
        $region41: #{tpu_custom_call.1} parent=11 // pred_check
          %p346 = pneg %p221
        $region42: #{tpu_custom_call.1} parent=11 // pred_check_branch
          %348 = sbr.rel (%p346) target = $region44
        $region43: #{tpu_custom_call.1} parent=11 // pred_region
          _
        $region44: #{tpu_custom_call.1} parent=11 // pred_fallthru
          _
        // Predicated region
        $region45: #{tpu_custom_call.1} parent=11 // pred_check
          %p349 = pneg %p242
        $region46: #{tpu_custom_call.1} parent=11 // pred_check_branch
          %351 = sbr.rel (%p349) target = $region48
        $region47: #{tpu_custom_call.1} parent=11 // pred_region
          %353 = vsyncadd [#allocation8], 0
          %s355 = sshll.u32 %s9, 4
          %s356 = int_to_ptr.hbm [resolvable:$true] %s355
          %s357 = sshll.u32 [#allocation7], 4
          %s358 = int_to_ptr.vmem [resolvable:$true] %s357
          %360 = dma.hbm_to_vmem [thread:$0]  %s356, 256, %s358, [#allocation8]
        $region48: #{tpu_custom_call.1} parent=11 // pred_fallthru
          _
        // Predicated region
        $region49: #{tpu_custom_call.1} parent=11 // pred_check
          %p361 = pneg %p263
        $region50: #{tpu_custom_call.1} parent=11 // pred_check_branch
          %363 = sbr.rel (%p361) target = $region52
        $region51: #{tpu_custom_call.1} parent=11 // pred_region
          %365 = vsyncadd [#allocation6], 0
          %s367 = sshll.u32 %s10, 4
          %s368 = int_to_ptr.vmem [resolvable:$true] %s367
          %370 = dma.vmem_to_smem %s368, 16, [#allocation9], [#allocation6]
        $region52: #{tpu_custom_call.1} parent=11 // pred_fallthru
          _
        // Predicated region
        $region53: #{tpu_custom_call.1} parent=11 // pred_check
          %p371 = pneg %p284
        $region54: #{tpu_custom_call.1} parent=11 // pred_check_branch
          %373 = sbr.rel (%p371) target = $region56
        $region55: #{tpu_custom_call.1} parent=11 // pred_region
          _
        $region56: #{tpu_custom_call.1} parent=11 // pred_fallthru
          _
      $region12: #{tpu_custom_call.1} parent=5 // pred_fallthru
        _
      %p374 = scmp.lt.s32.totalorder %s27, 2
      // Predicated region
      $region57: #{tpu_custom_call.1} parent=5 // pred_check
        %p375 = pneg %p374
      $region58: #{tpu_custom_call.1} parent=5 // pred_check_branch
        %377 = sbr.rel (%p375) target = $region60
      $region59: #{tpu_custom_call.1} parent=5 // pred_region
        // Predicated region
        $region61: #{tpu_custom_call.1} parent=59 // pred_check
          %p378 = pneg %p47
        $region62: #{tpu_custom_call.1} parent=59 // pred_check_branch
          %380 = sbr.rel (%p378) target = $region64
        $region63: #{tpu_custom_call.1} parent=59 // pred_region
          %s381 = sand.u32 %s37, 1
          %s382 = scalar_lea.sflag [#allocation4], %s381
          %s383 = sand.u32 %s37, 1
          %s384 = smul.addr %s383, 8
          %s385 = scalar_lea.vmem [#allocation3], %s384
          %387 = vsyncadd %s382, 0
          %s388 = smul.addr %s27, 2
          %s389 = smul.addr %s388, 4
          %s390 = scalar_lea.hbm %s0, %s389
          %s392 = sshll.u32 %s390, 4
          %s393 = int_to_ptr.hbm [resolvable:$true] %s392
          %s394 = sshll.u32 %s385, 4
          %s395 = int_to_ptr.vmem [resolvable:$true] %s394
          %397 = dma.hbm_to_vmem [thread:$0]  %s393, 128, %s395, %s382
        $region64: #{tpu_custom_call.1} parent=59 // pred_fallthru
          _
      $region60: #{tpu_custom_call.1} parent=5 // pred_fallthru
        _
      %p398 = scmp.le.s32.totalorder 1, %s27
      %p399 = scmp.lt.s32.totalorder %s27, 3
      %p400 = pnand %p398, %p399
      %p401 = pneg %p400
      // Predicated region
      $region65: #{tpu_custom_call.1} parent=5 // pred_check
        _
      $region66: #{tpu_custom_call.1} parent=5 // pred_check_branch
        %403 = sbr.rel (%p400) target = $region68
      $region67: #{tpu_custom_call.1} parent=5 // pred_region
        %s404 = ssub.s32 %s27, 1
        %s405 = sand.u32 %s40, 1
        %s406 = scalar_lea.sflag [#allocation4], %s405
        %s407 = sand.u32 %s40, 1
        %s408 = smul.addr %s407, 8
        %s409 = scalar_lea.vmem [#allocation3], %s408
        // Predicated region
        $region69: #{tpu_custom_call.1} parent=67 // pred_check
          %p410 = pneg %p53
        $region70: #{tpu_custom_call.1} parent=67 // pred_check_branch
          %412 = sbr.rel (%p410) target = $region72
        $region71: #{tpu_custom_call.1} parent=67 // pred_region
          %414 = dma.done %s406, 128
        $region72: #{tpu_custom_call.1} parent=67 // pred_fallthru
          _
        // Predicated region
        $region73: #{tpu_custom_call.1} parent=67 // pred_check
          %p415 = pneg %p242
        $region74: #{tpu_custom_call.1} parent=67 // pred_check_branch
          %417 = sbr.rel (%p415) target = $region76
        $region75: #{tpu_custom_call.1} parent=67 // pred_region
          %419 = dma.done [#allocation8], 256
        $region76: #{tpu_custom_call.1} parent=67 // pred_fallthru
          _
        // Predicated region
        $region77: #{tpu_custom_call.1} parent=67 // pred_check
          %p420 = pneg %p263
        $region78: #{tpu_custom_call.1} parent=67 // pred_check_branch
          %422 = sbr.rel (%p420) target = $region80
        $region79: #{tpu_custom_call.1} parent=67 // pred_region
          %424 = dma.done [#allocation6], 16
        $region80: #{tpu_custom_call.1} parent=67 // pred_fallthru
          _
        %425 = sfence
        %s426 = sand.u32 %s40, 1
        %s427 = scalar_lea.sflag [#allocation4], %s426
        %s428 = sand.u32 %s40, 1
        %s429 = smul.addr %s428, 8
        %s430 = scalar_lea.vmem [#allocation3], %s429
        %p431 = pneg %p53
        %p432 = pneg %p50
        %p433 = pneg %p74
        %p434 = pneg %p71
        %p435 = pneg %p95
        %p436 = pneg %p92
        %p437 = pneg %p116
        %p438 = pneg %p113
        %p439 = pneg %p137
        %p440 = pneg %p134
        %p441 = pneg %p158
        %p442 = pneg %p155
        %p443 = pneg %p179
        %p444 = pneg %p176
        %p445 = pneg %p200
        %p446 = pneg %p197
        %p447 = pneg %p221
        %p448 = pneg %p218
        %p449 = pneg %p242
        %p450 = pneg %p239
        %p451 = pneg %p263
        %p452 = pneg %p260
        %p453 = pneg %p284
        %p454 = pneg %p281
        %p455 = pneg %p310
        %p456 = pneg %p307
        %s457 = sand.u32 %s297, 1
        %s458 = scalar_lea.sflag [#allocation5], %s457
        %s459 = sand.u32 %s297, 1
        %s460 = smul.addr %s459, 8
        %s461 = scalar_lea.vmem [#allocation10], %s460
        %v462 = vld [vmem:[%s409] sm:$0xff]
        %464 = vst [vmem:[#allocation1] ss:$2 sm:$0xff] %v462
        %v465 = vld.sshfl [vmem:[#allocation1] sm:$0xff pattern:$0x75316420]
        %v466 = vld.sshfl [vmem:[#allocation1 + $0x8] sm:$0xff pattern:$0x75316420]
        %vm469 = vcmask 1043456
        %v470 = vsel %vm469, %v465, -inf
        %v471 = vsel %vm469, %v466, -inf
        %v472 = vmax.f32 %v470, %v471
        %473 = vmax.xlane.f32.xlu0 %v472
        %v474 = vpop.xlane.xlu0 %473
        %475 = vst [vmem:[#allocation1] ss:$2 sm:$0xff] %v462
        %v476 = vld.sshfl [vmem:[#allocation1] sm:$0xff pattern:$0x75316420]
        %v477 = vld.sshfl [vmem:[#allocation1 + $0x8] sm:$0xff pattern:$0x75316420]
        %v480 = vsel %vm469, %v476, 0.0
        %v481 = vsel %vm469, %v477, 0.0
        %v482 = vadd.f32 %v480, %v481
        %483 = vadd.xlane.f32.xlu0 %v482
        %v484 = vpop.xlane.xlu0 %483
        %v485 = vmul.f32 %v484, 0.00390625
        %v486 = vld [vmem:[%s1] sm:$0xf]
        %v487 = vld [vmem:[%s2] sm:$0x1]
        %v489 = vlaneseq
        %v490 = vand.u32 %v489, 127
        %v491 = vperm.slane %v474, %v490
        %vm492 = vcmask 31744
        %v493 = vsel %vm492, %v491, 0
        %v496 = vsel %vm469, %v486, 0
        %498 = vmatpush.msra.mxu0 0.0
        %499 = vmatpush.msra.mxu0 0.0
        %500 = vmatpush.msra.mxu0 0.0
        %501 = vmatpush.msra.mxu0 0.0
        %502 = vmatpush.msra.mxu0 0.0
        %503 = vmatpush.msra.mxu0 0.0
        %504 = vmatpush.msra.mxu0 0.0
        %505 = vmatpush.msra.mxu0 0.0
        %506 = vmatpush.msra.mxu0 0.0
        %507 = vmatpush.msra.mxu0 0.0
        %508 = vmatpush.msra.mxu0 0.0
        %509 = vmatpush.msra.mxu0 0.0
        %510 = vmatpush.msra.mxu0 0.0
        %511 = vmatpush.msra.mxu0 0.0
        %512 = vmatpush.msra.mxu0 0.0
        %513 = vmatpush.msra.mxu0 %v496
        %514 = vmatmul.f32.gmra.mxu0 %v493
        %v515 = vpop.f32.mrf.mxu0
        %v516 = vadd.f32 %v487, %v515
        %517 = vdwg.mxu0
        %v518 = vmax.f32 %v516, 0.0
        %v519 = vld [vmem:[%s3] sm:$0x3]
        %v520 = vld [vmem:[%s4] sm:$0x1]
        %vm521 = vcmask 15360
        %v523 = vsel %vm521, %v518, 0
        %vm525 = vcmask 1041408
        %v527 = vsel %vm525, %v519, 0
        %529 = vmatpush.msra.mxu0 0.0
        %530 = vmatpush.msra.mxu0 0.0
        %531 = vmatpush.msra.mxu0 0.0
        %532 = vmatpush.msra.mxu0 0.0
        %533 = vmatpush.msra.mxu0 0.0
        %534 = vmatpush.msra.mxu0 0.0
        %535 = vmatpush.msra.mxu0 0.0
        %536 = vmatpush.msra.mxu0 0.0
        %537 = vmatpush.msra.mxu0 0.0
        %538 = vmatpush.msra.mxu0 0.0
        %539 = vmatpush.msra.mxu0 0.0
        %540 = vmatpush.msra.mxu0 0.0
        %541 = vmatpush.msra.mxu0 0.0
        %542 = vmatpush.msra.mxu0 0.0
        %543 = vmatpush.msra.mxu0 0.0
        %544 = vmatpush.msra.mxu0 %v527
        %545 = vmatmul.f32.gmra.mxu0 %v523
        %v546 = vpop.f32.mrf.mxu0
        %v547 = vadd.f32 %v520, %v546
        %548 = vdwg.mxu0
        %v549 = vxor.u32 %v547, 2147483648
        %v550 = vmul.f32 %v549, 1.442695
        %v551 = vpow.pop %v550
        %v552 = vadd.f32 %v551, 1.0
        %v553 = vrcp.pop %v552
        %v554 = vmul.f32 %v552, %v553
        %v555 = vsub.f32 1.0, %v554
        %v556 = vmul.f32 %v553, %v555
        %v557 = vadd.f32 %v553, %v556
        %vm558 = vweird.f32 %v552
        %vm559 = vweird.f32 %v553
        %vm560 = vmor %vm558, %vm559
        %v561 = vsel %vm560, %v553, %v557
        %v562 = vand.u32 2147483647, %v552
        %vm563 = vcmp.eq.f32.partialorder %v562, 8.507059e+37
        %v564 = vand.u32 %v552, 2147483648
        %v565 = vor.u32 1.1754944e-38, %v564
        %v566 = vsel %vm563, %v565, %v561
        %v567 = vmul.f32 1.0, %v566
        %v568 = vld [vmem:[%s5] sm:$0xf]
        %v569 = vld [vmem:[%s6] sm:$0x1]
        %v571 = vperm.slane %v485, %v490
        %v572 = vsel %vm492, %v571, 0
        %v575 = vsel %vm469, %v568, 0
        %577 = vmatpush.msra.mxu0 0.0
        %578 = vmatpush.msra.mxu0 0.0
        %579 = vmatpush.msra.mxu0 0.0
        %580 = vmatpush.msra.mxu0 0.0
        %581 = vmatpush.msra.mxu0 0.0
        %582 = vmatpush.msra.mxu0 0.0
        %583 = vmatpush.msra.mxu0 0.0
        %584 = vmatpush.msra.mxu0 0.0
        %585 = vmatpush.msra.mxu0 0.0
        %586 = vmatpush.msra.mxu0 0.0
        %587 = vmatpush.msra.mxu0 0.0
        %588 = vmatpush.msra.mxu0 0.0
        %589 = vmatpush.msra.mxu0 0.0
        %590 = vmatpush.msra.mxu0 0.0
        %591 = vmatpush.msra.mxu0 0.0
        %592 = vmatpush.msra.mxu0 %v575
        %593 = vmatmul.f32.gmra.mxu0 %v572
        %v594 = vpop.f32.mrf.mxu0
        %v595 = vadd.f32 %v569, %v594
        %596 = vdwg.mxu0
        %v597 = vmax.f32 %v595, 0.0
        %v598 = vld [vmem:[%s7] sm:$0x3]
        %v599 = vld [vmem:[%s8] sm:$0x1]
        %v601 = vsel %vm521, %v597, 0
        %v604 = vsel %vm525, %v598, 0
        %606 = vmatpush.msra.mxu0 0.0
        %607 = vmatpush.msra.mxu0 0.0
        %608 = vmatpush.msra.mxu0 0.0
        %609 = vmatpush.msra.mxu0 0.0
        %610 = vmatpush.msra.mxu0 0.0
        %611 = vmatpush.msra.mxu0 0.0
        %612 = vmatpush.msra.mxu0 0.0
        %613 = vmatpush.msra.mxu0 0.0
        %614 = vmatpush.msra.mxu0 0.0
        %615 = vmatpush.msra.mxu0 0.0
        %616 = vmatpush.msra.mxu0 0.0
        %617 = vmatpush.msra.mxu0 0.0
        %618 = vmatpush.msra.mxu0 0.0
        %619 = vmatpush.msra.mxu0 0.0
        %620 = vmatpush.msra.mxu0 0.0
        %621 = vmatpush.msra.mxu0 %v604
        %622 = vmatmul.f32.gmra.mxu0 %v601
        %v623 = vpop.f32.mrf.mxu0
        %v624 = vadd.f32 %v599, %v623
        %625 = vdwg.mxu0
        %v626 = vxor.u32 %v624, 2147483648
        %v627 = vmul.f32 %v626, 1.442695
        %v628 = vpow.pop %v627
        %v629 = vadd.f32 %v628, 1.0
        %v630 = vrcp.pop %v629
        %v631 = vmul.f32 %v629, %v630
        %v632 = vsub.f32 1.0, %v631
        %v633 = vmul.f32 %v630, %v632
        %v634 = vadd.f32 %v630, %v633
        %vm635 = vweird.f32 %v629
        %vm636 = vweird.f32 %v630
        %vm637 = vmor %vm635, %vm636
        %v638 = vsel %vm637, %v630, %v634
        %v639 = vand.u32 2147483647, %v629
        %vm640 = vcmp.eq.f32.partialorder %v639, 8.507059e+37
        %v641 = vand.u32 %v629, 2147483648
        %v642 = vor.u32 1.1754944e-38, %v641
        %v643 = vsel %vm640, %v642, %v638
        %v644 = vmul.f32 1.0, %v643
        %v645 = vadd.f32 %v567, %v644
        %v646 = vxor.u32 %v645, 2147483648
        %v647 = vmul.f32 %v646, 1.442695
        %v648 = vpow.pop %v647
        %v649 = vadd.f32 %v648, 1.0
        %v650 = vrcp.pop %v649
        %v651 = vmul.f32 %v649, %v650
        %v652 = vsub.f32 1.0, %v651
        %v653 = vmul.f32 %v650, %v652
        %v654 = vadd.f32 %v650, %v653
        %vm655 = vweird.f32 %v649
        %vm656 = vweird.f32 %v650
        %vm657 = vmor %vm655, %vm656
        %v658 = vsel %vm657, %v650, %v654
        %v659 = vand.u32 2147483647, %v649
        %vm660 = vcmp.eq.f32.partialorder %v659, 8.507059e+37
        %v661 = vand.u32 %v649, 2147483648
        %v662 = vor.u32 1.1754944e-38, %v661
        %v663 = vsel %vm660, %v662, %v658
        %v664 = vmul.f32 1.0, %v663
        %v665 = vperm.slane %v664, 0
        %v666 = vlaneseq
        %v667 = vshrl.u32 %v666, 7
        %669 = vset.pattern.permute.xlu0 %v667
        %670 = vperm.xlu0 %669, %v665
        %v671 = vpop.permute.xlu0 %670
        %v674 = vunpack.c.l.s4 839922192
        %v675 = vunpack.c.0.s8 %v674
        %v676 = vperm.slane %v671, %v675
        %v678 = vmul.f32 %v462, %v676
        %680 = vst [vmem:[#allocation1] ss:$2 sm:$0xff] %v678
        %v681 = vld.sshfl [vmem:[#allocation1] sm:$0xff pattern:$0x75316420]
        %v682 = vld.sshfl [vmem:[#allocation1 + $0x8] sm:$0xff pattern:$0x75316420]
        %v685 = vsel %vm469, %v681, -inf
        %v686 = vrot.slane %v685, 4
        %v687 = vmax.f32 %v685, %v686
        %v688 = vrot.slane %v687, 2
        %v689 = vmax.f32 %v687, %v688
        %v690 = vrot.slane %v689, 1
        %v691 = vmax.f32 %v689, %v690
        %v692 = vsel %vm469, %v682, -inf
        %v693 = vrot.slane %v692, 4
        %v694 = vmax.f32 %v692, %v693
        %v695 = vrot.slane %v694, 2
        %v696 = vmax.f32 %v694, %v695
        %v697 = vrot.slane %v696, 1
        %v698 = vmax.f32 %v696, %v697
        %699 = vst [vmem:[#allocation1] ss:$2 sm:$0xff] %v678
        %v700 = vld.sshfl [vmem:[#allocation1] sm:$0xff pattern:$0x75316420]
        %v701 = vld.sshfl [vmem:[#allocation1 + $0x8] sm:$0xff pattern:$0x75316420]
        %v704 = vsel %vm469, %v700, 0.0
        %v705 = vrot.slane %v704, 4
        %v706 = vadd.f32 %v704, %v705
        %v707 = vrot.slane %v706, 2
        %v708 = vadd.f32 %v706, %v707
        %v709 = vrot.slane %v708, 1
        %v710 = vadd.f32 %v708, %v709
        %v711 = vsel %vm469, %v701, 0.0
        %v712 = vrot.slane %v711, 4
        %v713 = vadd.f32 %v711, %v712
        %v714 = vrot.slane %v713, 2
        %v715 = vadd.f32 %v713, %v714
        %v716 = vrot.slane %v715, 1
        %v717 = vadd.f32 %v715, %v716
        %v718 = vmul.f32 %v710, 0.25
        %v719 = vmul.f32 %v717, 0.25
        %v720 = vld [vmem:[#allocation7] sm:$0x7f]
        %v721 = vld [vmem:[#allocation7 + $0x8] sm:$0x7f]
        %724 = vrot.lane.b32.xlu0 %v691, 51
        %v725 = vpop.permute.xlu0 %724
        %726 = vrot.lane.b32.xlu0 %v698, 51
        %v727 = vpop.permute.xlu0 %726
        %vm728 = vcmask 416768
        %v729 = vsel %vm728, %v725, %v727
        %v733 = vsel %vm728, 0.0, %v725
        %v734 = vsel %vm728, %v727, 0.0
        %737 = vrot.lane.b32.xlu0 %v718, 51
        %v738 = vpop.permute.xlu0 %737
        %739 = vrot.lane.b32.xlu0 %v719, 51
        %v740 = vpop.permute.xlu0 %739
        %v741 = vsel %vm728, %v738, %v740
        %v745 = vsel %vm728, 0.0, %v738
        %v746 = vsel %vm728, %v740, 0.0
        %s747 = sld [smem:[#allocation9]]
        %v748 = vstv %s747
        %v749 = vmul.f32 %v748, %v733
        %v750 = vmul.f32 %v748, %v729
        %s751 = sld [smem:[#allocation9 + $0x7]]
        %v752 = vstv %s751
        %v753 = vmul.f32 %v752, %v733
        %v754 = vmul.f32 %v752, %v729
        %v755 = vmul.f32 %v752, %v734
        %759 = vrot.lane.b32.xlu0 %v753, 112
        %v760 = vpop.permute.xlu0 %759
        %761 = vrot.lane.b32.xlu0 %v754, 112
        %v762 = vpop.permute.xlu0 %761
        %763 = vrot.lane.b32.xlu0 %v755, 112
        %v764 = vpop.permute.xlu0 %763
        %vm765 = vcmask 916480
        %v766 = vsel %vm765, %v760, %v762
        %v767 = vsel %vm765, %v762, %v764
        %v770 = vadd.f32 %v749, %v766
        %v771 = vadd.f32 %v750, %v767
        %s772 = sld [smem:[#allocation9 + $0xe]]
        %v773 = vstv %s772
        %v774 = vmul.f32 %v773, %v733
        %v775 = vmul.f32 %v773, %v729
        %v776 = vmul.f32 %v773, %v734
        %780 = vrot.lane.b32.xlu0 %v774, 96
        %v781 = vpop.permute.xlu0 %780
        %782 = vrot.lane.b32.xlu0 %v775, 96
        %v783 = vpop.permute.xlu0 %782
        %784 = vrot.lane.b32.xlu0 %v776, 96
        %v785 = vpop.permute.xlu0 %784
        %vm786 = vcmask 785408
        %v787 = vsel %vm786, %v781, %v783
        %v788 = vsel %vm786, %v783, %v785
        %v791 = vadd.f32 %v770, %v787
        %v792 = vadd.f32 %v771, %v788
        %s793 = sld [smem:[#allocation9 + $0x15]]
        %v794 = vstv %s793
        %v795 = vmul.f32 %v794, %v733
        %v796 = vmul.f32 %v794, %v729
        %v797 = vmul.f32 %v794, %v734
        %801 = vrot.lane.b32.xlu0 %v795, 80
        %v802 = vpop.permute.xlu0 %801
        %803 = vrot.lane.b32.xlu0 %v796, 80
        %v804 = vpop.permute.xlu0 %803
        %805 = vrot.lane.b32.xlu0 %v797, 80
        %v806 = vpop.permute.xlu0 %805
        %vm807 = vcmask 654336
        %v808 = vsel %vm807, %v802, %v804
        %v809 = vsel %vm807, %v804, %v806
        %v812 = vadd.f32 %v791, %v808
        %v813 = vadd.f32 %v792, %v809
        %s814 = sld [smem:[#allocation9 + $0x1c]]
        %v815 = vstv %s814
        %v816 = vmul.f32 %v815, %v733
        %v817 = vmul.f32 %v815, %v729
        %v818 = vmul.f32 %v815, %v734
        %822 = vrot.lane.b32.xlu0 %v816, 64
        %v823 = vpop.permute.xlu0 %822
        %824 = vrot.lane.b32.xlu0 %v817, 64
        %v825 = vpop.permute.xlu0 %824
        %826 = vrot.lane.b32.xlu0 %v818, 64
        %v827 = vpop.permute.xlu0 %826
        %vm828 = vcmask 523264
        %v829 = vsel %vm828, %v823, %v825
        %v830 = vsel %vm828, %v825, %v827
        %v833 = vadd.f32 %v812, %v829
        %v834 = vadd.f32 %v813, %v830
        %s835 = sld [smem:[#allocation9 + $0x23]]
        %v836 = vstv %s835
        %v837 = vmul.f32 %v836, %v733
        %v838 = vmul.f32 %v836, %v729
        %v839 = vmul.f32 %v836, %v734
        %843 = vrot.lane.b32.xlu0 %v837, 48
        %v844 = vpop.permute.xlu0 %843
        %845 = vrot.lane.b32.xlu0 %v838, 48
        %v846 = vpop.permute.xlu0 %845
        %847 = vrot.lane.b32.xlu0 %v839, 48
        %v848 = vpop.permute.xlu0 %847
        %vm849 = vcmask 392192
        %v850 = vsel %vm849, %v844, %v846
        %v851 = vsel %vm849, %v846, %v848
        %v854 = vadd.f32 %v833, %v850
        %v855 = vadd.f32 %v834, %v851
        %s856 = sld [smem:[#allocation9 + $0x2a]]
        %v857 = vstv %s856
        %v858 = vmul.f32 %v857, %v733
        %v859 = vmul.f32 %v857, %v729
        %v860 = vmul.f32 %v857, %v734
        %864 = vrot.lane.b32.xlu0 %v858, 32
        %v865 = vpop.permute.xlu0 %864
        %866 = vrot.lane.b32.xlu0 %v859, 32
        %v867 = vpop.permute.xlu0 %866
        %868 = vrot.lane.b32.xlu0 %v860, 32
        %v869 = vpop.permute.xlu0 %868
        %vm870 = vcmask 261120
        %v871 = vsel %vm870, %v865, %v867
        %v872 = vsel %vm870, %v867, %v869
        %v875 = vadd.f32 %v854, %v871
        %v876 = vadd.f32 %v855, %v872
        %s877 = sld [smem:[#allocation9 + $0x31]]
        %v878 = vstv %s877
        %v879 = vmul.f32 %v878, %v745
        %v880 = vmul.f32 %v878, %v741
        %v881 = vadd.f32 %v875, %v879
        %v882 = vadd.f32 %v876, %v880
        %s883 = sld [smem:[#allocation9 + $0x38]]
        %v884 = vstv %s883
        %v885 = vmul.f32 %v884, %v745
        %v886 = vmul.f32 %v884, %v741
        %v887 = vmul.f32 %v884, %v746
        %891 = vrot.lane.b32.xlu0 %v885, 112
        %v892 = vpop.permute.xlu0 %891
        %893 = vrot.lane.b32.xlu0 %v886, 112
        %v894 = vpop.permute.xlu0 %893
        %895 = vrot.lane.b32.xlu0 %v887, 112
        %v896 = vpop.permute.xlu0 %895
        %v897 = vsel %vm765, %v892, %v894
        %v898 = vsel %vm765, %v894, %v896
        %v901 = vadd.f32 %v881, %v897
        %v902 = vadd.f32 %v882, %v898
        %s903 = sld [smem:[#allocation9 + $0x3f]]
        %v904 = vstv %s903
        %v905 = vmul.f32 %v904, %v745
        %v906 = vmul.f32 %v904, %v741
        %v907 = vmul.f32 %v904, %v746
        %911 = vrot.lane.b32.xlu0 %v905, 96
        %v912 = vpop.permute.xlu0 %911
        %913 = vrot.lane.b32.xlu0 %v906, 96
        %v914 = vpop.permute.xlu0 %913
        %915 = vrot.lane.b32.xlu0 %v907, 96
        %v916 = vpop.permute.xlu0 %915
        %v917 = vsel %vm786, %v912, %v914
        %v918 = vsel %vm786, %v914, %v916
        %v921 = vadd.f32 %v901, %v917
        %v922 = vadd.f32 %v902, %v918
        %s923 = sld [smem:[#allocation9 + $0x46]]
        %v924 = vstv %s923
        %v925 = vmul.f32 %v924, %v745
        %v926 = vmul.f32 %v924, %v741
        %v927 = vmul.f32 %v924, %v746
        %931 = vrot.lane.b32.xlu0 %v925, 80
        %v932 = vpop.permute.xlu0 %931
        %933 = vrot.lane.b32.xlu0 %v926, 80
        %v934 = vpop.permute.xlu0 %933
        %935 = vrot.lane.b32.xlu0 %v927, 80
        %v936 = vpop.permute.xlu0 %935
        %v937 = vsel %vm807, %v932, %v934
        %v938 = vsel %vm807, %v934, %v936
        %v941 = vadd.f32 %v921, %v937
        %v942 = vadd.f32 %v922, %v938
        %s943 = sld [smem:[#allocation9 + $0x4d]]
        %v944 = vstv %s943
        %v945 = vmul.f32 %v944, %v745
        %v946 = vmul.f32 %v944, %v741
        %v947 = vmul.f32 %v944, %v746
        %951 = vrot.lane.b32.xlu0 %v945, 64
        %v952 = vpop.permute.xlu0 %951
        %953 = vrot.lane.b32.xlu0 %v946, 64
        %v954 = vpop.permute.xlu0 %953
        %955 = vrot.lane.b32.xlu0 %v947, 64
        %v956 = vpop.permute.xlu0 %955
        %v957 = vsel %vm828, %v952, %v954
        %v958 = vsel %vm828, %v954, %v956
        %v961 = vadd.f32 %v941, %v957
        %v962 = vadd.f32 %v942, %v958
        %s963 = sld [smem:[#allocation9 + $0x54]]
        %v964 = vstv %s963
        %v965 = vmul.f32 %v964, %v745
        %v966 = vmul.f32 %v964, %v741
        %v967 = vmul.f32 %v964, %v746
        %971 = vrot.lane.b32.xlu0 %v965, 48
        %v972 = vpop.permute.xlu0 %971
        %973 = vrot.lane.b32.xlu0 %v966, 48
        %v974 = vpop.permute.xlu0 %973
        %975 = vrot.lane.b32.xlu0 %v967, 48
        %v976 = vpop.permute.xlu0 %975
        %v977 = vsel %vm849, %v972, %v974
        %v978 = vsel %vm849, %v974, %v976
        %v981 = vadd.f32 %v961, %v977
        %v982 = vadd.f32 %v962, %v978
        %s983 = sld [smem:[#allocation9 + $0x5b]]
        %v984 = vstv %s983
        %v985 = vmul.f32 %v984, %v745
        %v986 = vmul.f32 %v984, %v741
        %v987 = vmul.f32 %v984, %v746
        %991 = vrot.lane.b32.xlu0 %v985, 32
        %v992 = vpop.permute.xlu0 %991
        %993 = vrot.lane.b32.xlu0 %v986, 32
        %v994 = vpop.permute.xlu0 %993
        %995 = vrot.lane.b32.xlu0 %v987, 32
        %v996 = vpop.permute.xlu0 %995
        %v997 = vsel %vm870, %v992, %v994
        %v998 = vsel %vm870, %v994, %v996
        %v1001 = vadd.f32 %v981, %v997
        %v1002 = vadd.f32 %v982, %v998
        %v1003 = vmul.f32 %v1001, %v720
        %v1004 = vmul.f32 %v1002, %v721
        %s1005 = sld [smem:[#allocation9 + $0x1]]
        %v1006 = vstv %s1005
        %v1007 = vmul.f32 %v1006, %v733
        %v1008 = vmul.f32 %v1006, %v729
        %v1009 = vmul.f32 %v1006, %v734
        %s1010 = sld [smem:[#allocation9 + $0x8]]
        %v1011 = vstv %s1010
        %v1012 = vmul.f32 %v1011, %v733
        %v1013 = vmul.f32 %v1011, %v729
        %v1014 = vmul.f32 %v1011, %v734
        %1018 = vrot.lane.b32.xlu0 %v1012, 112
        %v1019 = vpop.permute.xlu0 %1018
        %1020 = vrot.lane.b32.xlu0 %v1013, 112
        %v1021 = vpop.permute.xlu0 %1020
        %1022 = vrot.lane.b32.xlu0 %v1014, 112
        %v1023 = vpop.permute.xlu0 %1022
        %v1024 = vsel %vm765, %v1019, %v1021
        %v1025 = vsel %vm765, %v1021, %v1023
        %v1029 = vadd.f32 %v1007, %v1024
        %v1030 = vadd.f32 %v1008, %v1025
        %v1031 = vadd.f32 %v1009, %v1023
        %s1032 = sld [smem:[#allocation9 + $0xf]]
        %v1033 = vstv %s1032
        %v1034 = vmul.f32 %v1033, %v733
        %v1035 = vmul.f32 %v1033, %v729
        %v1036 = vmul.f32 %v1033, %v734
        %1040 = vrot.lane.b32.xlu0 %v1034, 96
        %v1041 = vpop.permute.xlu0 %1040
        %1042 = vrot.lane.b32.xlu0 %v1035, 96
        %v1043 = vpop.permute.xlu0 %1042
        %1044 = vrot.lane.b32.xlu0 %v1036, 96
        %v1045 = vpop.permute.xlu0 %1044
        %v1046 = vsel %vm786, %v1041, %v1043
        %v1047 = vsel %vm786, %v1043, %v1045
        %v1051 = vadd.f32 %v1029, %v1046
        %v1052 = vadd.f32 %v1030, %v1047
        %v1053 = vadd.f32 %v1031, %v1045
        %s1054 = sld [smem:[#allocation9 + $0x16]]
        %v1055 = vstv %s1054
        %v1056 = vmul.f32 %v1055, %v733
        %v1057 = vmul.f32 %v1055, %v729
        %v1058 = vmul.f32 %v1055, %v734
        %1062 = vrot.lane.b32.xlu0 %v1056, 80
        %v1063 = vpop.permute.xlu0 %1062
        %1064 = vrot.lane.b32.xlu0 %v1057, 80
        %v1065 = vpop.permute.xlu0 %1064
        %1066 = vrot.lane.b32.xlu0 %v1058, 80
        %v1067 = vpop.permute.xlu0 %1066
        %v1068 = vsel %vm807, %v1063, %v1065
        %v1069 = vsel %vm807, %v1065, %v1067
        %v1073 = vadd.f32 %v1051, %v1068
        %v1074 = vadd.f32 %v1052, %v1069
        %v1075 = vadd.f32 %v1053, %v1067
        %s1076 = sld [smem:[#allocation9 + $0x1d]]
        %v1077 = vstv %s1076
        %v1078 = vmul.f32 %v1077, %v733
        %v1079 = vmul.f32 %v1077, %v729
        %v1080 = vmul.f32 %v1077, %v734
        %1084 = vrot.lane.b32.xlu0 %v1078, 64
        %v1085 = vpop.permute.xlu0 %1084
        %1086 = vrot.lane.b32.xlu0 %v1079, 64
        %v1087 = vpop.permute.xlu0 %1086
        %1088 = vrot.lane.b32.xlu0 %v1080, 64
        %v1089 = vpop.permute.xlu0 %1088
        %v1090 = vsel %vm828, %v1085, %v1087
        %v1091 = vsel %vm828, %v1087, %v1089
        %v1095 = vadd.f32 %v1073, %v1090
        %v1096 = vadd.f32 %v1074, %v1091
        %v1097 = vadd.f32 %v1075, %v1089
        %s1098 = sld [smem:[#allocation9 + $0x24]]
        %v1099 = vstv %s1098
        %v1100 = vmul.f32 %v1099, %v733
        %v1101 = vmul.f32 %v1099, %v729
        %v1102 = vmul.f32 %v1099, %v734
        %1106 = vrot.lane.b32.xlu0 %v1100, 48
        %v1107 = vpop.permute.xlu0 %1106
        %1108 = vrot.lane.b32.xlu0 %v1101, 48
        %v1109 = vpop.permute.xlu0 %1108
        %1110 = vrot.lane.b32.xlu0 %v1102, 48
        %v1111 = vpop.permute.xlu0 %1110
        %v1112 = vsel %vm849, %v1107, %v1109
        %v1113 = vsel %vm849, %v1109, %v1111
        %v1117 = vadd.f32 %v1095, %v1112
        %v1118 = vadd.f32 %v1096, %v1113
        %v1119 = vadd.f32 %v1097, %v1111
        %s1120 = sld [smem:[#allocation9 + $0x2b]]
        %v1121 = vstv %s1120
        %v1122 = vmul.f32 %v1121, %v733
        %v1123 = vmul.f32 %v1121, %v729
        %v1124 = vmul.f32 %v1121, %v734
        %1128 = vrot.lane.b32.xlu0 %v1122, 32
        %v1129 = vpop.permute.xlu0 %1128
        %1130 = vrot.lane.b32.xlu0 %v1123, 32
        %v1131 = vpop.permute.xlu0 %1130
        %1132 = vrot.lane.b32.xlu0 %v1124, 32
        %v1133 = vpop.permute.xlu0 %1132
        %v1134 = vsel %vm870, %v1129, %v1131
        %v1135 = vsel %vm870, %v1131, %v1133
        %v1139 = vadd.f32 %v1117, %v1134
        %v1140 = vadd.f32 %v1118, %v1135
        %v1141 = vadd.f32 %v1119, %v1133
        %s1142 = sld [smem:[#allocation9 + $0x32]]
        %v1143 = vstv %s1142
        %v1144 = vmul.f32 %v1143, %v745
        %v1145 = vmul.f32 %v1143, %v741
        %v1146 = vmul.f32 %v1143, %v746
        %v1147 = vadd.f32 %v1139, %v1144
        %v1148 = vadd.f32 %v1140, %v1145
        %v1149 = vadd.f32 %v1141, %v1146
        %s1150 = sld [smem:[#allocation9 + $0x39]]
        %v1151 = vstv %s1150
        %v1152 = vmul.f32 %v1151, %v745
        %v1153 = vmul.f32 %v1151, %v741
        %v1154 = vmul.f32 %v1151, %v746
        %1158 = vrot.lane.b32.xlu0 %v1152, 112
        %v1159 = vpop.permute.xlu0 %1158
        %1160 = vrot.lane.b32.xlu0 %v1153, 112
        %v1161 = vpop.permute.xlu0 %1160
        %1162 = vrot.lane.b32.xlu0 %v1154, 112
        %v1163 = vpop.permute.xlu0 %1162
        %v1164 = vsel %vm765, %v1159, %v1161
        %v1165 = vsel %vm765, %v1161, %v1163
        %v1169 = vadd.f32 %v1147, %v1164
        %v1170 = vadd.f32 %v1148, %v1165
        %v1171 = vadd.f32 %v1149, %v1163
        %s1172 = sld [smem:[#allocation9 + $0x40]]
        %v1173 = vstv %s1172
        %v1174 = vmul.f32 %v1173, %v745
        %v1175 = vmul.f32 %v1173, %v741
        %v1176 = vmul.f32 %v1173, %v746
        %1180 = vrot.lane.b32.xlu0 %v1174, 96
        %v1181 = vpop.permute.xlu0 %1180
        %1182 = vrot.lane.b32.xlu0 %v1175, 96
        %v1183 = vpop.permute.xlu0 %1182
        %1184 = vrot.lane.b32.xlu0 %v1176, 96
        %v1185 = vpop.permute.xlu0 %1184
        %v1186 = vsel %vm786, %v1181, %v1183
        %v1187 = vsel %vm786, %v1183, %v1185
        %v1191 = vadd.f32 %v1169, %v1186
        %v1192 = vadd.f32 %v1170, %v1187
        %v1193 = vadd.f32 %v1171, %v1185
        %s1194 = sld [smem:[#allocation9 + $0x47]]
        %v1195 = vstv %s1194
        %v1196 = vmul.f32 %v1195, %v745
        %v1197 = vmul.f32 %v1195, %v741
        %v1198 = vmul.f32 %v1195, %v746
        %1202 = vrot.lane.b32.xlu0 %v1196, 80
        %v1203 = vpop.permute.xlu0 %1202
        %1204 = vrot.lane.b32.xlu0 %v1197, 80
        %v1205 = vpop.permute.xlu0 %1204
        %1206 = vrot.lane.b32.xlu0 %v1198, 80
        %v1207 = vpop.permute.xlu0 %1206
        %v1208 = vsel %vm807, %v1203, %v1205
        %v1209 = vsel %vm807, %v1205, %v1207
        %v1213 = vadd.f32 %v1191, %v1208
        %v1214 = vadd.f32 %v1192, %v1209
        %v1215 = vadd.f32 %v1193, %v1207
        %s1216 = sld [smem:[#allocation9 + $0x4e]]
        %v1217 = vstv %s1216
        %v1218 = vmul.f32 %v1217, %v745
        %v1219 = vmul.f32 %v1217, %v741
        %v1220 = vmul.f32 %v1217, %v746
        %1224 = vrot.lane.b32.xlu0 %v1218, 64
        %v1225 = vpop.permute.xlu0 %1224
        %1226 = vrot.lane.b32.xlu0 %v1219, 64
        %v1227 = vpop.permute.xlu0 %1226
        %1228 = vrot.lane.b32.xlu0 %v1220, 64
        %v1229 = vpop.permute.xlu0 %1228
        %v1230 = vsel %vm828, %v1225, %v1227
        %v1231 = vsel %vm828, %v1227, %v1229
        %v1235 = vadd.f32 %v1213, %v1230
        %v1236 = vadd.f32 %v1214, %v1231
        %v1237 = vadd.f32 %v1215, %v1229
        %s1238 = sld [smem:[#allocation9 + $0x55]]
        %v1239 = vstv %s1238
        %v1240 = vmul.f32 %v1239, %v745
        %v1241 = vmul.f32 %v1239, %v741
        %v1242 = vmul.f32 %v1239, %v746
        %1246 = vrot.lane.b32.xlu0 %v1240, 48
        %v1247 = vpop.permute.xlu0 %1246
        %1248 = vrot.lane.b32.xlu0 %v1241, 48
        %v1249 = vpop.permute.xlu0 %1248
        %1250 = vrot.lane.b32.xlu0 %v1242, 48
        %v1251 = vpop.permute.xlu0 %1250
        %v1252 = vsel %vm849, %v1247, %v1249
        %v1253 = vsel %vm849, %v1249, %v1251
        %v1257 = vadd.f32 %v1235, %v1252
        %v1258 = vadd.f32 %v1236, %v1253
        %v1259 = vadd.f32 %v1237, %v1251
        %s1260 = sld [smem:[#allocation9 + $0x5c]]
        %v1261 = vstv %s1260
        %v1262 = vmul.f32 %v1261, %v745
        %v1263 = vmul.f32 %v1261, %v741
        %v1264 = vmul.f32 %v1261, %v746
        %1268 = vrot.lane.b32.xlu0 %v1262, 32
        %v1269 = vpop.permute.xlu0 %1268
        %1270 = vrot.lane.b32.xlu0 %v1263, 32
        %v1271 = vpop.permute.xlu0 %1270
        %1272 = vrot.lane.b32.xlu0 %v1264, 32
        %v1273 = vpop.permute.xlu0 %1272
        %v1274 = vsel %vm870, %v1269, %v1271
        %v1275 = vsel %vm870, %v1271, %v1273
        %v1279 = vadd.f32 %v1257, %v1274
        %v1280 = vadd.f32 %v1258, %v1275
        %v1281 = vadd.f32 %v1259, %v1273
        %v1284 = vrot.slane %v720, 1
        %v1285 = vrot.slane %v721, 1
        %1286 = vrot.lane.b32.xlu0 %v1284, 1
        %v1287 = vpop.permute.xlu0 %1286
        %1288 = vrot.lane.b32.xlu0 %v1285, 1
        %v1289 = vpop.permute.xlu0 %1288
        %vm1290 = vcmask 7168
        %v1291 = vsel %vm1290, %v1287, %v1289
        %v1295 = vmul.f32 %v1279, %v1287
        %v1296 = vmul.f32 %v1280, %v1291
        %v1297 = vmul.f32 %v1281, %v1289
        %s1298 = sld [smem:[#allocation9 + $0x2]]
        %v1299 = vstv %s1298
        %v1300 = vmul.f32 %v1299, %v733
        %v1301 = vmul.f32 %v1299, %v729
        %v1302 = vmul.f32 %v1299, %v734
        %s1303 = sld [smem:[#allocation9 + $0x9]]
        %v1304 = vstv %s1303
        %v1305 = vmul.f32 %v1304, %v733
        %v1306 = vmul.f32 %v1304, %v729
        %v1307 = vmul.f32 %v1304, %v734
        %1311 = vrot.lane.b32.xlu0 %v1305, 112
        %v1312 = vpop.permute.xlu0 %1311
        %1313 = vrot.lane.b32.xlu0 %v1306, 112
        %v1314 = vpop.permute.xlu0 %1313
        %1315 = vrot.lane.b32.xlu0 %v1307, 112
        %v1316 = vpop.permute.xlu0 %1315
        %v1317 = vsel %vm765, %v1312, %v1314
        %v1318 = vsel %vm765, %v1314, %v1316
        %v1322 = vadd.f32 %v1300, %v1317
        %v1323 = vadd.f32 %v1301, %v1318
        %v1324 = vadd.f32 %v1302, %v1316
        %s1325 = sld [smem:[#allocation9 + $0x10]]
        %v1326 = vstv %s1325
        %v1327 = vmul.f32 %v1326, %v733
        %v1328 = vmul.f32 %v1326, %v729
        %v1329 = vmul.f32 %v1326, %v734
        %1333 = vrot.lane.b32.xlu0 %v1327, 96
        %v1334 = vpop.permute.xlu0 %1333
        %1335 = vrot.lane.b32.xlu0 %v1328, 96
        %v1336 = vpop.permute.xlu0 %1335
        %1337 = vrot.lane.b32.xlu0 %v1329, 96
        %v1338 = vpop.permute.xlu0 %1337
        %v1339 = vsel %vm786, %v1334, %v1336
        %v1340 = vsel %vm786, %v1336, %v1338
        %v1344 = vadd.f32 %v1322, %v1339
        %v1345 = vadd.f32 %v1323, %v1340
        %v1346 = vadd.f32 %v1324, %v1338
        %s1347 = sld [smem:[#allocation9 + $0x17]]
        %v1348 = vstv %s1347
        %v1349 = vmul.f32 %v1348, %v733
        %v1350 = vmul.f32 %v1348, %v729
        %v1351 = vmul.f32 %v1348, %v734
        %1355 = vrot.lane.b32.xlu0 %v1349, 80
        %v1356 = vpop.permute.xlu0 %1355
        %1357 = vrot.lane.b32.xlu0 %v1350, 80
        %v1358 = vpop.permute.xlu0 %1357
        %1359 = vrot.lane.b32.xlu0 %v1351, 80
        %v1360 = vpop.permute.xlu0 %1359
        %v1361 = vsel %vm807, %v1356, %v1358
        %v1362 = vsel %vm807, %v1358, %v1360
        %v1366 = vadd.f32 %v1344, %v1361
        %v1367 = vadd.f32 %v1345, %v1362
        %v1368 = vadd.f32 %v1346, %v1360
        %s1369 = sld [smem:[#allocation9 + $0x1e]]
        %v1370 = vstv %s1369
        %v1371 = vmul.f32 %v1370, %v733
        %v1372 = vmul.f32 %v1370, %v729
        %v1373 = vmul.f32 %v1370, %v734
        %1377 = vrot.lane.b32.xlu0 %v1371, 64
        %v1378 = vpop.permute.xlu0 %1377
        %1379 = vrot.lane.b32.xlu0 %v1372, 64
        %v1380 = vpop.permute.xlu0 %1379
        %1381 = vrot.lane.b32.xlu0 %v1373, 64
        %v1382 = vpop.permute.xlu0 %1381
        %v1383 = vsel %vm828, %v1378, %v1380
        %v1384 = vsel %vm828, %v1380, %v1382
        %v1388 = vadd.f32 %v1366, %v1383
        %v1389 = vadd.f32 %v1367, %v1384
        %v1390 = vadd.f32 %v1368, %v1382
        %s1391 = sld [smem:[#allocation9 + $0x25]]
        %v1392 = vstv %s1391
        %v1393 = vmul.f32 %v1392, %v733
        %v1394 = vmul.f32 %v1392, %v729
        %v1395 = vmul.f32 %v1392, %v734
        %1399 = vrot.lane.b32.xlu0 %v1393, 48
        %v1400 = vpop.permute.xlu0 %1399
        %1401 = vrot.lane.b32.xlu0 %v1394, 48
        %v1402 = vpop.permute.xlu0 %1401
        %1403 = vrot.lane.b32.xlu0 %v1395, 48
        %v1404 = vpop.permute.xlu0 %1403
        %v1405 = vsel %vm849, %v1400, %v1402
        %v1406 = vsel %vm849, %v1402, %v1404
        %v1410 = vadd.f32 %v1388, %v1405
        %v1411 = vadd.f32 %v1389, %v1406
        %v1412 = vadd.f32 %v1390, %v1404
        %s1413 = sld [smem:[#allocation9 + $0x2c]]
        %v1414 = vstv %s1413
        %v1415 = vmul.f32 %v1414, %v733
        %v1416 = vmul.f32 %v1414, %v729
        %v1417 = vmul.f32 %v1414, %v734
        %1421 = vrot.lane.b32.xlu0 %v1415, 32
        %v1422 = vpop.permute.xlu0 %1421
        %1423 = vrot.lane.b32.xlu0 %v1416, 32
        %v1424 = vpop.permute.xlu0 %1423
        %1425 = vrot.lane.b32.xlu0 %v1417, 32
        %v1426 = vpop.permute.xlu0 %1425
        %v1427 = vsel %vm870, %v1422, %v1424
        %v1428 = vsel %vm870, %v1424, %v1426
        %v1432 = vadd.f32 %v1410, %v1427
        %v1433 = vadd.f32 %v1411, %v1428
        %v1434 = vadd.f32 %v1412, %v1426
        %s1435 = sld [smem:[#allocation9 + $0x33]]
        %v1436 = vstv %s1435
        %v1437 = vmul.f32 %v1436, %v745
        %v1438 = vmul.f32 %v1436, %v741
        %v1439 = vmul.f32 %v1436, %v746
        %v1440 = vadd.f32 %v1432, %v1437
        %v1441 = vadd.f32 %v1433, %v1438
        %v1442 = vadd.f32 %v1434, %v1439
        %s1443 = sld [smem:[#allocation9 + $0x3a]]
        %v1444 = vstv %s1443
        %v1445 = vmul.f32 %v1444, %v745
        %v1446 = vmul.f32 %v1444, %v741
        %v1447 = vmul.f32 %v1444, %v746
        %1451 = vrot.lane.b32.xlu0 %v1445, 112
        %v1452 = vpop.permute.xlu0 %1451
        %1453 = vrot.lane.b32.xlu0 %v1446, 112
        %v1454 = vpop.permute.xlu0 %1453
        %1455 = vrot.lane.b32.xlu0 %v1447, 112
        %v1456 = vpop.permute.xlu0 %1455
        %v1457 = vsel %vm765, %v1452, %v1454
        %v1458 = vsel %vm765, %v1454, %v1456
        %v1462 = vadd.f32 %v1440, %v1457
        %v1463 = vadd.f32 %v1441, %v1458
        %v1464 = vadd.f32 %v1442, %v1456
        %s1465 = sld [smem:[#allocation9 + $0x41]]
        %v1466 = vstv %s1465
        %v1467 = vmul.f32 %v1466, %v745
        %v1468 = vmul.f32 %v1466, %v741
        %v1469 = vmul.f32 %v1466, %v746
        %1473 = vrot.lane.b32.xlu0 %v1467, 96
        %v1474 = vpop.permute.xlu0 %1473
        %1475 = vrot.lane.b32.xlu0 %v1468, 96
        %v1476 = vpop.permute.xlu0 %1475
        %1477 = vrot.lane.b32.xlu0 %v1469, 96
        %v1478 = vpop.permute.xlu0 %1477
        %v1479 = vsel %vm786, %v1474, %v1476
        %v1480 = vsel %vm786, %v1476, %v1478
        %v1484 = vadd.f32 %v1462, %v1479
        %v1485 = vadd.f32 %v1463, %v1480
        %v1486 = vadd.f32 %v1464, %v1478
        %s1487 = sld [smem:[#allocation9 + $0x48]]
        %v1488 = vstv %s1487
        %v1489 = vmul.f32 %v1488, %v745
        %v1490 = vmul.f32 %v1488, %v741
        %v1491 = vmul.f32 %v1488, %v746
        %1495 = vrot.lane.b32.xlu0 %v1489, 80
        %v1496 = vpop.permute.xlu0 %1495
        %1497 = vrot.lane.b32.xlu0 %v1490, 80
        %v1498 = vpop.permute.xlu0 %1497
        %1499 = vrot.lane.b32.xlu0 %v1491, 80
        %v1500 = vpop.permute.xlu0 %1499
        %v1501 = vsel %vm807, %v1496, %v1498
        %v1502 = vsel %vm807, %v1498, %v1500
        %v1506 = vadd.f32 %v1484, %v1501
        %v1507 = vadd.f32 %v1485, %v1502
        %v1508 = vadd.f32 %v1486, %v1500
        %s1509 = sld [smem:[#allocation9 + $0x4f]]
        %v1510 = vstv %s1509
        %v1511 = vmul.f32 %v1510, %v745
        %v1512 = vmul.f32 %v1510, %v741
        %v1513 = vmul.f32 %v1510, %v746
        %1517 = vrot.lane.b32.xlu0 %v1511, 64
        %v1518 = vpop.permute.xlu0 %1517
        %1519 = vrot.lane.b32.xlu0 %v1512, 64
        %v1520 = vpop.permute.xlu0 %1519
        %1521 = vrot.lane.b32.xlu0 %v1513, 64
        %v1522 = vpop.permute.xlu0 %1521
        %v1523 = vsel %vm828, %v1518, %v1520
        %v1524 = vsel %vm828, %v1520, %v1522
        %v1528 = vadd.f32 %v1506, %v1523
        %v1529 = vadd.f32 %v1507, %v1524
        %v1530 = vadd.f32 %v1508, %v1522
        %s1531 = sld [smem:[#allocation9 + $0x56]]
        %v1532 = vstv %s1531
        %v1533 = vmul.f32 %v1532, %v745
        %v1534 = vmul.f32 %v1532, %v741
        %v1535 = vmul.f32 %v1532, %v746
        %1539 = vrot.lane.b32.xlu0 %v1533, 48
        %v1540 = vpop.permute.xlu0 %1539
        %1541 = vrot.lane.b32.xlu0 %v1534, 48
        %v1542 = vpop.permute.xlu0 %1541
        %1543 = vrot.lane.b32.xlu0 %v1535, 48
        %v1544 = vpop.permute.xlu0 %1543
        %v1545 = vsel %vm849, %v1540, %v1542
        %v1546 = vsel %vm849, %v1542, %v1544
        %v1550 = vadd.f32 %v1528, %v1545
        %v1551 = vadd.f32 %v1529, %v1546
        %v1552 = vadd.f32 %v1530, %v1544
        %s1553 = sld [smem:[#allocation9 + $0x5d]]
        %v1554 = vstv %s1553
        %v1555 = vmul.f32 %v1554, %v745
        %v1556 = vmul.f32 %v1554, %v741
        %v1557 = vmul.f32 %v1554, %v746
        %1561 = vrot.lane.b32.xlu0 %v1555, 32
        %v1562 = vpop.permute.xlu0 %1561
        %1563 = vrot.lane.b32.xlu0 %v1556, 32
        %v1564 = vpop.permute.xlu0 %1563
        %1565 = vrot.lane.b32.xlu0 %v1557, 32
        %v1566 = vpop.permute.xlu0 %1565
        %v1567 = vsel %vm870, %v1562, %v1564
        %v1568 = vsel %vm870, %v1564, %v1566
        %v1572 = vadd.f32 %v1550, %v1567
        %v1573 = vadd.f32 %v1551, %v1568
        %v1574 = vadd.f32 %v1552, %v1566
        %v1575 = vrot.slane %v720, 2
        %v1576 = vrot.slane %v721, 2
        %1577 = vrot.lane.b32.xlu0 %v1575, 2
        %v1578 = vpop.permute.xlu0 %1577
        %1579 = vrot.lane.b32.xlu0 %v1576, 2
        %v1580 = vpop.permute.xlu0 %1579
        %v1581 = vsel %vm521, %v1578, %v1580
        %v1585 = vmul.f32 %v1572, %v1578
        %v1586 = vmul.f32 %v1573, %v1581
        %v1587 = vmul.f32 %v1574, %v1580
        %s1588 = sld [smem:[#allocation9 + $0x3]]
        %v1589 = vstv %s1588
        %v1590 = vmul.f32 %v1589, %v733
        %v1591 = vmul.f32 %v1589, %v729
        %v1592 = vmul.f32 %v1589, %v734
        %s1593 = sld [smem:[#allocation9 + $0xa]]
        %v1594 = vstv %s1593
        %v1595 = vmul.f32 %v1594, %v733
        %v1596 = vmul.f32 %v1594, %v729
        %v1597 = vmul.f32 %v1594, %v734
        %1601 = vrot.lane.b32.xlu0 %v1595, 112
        %v1602 = vpop.permute.xlu0 %1601
        %1603 = vrot.lane.b32.xlu0 %v1596, 112
        %v1604 = vpop.permute.xlu0 %1603
        %1605 = vrot.lane.b32.xlu0 %v1597, 112
        %v1606 = vpop.permute.xlu0 %1605
        %v1607 = vsel %vm765, %v1602, %v1604
        %v1608 = vsel %vm765, %v1604, %v1606
        %v1612 = vadd.f32 %v1590, %v1607
        %v1613 = vadd.f32 %v1591, %v1608
        %v1614 = vadd.f32 %v1592, %v1606
        %s1615 = sld [smem:[#allocation9 + $0x11]]
        %v1616 = vstv %s1615
        %v1617 = vmul.f32 %v1616, %v733
        %v1618 = vmul.f32 %v1616, %v729
        %v1619 = vmul.f32 %v1616, %v734
        %1623 = vrot.lane.b32.xlu0 %v1617, 96
        %v1624 = vpop.permute.xlu0 %1623
        %1625 = vrot.lane.b32.xlu0 %v1618, 96
        %v1626 = vpop.permute.xlu0 %1625
        %1627 = vrot.lane.b32.xlu0 %v1619, 96
        %v1628 = vpop.permute.xlu0 %1627
        %v1629 = vsel %vm786, %v1624, %v1626
        %v1630 = vsel %vm786, %v1626, %v1628
        %v1634 = vadd.f32 %v1612, %v1629
        %v1635 = vadd.f32 %v1613, %v1630
        %v1636 = vadd.f32 %v1614, %v1628
        %s1637 = sld [smem:[#allocation9 + $0x18]]
        %v1638 = vstv %s1637
        %v1639 = vmul.f32 %v1638, %v733
        %v1640 = vmul.f32 %v1638, %v729
        %v1641 = vmul.f32 %v1638, %v734
        %1645 = vrot.lane.b32.xlu0 %v1639, 80
        %v1646 = vpop.permute.xlu0 %1645
        %1647 = vrot.lane.b32.xlu0 %v1640, 80
        %v1648 = vpop.permute.xlu0 %1647
        %1649 = vrot.lane.b32.xlu0 %v1641, 80
        %v1650 = vpop.permute.xlu0 %1649
        %v1651 = vsel %vm807, %v1646, %v1648
        %v1652 = vsel %vm807, %v1648, %v1650
        %v1656 = vadd.f32 %v1634, %v1651
        %v1657 = vadd.f32 %v1635, %v1652
        %v1658 = vadd.f32 %v1636, %v1650
        %s1659 = sld [smem:[#allocation9 + $0x1f]]
        %v1660 = vstv %s1659
        %v1661 = vmul.f32 %v1660, %v733
        %v1662 = vmul.f32 %v1660, %v729
        %v1663 = vmul.f32 %v1660, %v734
        %1667 = vrot.lane.b32.xlu0 %v1661, 64
        %v1668 = vpop.permute.xlu0 %1667
        %1669 = vrot.lane.b32.xlu0 %v1662, 64
        %v1670 = vpop.permute.xlu0 %1669
        %1671 = vrot.lane.b32.xlu0 %v1663, 64
        %v1672 = vpop.permute.xlu0 %1671
        %v1673 = vsel %vm828, %v1668, %v1670
        %v1674 = vsel %vm828, %v1670, %v1672
        %v1678 = vadd.f32 %v1656, %v1673
        %v1679 = vadd.f32 %v1657, %v1674
        %v1680 = vadd.f32 %v1658, %v1672
        %s1681 = sld [smem:[#allocation9 + $0x26]]
        %v1682 = vstv %s1681
        %v1683 = vmul.f32 %v1682, %v733
        %v1684 = vmul.f32 %v1682, %v729
        %v1685 = vmul.f32 %v1682, %v734
        %1689 = vrot.lane.b32.xlu0 %v1683, 48
        %v1690 = vpop.permute.xlu0 %1689
        %1691 = vrot.lane.b32.xlu0 %v1684, 48
        %v1692 = vpop.permute.xlu0 %1691
        %1693 = vrot.lane.b32.xlu0 %v1685, 48
        %v1694 = vpop.permute.xlu0 %1693
        %v1695 = vsel %vm849, %v1690, %v1692
        %v1696 = vsel %vm849, %v1692, %v1694
        %v1700 = vadd.f32 %v1678, %v1695
        %v1701 = vadd.f32 %v1679, %v1696
        %v1702 = vadd.f32 %v1680, %v1694
        %s1703 = sld [smem:[#allocation9 + $0x2d]]
        %v1704 = vstv %s1703
        %v1705 = vmul.f32 %v1704, %v733
        %v1706 = vmul.f32 %v1704, %v729
        %v1707 = vmul.f32 %v1704, %v734
        %1711 = vrot.lane.b32.xlu0 %v1705, 32
        %v1712 = vpop.permute.xlu0 %1711
        %1713 = vrot.lane.b32.xlu0 %v1706, 32
        %v1714 = vpop.permute.xlu0 %1713
        %1715 = vrot.lane.b32.xlu0 %v1707, 32
        %v1716 = vpop.permute.xlu0 %1715
        %v1717 = vsel %vm870, %v1712, %v1714
        %v1718 = vsel %vm870, %v1714, %v1716
        %v1722 = vadd.f32 %v1700, %v1717
        %v1723 = vadd.f32 %v1701, %v1718
        %v1724 = vadd.f32 %v1702, %v1716
        %s1725 = sld [smem:[#allocation9 + $0x34]]
        %v1726 = vstv %s1725
        %v1727 = vmul.f32 %v1726, %v745
        %v1728 = vmul.f32 %v1726, %v741
        %v1729 = vmul.f32 %v1726, %v746
        %v1730 = vadd.f32 %v1722, %v1727
        %v1731 = vadd.f32 %v1723, %v1728
        %v1732 = vadd.f32 %v1724, %v1729
        %s1733 = sld [smem:[#allocation9 + $0x3b]]
        %v1734 = vstv %s1733
        %v1735 = vmul.f32 %v1734, %v745
        %v1736 = vmul.f32 %v1734, %v741
        %v1737 = vmul.f32 %v1734, %v746
        %1741 = vrot.lane.b32.xlu0 %v1735, 112
        %v1742 = vpop.permute.xlu0 %1741
        %1743 = vrot.lane.b32.xlu0 %v1736, 112
        %v1744 = vpop.permute.xlu0 %1743
        %1745 = vrot.lane.b32.xlu0 %v1737, 112
        %v1746 = vpop.permute.xlu0 %1745
        %v1747 = vsel %vm765, %v1742, %v1744
        %v1748 = vsel %vm765, %v1744, %v1746
        %v1752 = vadd.f32 %v1730, %v1747
        %v1753 = vadd.f32 %v1731, %v1748
        %v1754 = vadd.f32 %v1732, %v1746
        %s1755 = sld [smem:[#allocation9 + $0x42]]
        %v1756 = vstv %s1755
        %v1757 = vmul.f32 %v1756, %v745
        %v1758 = vmul.f32 %v1756, %v741
        %v1759 = vmul.f32 %v1756, %v746
        %1763 = vrot.lane.b32.xlu0 %v1757, 96
        %v1764 = vpop.permute.xlu0 %1763
        %1765 = vrot.lane.b32.xlu0 %v1758, 96
        %v1766 = vpop.permute.xlu0 %1765
        %1767 = vrot.lane.b32.xlu0 %v1759, 96
        %v1768 = vpop.permute.xlu0 %1767
        %v1769 = vsel %vm786, %v1764, %v1766
        %v1770 = vsel %vm786, %v1766, %v1768
        %v1774 = vadd.f32 %v1752, %v1769
        %v1775 = vadd.f32 %v1753, %v1770
        %v1776 = vadd.f32 %v1754, %v1768
        %s1777 = sld [smem:[#allocation9 + $0x49]]
        %v1778 = vstv %s1777
        %v1779 = vmul.f32 %v1778, %v745
        %v1780 = vmul.f32 %v1778, %v741
        %v1781 = vmul.f32 %v1778, %v746
        %1785 = vrot.lane.b32.xlu0 %v1779, 80
        %v1786 = vpop.permute.xlu0 %1785
        %1787 = vrot.lane.b32.xlu0 %v1780, 80
        %v1788 = vpop.permute.xlu0 %1787
        %1789 = vrot.lane.b32.xlu0 %v1781, 80
        %v1790 = vpop.permute.xlu0 %1789
        %v1791 = vsel %vm807, %v1786, %v1788
        %v1792 = vsel %vm807, %v1788, %v1790
        %v1796 = vadd.f32 %v1774, %v1791
        %v1797 = vadd.f32 %v1775, %v1792
        %v1798 = vadd.f32 %v1776, %v1790
        %s1799 = sld [smem:[#allocation9 + $0x50]]
        %v1800 = vstv %s1799
        %v1801 = vmul.f32 %v1800, %v745
        %v1802 = vmul.f32 %v1800, %v741
        %v1803 = vmul.f32 %v1800, %v746
        %1807 = vrot.lane.b32.xlu0 %v1801, 64
        %v1808 = vpop.permute.xlu0 %1807
        %1809 = vrot.lane.b32.xlu0 %v1802, 64
        %v1810 = vpop.permute.xlu0 %1809
        %1811 = vrot.lane.b32.xlu0 %v1803, 64
        %v1812 = vpop.permute.xlu0 %1811
        %v1813 = vsel %vm828, %v1808, %v1810
        %v1814 = vsel %vm828, %v1810, %v1812
        %v1818 = vadd.f32 %v1796, %v1813
        %v1819 = vadd.f32 %v1797, %v1814
        %v1820 = vadd.f32 %v1798, %v1812
        %s1821 = sld [smem:[#allocation9 + $0x57]]
        %v1822 = vstv %s1821
        %v1823 = vmul.f32 %v1822, %v745
        %v1824 = vmul.f32 %v1822, %v741
        %v1825 = vmul.f32 %v1822, %v746
        %1829 = vrot.lane.b32.xlu0 %v1823, 48
        %v1830 = vpop.permute.xlu0 %1829
        %1831 = vrot.lane.b32.xlu0 %v1824, 48
        %v1832 = vpop.permute.xlu0 %1831
        %1833 = vrot.lane.b32.xlu0 %v1825, 48
        %v1834 = vpop.permute.xlu0 %1833
        %v1835 = vsel %vm849, %v1830, %v1832
        %v1836 = vsel %vm849, %v1832, %v1834
        %v1840 = vadd.f32 %v1818, %v1835
        %v1841 = vadd.f32 %v1819, %v1836
        %v1842 = vadd.f32 %v1820, %v1834
        %s1843 = sld [smem:[#allocation9 + $0x5e]]
        %v1844 = vstv %s1843
        %v1845 = vmul.f32 %v1844, %v745
        %v1846 = vmul.f32 %v1844, %v741
        %v1847 = vmul.f32 %v1844, %v746
        %1851 = vrot.lane.b32.xlu0 %v1845, 32
        %v1852 = vpop.permute.xlu0 %1851
        %1853 = vrot.lane.b32.xlu0 %v1846, 32
        %v1854 = vpop.permute.xlu0 %1853
        %1855 = vrot.lane.b32.xlu0 %v1847, 32
        %v1856 = vpop.permute.xlu0 %1855
        %v1857 = vsel %vm870, %v1852, %v1854
        %v1858 = vsel %vm870, %v1854, %v1856
        %v1862 = vadd.f32 %v1840, %v1857
        %v1863 = vadd.f32 %v1841, %v1858
        %v1864 = vadd.f32 %v1842, %v1856
        %v1865 = vrot.slane %v720, 3
        %v1866 = vrot.slane %v721, 3
        %1867 = vrot.lane.b32.xlu0 %v1865, 3
        %v1868 = vpop.permute.xlu0 %1867
        %1869 = vrot.lane.b32.xlu0 %v1866, 3
        %v1870 = vpop.permute.xlu0 %1869
        %vm1871 = vcmask 23552
        %v1872 = vsel %vm1871, %v1868, %v1870
        %v1876 = vmul.f32 %v1862, %v1868
        %v1877 = vmul.f32 %v1863, %v1872
        %v1878 = vmul.f32 %v1864, %v1870
        %s1879 = sld [smem:[#allocation9 + $0x4]]
        %v1880 = vstv %s1879
        %v1881 = vmul.f32 %v1880, %v733
        %v1882 = vmul.f32 %v1880, %v729
        %v1883 = vmul.f32 %v1880, %v734
        %s1884 = sld [smem:[#allocation9 + $0xb]]
        %v1885 = vstv %s1884
        %v1886 = vmul.f32 %v1885, %v733
        %v1887 = vmul.f32 %v1885, %v729
        %v1888 = vmul.f32 %v1885, %v734
        %1892 = vrot.lane.b32.xlu0 %v1886, 112
        %v1893 = vpop.permute.xlu0 %1892
        %1894 = vrot.lane.b32.xlu0 %v1887, 112
        %v1895 = vpop.permute.xlu0 %1894
        %1896 = vrot.lane.b32.xlu0 %v1888, 112
        %v1897 = vpop.permute.xlu0 %1896
        %v1898 = vsel %vm765, %v1893, %v1895
        %v1899 = vsel %vm765, %v1895, %v1897
        %v1903 = vadd.f32 %v1881, %v1898
        %v1904 = vadd.f32 %v1882, %v1899
        %v1905 = vadd.f32 %v1883, %v1897
        %s1906 = sld [smem:[#allocation9 + $0x12]]
        %v1907 = vstv %s1906
        %v1908 = vmul.f32 %v1907, %v733
        %v1909 = vmul.f32 %v1907, %v729
        %v1910 = vmul.f32 %v1907, %v734
        %1914 = vrot.lane.b32.xlu0 %v1908, 96
        %v1915 = vpop.permute.xlu0 %1914
        %1916 = vrot.lane.b32.xlu0 %v1909, 96
        %v1917 = vpop.permute.xlu0 %1916
        %1918 = vrot.lane.b32.xlu0 %v1910, 96
        %v1919 = vpop.permute.xlu0 %1918
        %v1920 = vsel %vm786, %v1915, %v1917
        %v1921 = vsel %vm786, %v1917, %v1919
        %v1925 = vadd.f32 %v1903, %v1920
        %v1926 = vadd.f32 %v1904, %v1921
        %v1927 = vadd.f32 %v1905, %v1919
        %s1928 = sld [smem:[#allocation9 + $0x19]]
        %v1929 = vstv %s1928
        %v1930 = vmul.f32 %v1929, %v733
        %v1931 = vmul.f32 %v1929, %v729
        %v1932 = vmul.f32 %v1929, %v734
        %1936 = vrot.lane.b32.xlu0 %v1930, 80
        %v1937 = vpop.permute.xlu0 %1936
        %1938 = vrot.lane.b32.xlu0 %v1931, 80
        %v1939 = vpop.permute.xlu0 %1938
        %1940 = vrot.lane.b32.xlu0 %v1932, 80
        %v1941 = vpop.permute.xlu0 %1940
        %v1942 = vsel %vm807, %v1937, %v1939
        %v1943 = vsel %vm807, %v1939, %v1941
        %v1947 = vadd.f32 %v1925, %v1942
        %v1948 = vadd.f32 %v1926, %v1943
        %v1949 = vadd.f32 %v1927, %v1941
        %s1950 = sld [smem:[#allocation9 + $0x20]]
        %v1951 = vstv %s1950
        %v1952 = vmul.f32 %v1951, %v733
        %v1953 = vmul.f32 %v1951, %v729
        %v1954 = vmul.f32 %v1951, %v734
        %1958 = vrot.lane.b32.xlu0 %v1952, 64
        %v1959 = vpop.permute.xlu0 %1958
        %1960 = vrot.lane.b32.xlu0 %v1953, 64
        %v1961 = vpop.permute.xlu0 %1960
        %1962 = vrot.lane.b32.xlu0 %v1954, 64
        %v1963 = vpop.permute.xlu0 %1962
        %v1964 = vsel %vm828, %v1959, %v1961
        %v1965 = vsel %vm828, %v1961, %v1963
        %v1969 = vadd.f32 %v1947, %v1964
        %v1970 = vadd.f32 %v1948, %v1965
        %v1971 = vadd.f32 %v1949, %v1963
        %s1972 = sld [smem:[#allocation9 + $0x27]]
        %v1973 = vstv %s1972
        %v1974 = vmul.f32 %v1973, %v733
        %v1975 = vmul.f32 %v1973, %v729
        %v1976 = vmul.f32 %v1973, %v734
        %1980 = vrot.lane.b32.xlu0 %v1974, 48
        %v1981 = vpop.permute.xlu0 %1980
        %1982 = vrot.lane.b32.xlu0 %v1975, 48
        %v1983 = vpop.permute.xlu0 %1982
        %1984 = vrot.lane.b32.xlu0 %v1976, 48
        %v1985 = vpop.permute.xlu0 %1984
        %v1986 = vsel %vm849, %v1981, %v1983
        %v1987 = vsel %vm849, %v1983, %v1985
        %v1991 = vadd.f32 %v1969, %v1986
        %v1992 = vadd.f32 %v1970, %v1987
        %v1993 = vadd.f32 %v1971, %v1985
        %s1994 = sld [smem:[#allocation9 + $0x2e]]
        %v1995 = vstv %s1994
        %v1996 = vmul.f32 %v1995, %v733
        %v1997 = vmul.f32 %v1995, %v729
        %v1998 = vmul.f32 %v1995, %v734
        %2002 = vrot.lane.b32.xlu0 %v1996, 32
        %v2003 = vpop.permute.xlu0 %2002
        %2004 = vrot.lane.b32.xlu0 %v1997, 32
        %v2005 = vpop.permute.xlu0 %2004
        %2006 = vrot.lane.b32.xlu0 %v1998, 32
        %v2007 = vpop.permute.xlu0 %2006
        %v2008 = vsel %vm870, %v2003, %v2005
        %v2009 = vsel %vm870, %v2005, %v2007
        %v2013 = vadd.f32 %v1991, %v2008
        %v2014 = vadd.f32 %v1992, %v2009
        %v2015 = vadd.f32 %v1993, %v2007
        %s2016 = sld [smem:[#allocation9 + $0x35]]
        %v2017 = vstv %s2016
        %v2018 = vmul.f32 %v2017, %v745
        %v2019 = vmul.f32 %v2017, %v741
        %v2020 = vmul.f32 %v2017, %v746
        %v2021 = vadd.f32 %v2013, %v2018
        %v2022 = vadd.f32 %v2014, %v2019
        %v2023 = vadd.f32 %v2015, %v2020
        %s2024 = sld [smem:[#allocation9 + $0x3c]]
        %v2025 = vstv %s2024
        %v2026 = vmul.f32 %v2025, %v745
        %v2027 = vmul.f32 %v2025, %v741
        %v2028 = vmul.f32 %v2025, %v746
        %2032 = vrot.lane.b32.xlu0 %v2026, 112
        %v2033 = vpop.permute.xlu0 %2032
        %2034 = vrot.lane.b32.xlu0 %v2027, 112
        %v2035 = vpop.permute.xlu0 %2034
        %2036 = vrot.lane.b32.xlu0 %v2028, 112
        %v2037 = vpop.permute.xlu0 %2036
        %v2038 = vsel %vm765, %v2033, %v2035
        %v2039 = vsel %vm765, %v2035, %v2037
        %v2043 = vadd.f32 %v2021, %v2038
        %v2044 = vadd.f32 %v2022, %v2039
        %v2045 = vadd.f32 %v2023, %v2037
        %s2046 = sld [smem:[#allocation9 + $0x43]]
        %v2047 = vstv %s2046
        %v2048 = vmul.f32 %v2047, %v745
        %v2049 = vmul.f32 %v2047, %v741
        %v2050 = vmul.f32 %v2047, %v746
        %2054 = vrot.lane.b32.xlu0 %v2048, 96
        %v2055 = vpop.permute.xlu0 %2054
        %2056 = vrot.lane.b32.xlu0 %v2049, 96
        %v2057 = vpop.permute.xlu0 %2056
        %2058 = vrot.lane.b32.xlu0 %v2050, 96
        %v2059 = vpop.permute.xlu0 %2058
        %v2060 = vsel %vm786, %v2055, %v2057
        %v2061 = vsel %vm786, %v2057, %v2059
        %v2065 = vadd.f32 %v2043, %v2060
        %v2066 = vadd.f32 %v2044, %v2061
        %v2067 = vadd.f32 %v2045, %v2059
        %s2068 = sld [smem:[#allocation9 + $0x4a]]
        %v2069 = vstv %s2068
        %v2070 = vmul.f32 %v2069, %v745
        %v2071 = vmul.f32 %v2069, %v741
        %v2072 = vmul.f32 %v2069, %v746
        %2076 = vrot.lane.b32.xlu0 %v2070, 80
        %v2077 = vpop.permute.xlu0 %2076
        %2078 = vrot.lane.b32.xlu0 %v2071, 80
        %v2079 = vpop.permute.xlu0 %2078
        %2080 = vrot.lane.b32.xlu0 %v2072, 80
        %v2081 = vpop.permute.xlu0 %2080
        %v2082 = vsel %vm807, %v2077, %v2079
        %v2083 = vsel %vm807, %v2079, %v2081
        %v2087 = vadd.f32 %v2065, %v2082
        %v2088 = vadd.f32 %v2066, %v2083
        %v2089 = vadd.f32 %v2067, %v2081
        %s2090 = sld [smem:[#allocation9 + $0x51]]
        %v2091 = vstv %s2090
        %v2092 = vmul.f32 %v2091, %v745
        %v2093 = vmul.f32 %v2091, %v741
        %v2094 = vmul.f32 %v2091, %v746
        %2098 = vrot.lane.b32.xlu0 %v2092, 64
        %v2099 = vpop.permute.xlu0 %2098
        %2100 = vrot.lane.b32.xlu0 %v2093, 64
        %v2101 = vpop.permute.xlu0 %2100
        %2102 = vrot.lane.b32.xlu0 %v2094, 64
        %v2103 = vpop.permute.xlu0 %2102
        %v2104 = vsel %vm828, %v2099, %v2101
        %v2105 = vsel %vm828, %v2101, %v2103
        %v2109 = vadd.f32 %v2087, %v2104
        %v2110 = vadd.f32 %v2088, %v2105
        %v2111 = vadd.f32 %v2089, %v2103
        %s2112 = sld [smem:[#allocation9 + $0x58]]
        %v2113 = vstv %s2112
        %v2114 = vmul.f32 %v2113, %v745
        %v2115 = vmul.f32 %v2113, %v741
        %v2116 = vmul.f32 %v2113, %v746
        %2120 = vrot.lane.b32.xlu0 %v2114, 48
        %v2121 = vpop.permute.xlu0 %2120
        %2122 = vrot.lane.b32.xlu0 %v2115, 48
        %v2123 = vpop.permute.xlu0 %2122
        %2124 = vrot.lane.b32.xlu0 %v2116, 48
        %v2125 = vpop.permute.xlu0 %2124
        %v2126 = vsel %vm849, %v2121, %v2123
        %v2127 = vsel %vm849, %v2123, %v2125
        %v2131 = vadd.f32 %v2109, %v2126
        %v2132 = vadd.f32 %v2110, %v2127
        %v2133 = vadd.f32 %v2111, %v2125
        %s2134 = sld [smem:[#allocation9 + $0x5f]]
        %v2135 = vstv %s2134
        %v2136 = vmul.f32 %v2135, %v745
        %v2137 = vmul.f32 %v2135, %v741
        %v2138 = vmul.f32 %v2135, %v746
        %2142 = vrot.lane.b32.xlu0 %v2136, 32
        %v2143 = vpop.permute.xlu0 %2142
        %2144 = vrot.lane.b32.xlu0 %v2137, 32
        %v2145 = vpop.permute.xlu0 %2144
        %2146 = vrot.lane.b32.xlu0 %v2138, 32
        %v2147 = vpop.permute.xlu0 %2146
        %v2148 = vsel %vm870, %v2143, %v2145
        %v2149 = vsel %vm870, %v2145, %v2147
        %v2153 = vadd.f32 %v2131, %v2148
        %v2154 = vadd.f32 %v2132, %v2149
        %v2155 = vadd.f32 %v2133, %v2147
        %v2156 = vrot.slane %v720, 4
        %v2157 = vrot.slane %v721, 4
        %2158 = vrot.lane.b32.xlu0 %v2156, 4
        %v2159 = vpop.permute.xlu0 %2158
        %2160 = vrot.lane.b32.xlu0 %v2157, 4
        %v2161 = vpop.permute.xlu0 %2160
        %v2162 = vsel %vm492, %v2159, %v2161
        %v2166 = vmul.f32 %v2153, %v2159
        %v2167 = vmul.f32 %v2154, %v2162
        %v2168 = vmul.f32 %v2155, %v2161
        %s2169 = sld [smem:[#allocation9 + $0x5]]
        %v2170 = vstv %s2169
        %v2171 = vmul.f32 %v2170, %v733
        %v2172 = vmul.f32 %v2170, %v729
        %v2173 = vmul.f32 %v2170, %v734
        %s2174 = sld [smem:[#allocation9 + $0xc]]
        %v2175 = vstv %s2174
        %v2176 = vmul.f32 %v2175, %v733
        %v2177 = vmul.f32 %v2175, %v729
        %v2178 = vmul.f32 %v2175, %v734
        %2182 = vrot.lane.b32.xlu0 %v2176, 112
        %v2183 = vpop.permute.xlu0 %2182
        %2184 = vrot.lane.b32.xlu0 %v2177, 112
        %v2185 = vpop.permute.xlu0 %2184
        %2186 = vrot.lane.b32.xlu0 %v2178, 112
        %v2187 = vpop.permute.xlu0 %2186
        %v2188 = vsel %vm765, %v2183, %v2185
        %v2189 = vsel %vm765, %v2185, %v2187
        %v2193 = vadd.f32 %v2171, %v2188
        %v2194 = vadd.f32 %v2172, %v2189
        %v2195 = vadd.f32 %v2173, %v2187
        %s2196 = sld [smem:[#allocation9 + $0x13]]
        %v2197 = vstv %s2196
        %v2198 = vmul.f32 %v2197, %v733
        %v2199 = vmul.f32 %v2197, %v729
        %v2200 = vmul.f32 %v2197, %v734
        %2204 = vrot.lane.b32.xlu0 %v2198, 96
        %v2205 = vpop.permute.xlu0 %2204
        %2206 = vrot.lane.b32.xlu0 %v2199, 96
        %v2207 = vpop.permute.xlu0 %2206
        %2208 = vrot.lane.b32.xlu0 %v2200, 96
        %v2209 = vpop.permute.xlu0 %2208
        %v2210 = vsel %vm786, %v2205, %v2207
        %v2211 = vsel %vm786, %v2207, %v2209
        %v2215 = vadd.f32 %v2193, %v2210
        %v2216 = vadd.f32 %v2194, %v2211
        %v2217 = vadd.f32 %v2195, %v2209
        %s2218 = sld [smem:[#allocation9 + $0x1a]]
        %v2219 = vstv %s2218
        %v2220 = vmul.f32 %v2219, %v733
        %v2221 = vmul.f32 %v2219, %v729
        %v2222 = vmul.f32 %v2219, %v734
        %2226 = vrot.lane.b32.xlu0 %v2220, 80
        %v2227 = vpop.permute.xlu0 %2226
        %2228 = vrot.lane.b32.xlu0 %v2221, 80
        %v2229 = vpop.permute.xlu0 %2228
        %2230 = vrot.lane.b32.xlu0 %v2222, 80
        %v2231 = vpop.permute.xlu0 %2230
        %v2232 = vsel %vm807, %v2227, %v2229
        %v2233 = vsel %vm807, %v2229, %v2231
        %v2237 = vadd.f32 %v2215, %v2232
        %v2238 = vadd.f32 %v2216, %v2233
        %v2239 = vadd.f32 %v2217, %v2231
        %s2240 = sld [smem:[#allocation9 + $0x21]]
        %v2241 = vstv %s2240
        %v2242 = vmul.f32 %v2241, %v733
        %v2243 = vmul.f32 %v2241, %v729
        %v2244 = vmul.f32 %v2241, %v734
        %2248 = vrot.lane.b32.xlu0 %v2242, 64
        %v2249 = vpop.permute.xlu0 %2248
        %2250 = vrot.lane.b32.xlu0 %v2243, 64
        %v2251 = vpop.permute.xlu0 %2250
        %2252 = vrot.lane.b32.xlu0 %v2244, 64
        %v2253 = vpop.permute.xlu0 %2252
        %v2254 = vsel %vm828, %v2249, %v2251
        %v2255 = vsel %vm828, %v2251, %v2253
        %v2259 = vadd.f32 %v2237, %v2254
        %v2260 = vadd.f32 %v2238, %v2255
        %v2261 = vadd.f32 %v2239, %v2253
        %s2262 = sld [smem:[#allocation9 + $0x28]]
        %v2263 = vstv %s2262
        %v2264 = vmul.f32 %v2263, %v733
        %v2265 = vmul.f32 %v2263, %v729
        %v2266 = vmul.f32 %v2263, %v734
        %2270 = vrot.lane.b32.xlu0 %v2264, 48
        %v2271 = vpop.permute.xlu0 %2270
        %2272 = vrot.lane.b32.xlu0 %v2265, 48
        %v2273 = vpop.permute.xlu0 %2272
        %2274 = vrot.lane.b32.xlu0 %v2266, 48
        %v2275 = vpop.permute.xlu0 %2274
        %v2276 = vsel %vm849, %v2271, %v2273
        %v2277 = vsel %vm849, %v2273, %v2275
        %v2281 = vadd.f32 %v2259, %v2276
        %v2282 = vadd.f32 %v2260, %v2277
        %v2283 = vadd.f32 %v2261, %v2275
        %s2284 = sld [smem:[#allocation9 + $0x2f]]
        %v2285 = vstv %s2284
        %v2286 = vmul.f32 %v2285, %v733
        %v2287 = vmul.f32 %v2285, %v729
        %v2288 = vmul.f32 %v2285, %v734
        %2292 = vrot.lane.b32.xlu0 %v2286, 32
        %v2293 = vpop.permute.xlu0 %2292
        %2294 = vrot.lane.b32.xlu0 %v2287, 32
        %v2295 = vpop.permute.xlu0 %2294
        %2296 = vrot.lane.b32.xlu0 %v2288, 32
        %v2297 = vpop.permute.xlu0 %2296
        %v2298 = vsel %vm870, %v2293, %v2295
        %v2299 = vsel %vm870, %v2295, %v2297
        %v2303 = vadd.f32 %v2281, %v2298
        %v2304 = vadd.f32 %v2282, %v2299
        %v2305 = vadd.f32 %v2283, %v2297
        %s2306 = sld [smem:[#allocation9 + $0x36]]
        %v2307 = vstv %s2306
        %v2308 = vmul.f32 %v2307, %v745
        %v2309 = vmul.f32 %v2307, %v741
        %v2310 = vmul.f32 %v2307, %v746
        %v2311 = vadd.f32 %v2303, %v2308
        %v2312 = vadd.f32 %v2304, %v2309
        %v2313 = vadd.f32 %v2305, %v2310
        %s2314 = sld [smem:[#allocation9 + $0x3d]]
        %v2315 = vstv %s2314
        %v2316 = vmul.f32 %v2315, %v745
        %v2317 = vmul.f32 %v2315, %v741
        %v2318 = vmul.f32 %v2315, %v746
        %2322 = vrot.lane.b32.xlu0 %v2316, 112
        %v2323 = vpop.permute.xlu0 %2322
        %2324 = vrot.lane.b32.xlu0 %v2317, 112
        %v2325 = vpop.permute.xlu0 %2324
        %2326 = vrot.lane.b32.xlu0 %v2318, 112
        %v2327 = vpop.permute.xlu0 %2326
        %v2328 = vsel %vm765, %v2323, %v2325
        %v2329 = vsel %vm765, %v2325, %v2327
        %v2333 = vadd.f32 %v2311, %v2328
        %v2334 = vadd.f32 %v2312, %v2329
        %v2335 = vadd.f32 %v2313, %v2327
        %s2336 = sld [smem:[#allocation9 + $0x44]]
        %v2337 = vstv %s2336
        %v2338 = vmul.f32 %v2337, %v745
        %v2339 = vmul.f32 %v2337, %v741
        %v2340 = vmul.f32 %v2337, %v746
        %2344 = vrot.lane.b32.xlu0 %v2338, 96
        %v2345 = vpop.permute.xlu0 %2344
        %2346 = vrot.lane.b32.xlu0 %v2339, 96
        %v2347 = vpop.permute.xlu0 %2346
        %2348 = vrot.lane.b32.xlu0 %v2340, 96
        %v2349 = vpop.permute.xlu0 %2348
        %v2350 = vsel %vm786, %v2345, %v2347
        %v2351 = vsel %vm786, %v2347, %v2349
        %v2355 = vadd.f32 %v2333, %v2350
        %v2356 = vadd.f32 %v2334, %v2351
        %v2357 = vadd.f32 %v2335, %v2349
        %s2358 = sld [smem:[#allocation9 + $0x4b]]
        %v2359 = vstv %s2358
        %v2360 = vmul.f32 %v2359, %v745
        %v2361 = vmul.f32 %v2359, %v741
        %v2362 = vmul.f32 %v2359, %v746
        %2366 = vrot.lane.b32.xlu0 %v2360, 80
        %v2367 = vpop.permute.xlu0 %2366
        %2368 = vrot.lane.b32.xlu0 %v2361, 80
        %v2369 = vpop.permute.xlu0 %2368
        %2370 = vrot.lane.b32.xlu0 %v2362, 80
        %v2371 = vpop.permute.xlu0 %2370
        %v2372 = vsel %vm807, %v2367, %v2369
        %v2373 = vsel %vm807, %v2369, %v2371
        %v2377 = vadd.f32 %v2355, %v2372
        %v2378 = vadd.f32 %v2356, %v2373
        %v2379 = vadd.f32 %v2357, %v2371
        %s2380 = sld [smem:[#allocation9 + $0x52]]
        %v2381 = vstv %s2380
        %v2382 = vmul.f32 %v2381, %v745
        %v2383 = vmul.f32 %v2381, %v741
        %v2384 = vmul.f32 %v2381, %v746
        %2388 = vrot.lane.b32.xlu0 %v2382, 64
        %v2389 = vpop.permute.xlu0 %2388
        %2390 = vrot.lane.b32.xlu0 %v2383, 64
        %v2391 = vpop.permute.xlu0 %2390
        %2392 = vrot.lane.b32.xlu0 %v2384, 64
        %v2393 = vpop.permute.xlu0 %2392
        %v2394 = vsel %vm828, %v2389, %v2391
        %v2395 = vsel %vm828, %v2391, %v2393
        %v2399 = vadd.f32 %v2377, %v2394
        %v2400 = vadd.f32 %v2378, %v2395
        %v2401 = vadd.f32 %v2379, %v2393
        %s2402 = sld [smem:[#allocation9 + $0x59]]
        %v2403 = vstv %s2402
        %v2404 = vmul.f32 %v2403, %v745
        %v2405 = vmul.f32 %v2403, %v741
        %v2406 = vmul.f32 %v2403, %v746
        %2410 = vrot.lane.b32.xlu0 %v2404, 48
        %v2411 = vpop.permute.xlu0 %2410
        %2412 = vrot.lane.b32.xlu0 %v2405, 48
        %v2413 = vpop.permute.xlu0 %2412
        %2414 = vrot.lane.b32.xlu0 %v2406, 48
        %v2415 = vpop.permute.xlu0 %2414
        %v2416 = vsel %vm849, %v2411, %v2413
        %v2417 = vsel %vm849, %v2413, %v2415
        %v2421 = vadd.f32 %v2399, %v2416
        %v2422 = vadd.f32 %v2400, %v2417
        %v2423 = vadd.f32 %v2401, %v2415
        %s2424 = sld [smem:[#allocation9 + $0x60]]
        %v2425 = vstv %s2424
        %v2426 = vmul.f32 %v2425, %v745
        %v2427 = vmul.f32 %v2425, %v741
        %v2428 = vmul.f32 %v2425, %v746
        %2432 = vrot.lane.b32.xlu0 %v2426, 32
        %v2433 = vpop.permute.xlu0 %2432
        %2434 = vrot.lane.b32.xlu0 %v2427, 32
        %v2435 = vpop.permute.xlu0 %2434
        %2436 = vrot.lane.b32.xlu0 %v2428, 32
        %v2437 = vpop.permute.xlu0 %2436
        %v2438 = vsel %vm870, %v2433, %v2435
        %v2439 = vsel %vm870, %v2435, %v2437
        %v2443 = vadd.f32 %v2421, %v2438
        %v2444 = vadd.f32 %v2422, %v2439
        %v2445 = vadd.f32 %v2423, %v2437
        %v2446 = vrot.slane %v720, 5
        %v2447 = vrot.slane %v721, 5
        %2448 = vrot.lane.b32.xlu0 %v2446, 5
        %v2449 = vpop.permute.xlu0 %2448
        %2450 = vrot.lane.b32.xlu0 %v2447, 5
        %v2451 = vpop.permute.xlu0 %2450
        %vm2452 = vcmask 39936
        %v2453 = vsel %vm2452, %v2449, %v2451
        %v2457 = vmul.f32 %v2443, %v2449
        %v2458 = vmul.f32 %v2444, %v2453
        %v2459 = vmul.f32 %v2445, %v2451
        %s2460 = sld [smem:[#allocation9 + $0x6]]
        %v2461 = vstv %s2460
        %v2462 = vmul.f32 %v2461, %v733
        %v2463 = vmul.f32 %v2461, %v729
        %v2464 = vmul.f32 %v2461, %v734
        %s2465 = sld [smem:[#allocation9 + $0xd]]
        %v2466 = vstv %s2465
        %v2467 = vmul.f32 %v2466, %v733
        %v2468 = vmul.f32 %v2466, %v729
        %v2469 = vmul.f32 %v2466, %v734
        %2473 = vrot.lane.b32.xlu0 %v2467, 112
        %v2474 = vpop.permute.xlu0 %2473
        %2475 = vrot.lane.b32.xlu0 %v2468, 112
        %v2476 = vpop.permute.xlu0 %2475
        %2477 = vrot.lane.b32.xlu0 %v2469, 112
        %v2478 = vpop.permute.xlu0 %2477
        %v2479 = vsel %vm765, %v2474, %v2476
        %v2480 = vsel %vm765, %v2476, %v2478
        %v2484 = vadd.f32 %v2462, %v2479
        %v2485 = vadd.f32 %v2463, %v2480
        %v2486 = vadd.f32 %v2464, %v2478
        %s2487 = sld [smem:[#allocation9 + $0x14]]
        %v2488 = vstv %s2487
        %v2489 = vmul.f32 %v2488, %v733
        %v2490 = vmul.f32 %v2488, %v729
        %v2491 = vmul.f32 %v2488, %v734
        %2495 = vrot.lane.b32.xlu0 %v2489, 96
        %v2496 = vpop.permute.xlu0 %2495
        %2497 = vrot.lane.b32.xlu0 %v2490, 96
        %v2498 = vpop.permute.xlu0 %2497
        %2499 = vrot.lane.b32.xlu0 %v2491, 96
        %v2500 = vpop.permute.xlu0 %2499
        %v2501 = vsel %vm786, %v2496, %v2498
        %v2502 = vsel %vm786, %v2498, %v2500
        %v2506 = vadd.f32 %v2484, %v2501
        %v2507 = vadd.f32 %v2485, %v2502
        %v2508 = vadd.f32 %v2486, %v2500
        %s2509 = sld [smem:[#allocation9 + $0x1b]]
        %v2510 = vstv %s2509
        %v2511 = vmul.f32 %v2510, %v733
        %v2512 = vmul.f32 %v2510, %v729
        %v2513 = vmul.f32 %v2510, %v734
        %2517 = vrot.lane.b32.xlu0 %v2511, 80
        %v2518 = vpop.permute.xlu0 %2517
        %2519 = vrot.lane.b32.xlu0 %v2512, 80
        %v2520 = vpop.permute.xlu0 %2519
        %2521 = vrot.lane.b32.xlu0 %v2513, 80
        %v2522 = vpop.permute.xlu0 %2521
        %v2523 = vsel %vm807, %v2518, %v2520
        %v2524 = vsel %vm807, %v2520, %v2522
        %v2528 = vadd.f32 %v2506, %v2523
        %v2529 = vadd.f32 %v2507, %v2524
        %v2530 = vadd.f32 %v2508, %v2522
        %s2531 = sld [smem:[#allocation9 + $0x22]]
        %v2532 = vstv %s2531
        %v2533 = vmul.f32 %v2532, %v733
        %v2534 = vmul.f32 %v2532, %v729
        %v2535 = vmul.f32 %v2532, %v734
        %2539 = vrot.lane.b32.xlu0 %v2533, 64
        %v2540 = vpop.permute.xlu0 %2539
        %2541 = vrot.lane.b32.xlu0 %v2534, 64
        %v2542 = vpop.permute.xlu0 %2541
        %2543 = vrot.lane.b32.xlu0 %v2535, 64
        %v2544 = vpop.permute.xlu0 %2543
        %v2545 = vsel %vm828, %v2540, %v2542
        %v2546 = vsel %vm828, %v2542, %v2544
        %v2550 = vadd.f32 %v2528, %v2545
        %v2551 = vadd.f32 %v2529, %v2546
        %v2552 = vadd.f32 %v2530, %v2544
        %s2553 = sld [smem:[#allocation9 + $0x29]]
        %v2554 = vstv %s2553
        %v2555 = vmul.f32 %v2554, %v733
        %v2556 = vmul.f32 %v2554, %v729
        %v2557 = vmul.f32 %v2554, %v734
        %2561 = vrot.lane.b32.xlu0 %v2555, 48
        %v2562 = vpop.permute.xlu0 %2561
        %2563 = vrot.lane.b32.xlu0 %v2556, 48
        %v2564 = vpop.permute.xlu0 %2563
        %2565 = vrot.lane.b32.xlu0 %v2557, 48
        %v2566 = vpop.permute.xlu0 %2565
        %v2567 = vsel %vm849, %v2562, %v2564
        %v2568 = vsel %vm849, %v2564, %v2566
        %v2572 = vadd.f32 %v2550, %v2567
        %v2573 = vadd.f32 %v2551, %v2568
        %v2574 = vadd.f32 %v2552, %v2566
        %s2575 = sld [smem:[#allocation9 + $0x30]]
        %v2576 = vstv %s2575
        %v2577 = vmul.f32 %v2576, %v733
        %v2578 = vmul.f32 %v2576, %v729
        %v2579 = vmul.f32 %v2576, %v734
        %2583 = vrot.lane.b32.xlu0 %v2577, 32
        %v2584 = vpop.permute.xlu0 %2583
        %2585 = vrot.lane.b32.xlu0 %v2578, 32
        %v2586 = vpop.permute.xlu0 %2585
        %2587 = vrot.lane.b32.xlu0 %v2579, 32
        %v2588 = vpop.permute.xlu0 %2587
        %v2589 = vsel %vm870, %v2584, %v2586
        %v2590 = vsel %vm870, %v2586, %v2588
        %v2594 = vadd.f32 %v2572, %v2589
        %v2595 = vadd.f32 %v2573, %v2590
        %v2596 = vadd.f32 %v2574, %v2588
        %s2597 = sld [smem:[#allocation9 + $0x37]]
        %v2598 = vstv %s2597
        %v2599 = vmul.f32 %v2598, %v745
        %v2600 = vmul.f32 %v2598, %v741
        %v2601 = vmul.f32 %v2598, %v746
        %v2602 = vadd.f32 %v2594, %v2599
        %v2603 = vadd.f32 %v2595, %v2600
        %v2604 = vadd.f32 %v2596, %v2601
        %s2605 = sld [smem:[#allocation9 + $0x3e]]
        %v2606 = vstv %s2605
        %v2607 = vmul.f32 %v2606, %v745
        %v2608 = vmul.f32 %v2606, %v741
        %v2609 = vmul.f32 %v2606, %v746
        %2613 = vrot.lane.b32.xlu0 %v2607, 112
        %v2614 = vpop.permute.xlu0 %2613
        %2615 = vrot.lane.b32.xlu0 %v2608, 112
        %v2616 = vpop.permute.xlu0 %2615
        %2617 = vrot.lane.b32.xlu0 %v2609, 112
        %v2618 = vpop.permute.xlu0 %2617
        %v2619 = vsel %vm765, %v2614, %v2616
        %v2620 = vsel %vm765, %v2616, %v2618
        %v2624 = vadd.f32 %v2602, %v2619
        %v2625 = vadd.f32 %v2603, %v2620
        %v2626 = vadd.f32 %v2604, %v2618
        %s2627 = sld [smem:[#allocation9 + $0x45]]
        %v2628 = vstv %s2627
        %v2629 = vmul.f32 %v2628, %v745
        %v2630 = vmul.f32 %v2628, %v741
        %v2631 = vmul.f32 %v2628, %v746
        %2635 = vrot.lane.b32.xlu0 %v2629, 96
        %v2636 = vpop.permute.xlu0 %2635
        %2637 = vrot.lane.b32.xlu0 %v2630, 96
        %v2638 = vpop.permute.xlu0 %2637
        %2639 = vrot.lane.b32.xlu0 %v2631, 96
        %v2640 = vpop.permute.xlu0 %2639
        %v2641 = vsel %vm786, %v2636, %v2638
        %v2642 = vsel %vm786, %v2638, %v2640
        %v2646 = vadd.f32 %v2624, %v2641
        %v2647 = vadd.f32 %v2625, %v2642
        %v2648 = vadd.f32 %v2626, %v2640
        %s2649 = sld [smem:[#allocation9 + $0x4c]]
        %v2650 = vstv %s2649
        %v2651 = vmul.f32 %v2650, %v745
        %v2652 = vmul.f32 %v2650, %v741
        %v2653 = vmul.f32 %v2650, %v746
        %2657 = vrot.lane.b32.xlu0 %v2651, 80
        %v2658 = vpop.permute.xlu0 %2657
        %2659 = vrot.lane.b32.xlu0 %v2652, 80
        %v2660 = vpop.permute.xlu0 %2659
        %2661 = vrot.lane.b32.xlu0 %v2653, 80
        %v2662 = vpop.permute.xlu0 %2661
        %v2663 = vsel %vm807, %v2658, %v2660
        %v2664 = vsel %vm807, %v2660, %v2662
        %v2668 = vadd.f32 %v2646, %v2663
        %v2669 = vadd.f32 %v2647, %v2664
        %v2670 = vadd.f32 %v2648, %v2662
        %s2671 = sld [smem:[#allocation9 + $0x53]]
        %v2672 = vstv %s2671
        %v2673 = vmul.f32 %v2672, %v745
        %v2674 = vmul.f32 %v2672, %v741
        %v2675 = vmul.f32 %v2672, %v746
        %2679 = vrot.lane.b32.xlu0 %v2673, 64
        %v2680 = vpop.permute.xlu0 %2679
        %2681 = vrot.lane.b32.xlu0 %v2674, 64
        %v2682 = vpop.permute.xlu0 %2681
        %2683 = vrot.lane.b32.xlu0 %v2675, 64
        %v2684 = vpop.permute.xlu0 %2683
        %v2685 = vsel %vm828, %v2680, %v2682
        %v2686 = vsel %vm828, %v2682, %v2684
        %v2690 = vadd.f32 %v2668, %v2685
        %v2691 = vadd.f32 %v2669, %v2686
        %v2692 = vadd.f32 %v2670, %v2684
        %s2693 = sld [smem:[#allocation9 + $0x5a]]
        %v2694 = vstv %s2693
        %v2695 = vmul.f32 %v2694, %v745
        %v2696 = vmul.f32 %v2694, %v741
        %v2697 = vmul.f32 %v2694, %v746
        %2701 = vrot.lane.b32.xlu0 %v2695, 48
        %v2702 = vpop.permute.xlu0 %2701
        %2703 = vrot.lane.b32.xlu0 %v2696, 48
        %v2704 = vpop.permute.xlu0 %2703
        %2705 = vrot.lane.b32.xlu0 %v2697, 48
        %v2706 = vpop.permute.xlu0 %2705
        %v2707 = vsel %vm849, %v2702, %v2704
        %v2708 = vsel %vm849, %v2704, %v2706
        %v2712 = vadd.f32 %v2690, %v2707
        %v2713 = vadd.f32 %v2691, %v2708
        %v2714 = vadd.f32 %v2692, %v2706
        %s2715 = sld [smem:[#allocation9 + $0x61]]
        %v2716 = vstv %s2715
        %v2717 = vmul.f32 %v2716, %v745
        %v2718 = vmul.f32 %v2716, %v741
        %v2719 = vmul.f32 %v2716, %v746
        %2723 = vrot.lane.b32.xlu0 %v2717, 32
        %v2724 = vpop.permute.xlu0 %2723
        %2725 = vrot.lane.b32.xlu0 %v2718, 32
        %v2726 = vpop.permute.xlu0 %2725
        %2727 = vrot.lane.b32.xlu0 %v2719, 32
        %v2728 = vpop.permute.xlu0 %2727
        %v2729 = vsel %vm870, %v2724, %v2726
        %v2730 = vsel %vm870, %v2726, %v2728
        %v2734 = vadd.f32 %v2712, %v2729
        %v2735 = vadd.f32 %v2713, %v2730
        %v2736 = vadd.f32 %v2714, %v2728
        %v2737 = vrot.slane %v720, 6
        %v2738 = vrot.slane %v721, 6
        %2739 = vrot.lane.b32.xlu0 %v2737, 6
        %v2740 = vpop.permute.xlu0 %2739
        %2741 = vrot.lane.b32.xlu0 %v2738, 6
        %v2742 = vpop.permute.xlu0 %2741
        %vm2743 = vcmask 48128
        %v2744 = vsel %vm2743, %v2740, %v2742
        %v2748 = vmul.f32 %v2734, %v2740
        %v2749 = vmul.f32 %v2735, %v2744
        %v2750 = vmul.f32 %v2736, %v2742
        %2754 = vrot.lane.b32.xlu0 %v1295, 127
        %v2755 = vpop.permute.xlu0 %2754
        %2756 = vrot.lane.b32.xlu0 %v1296, 127
        %v2757 = vpop.permute.xlu0 %2756
        %2758 = vrot.lane.b32.xlu0 %v1297, 127
        %v2759 = vpop.permute.xlu0 %2758
        %vm2760 = vcmask 1039360
        %v2761 = vsel %vm2760, %v2755, %v2757
        %v2762 = vsel %vm2760, %v2757, %v2759
        %v2765 = vadd.f32 %v1003, %v2761
        %v2766 = vadd.f32 %v1004, %v2762
        %2770 = vrot.lane.b32.xlu0 %v1876, 127
        %v2771 = vpop.permute.xlu0 %2770
        %2772 = vrot.lane.b32.xlu0 %v1877, 127
        %v2773 = vpop.permute.xlu0 %2772
        %2774 = vrot.lane.b32.xlu0 %v1878, 127
        %v2775 = vpop.permute.xlu0 %2774
        %v2776 = vsel %vm2760, %v2771, %v2773
        %v2777 = vsel %vm2760, %v2773, %v2775
        %v2781 = vadd.f32 %v1585, %v2776
        %v2782 = vadd.f32 %v1586, %v2777
        %v2783 = vadd.f32 %v1587, %v2775
        %2787 = vrot.lane.b32.xlu0 %v2781, 126
        %v2788 = vpop.permute.xlu0 %2787
        %2789 = vrot.lane.b32.xlu0 %v2782, 126
        %v2790 = vpop.permute.xlu0 %2789
        %2791 = vrot.lane.b32.xlu0 %v2783, 126
        %v2792 = vpop.permute.xlu0 %2791
        %vm2793 = vcmask 1031168
        %v2794 = vsel %vm2793, %v2788, %v2790
        %v2795 = vsel %vm2793, %v2790, %v2792
        %v2798 = vadd.f32 %v2765, %v2794
        %v2799 = vadd.f32 %v2766, %v2795
        %2803 = vrot.lane.b32.xlu0 %v2457, 127
        %v2804 = vpop.permute.xlu0 %2803
        %2805 = vrot.lane.b32.xlu0 %v2458, 127
        %v2806 = vpop.permute.xlu0 %2805
        %2807 = vrot.lane.b32.xlu0 %v2459, 127
        %v2808 = vpop.permute.xlu0 %2807
        %v2809 = vsel %vm2760, %v2804, %v2806
        %v2810 = vsel %vm2760, %v2806, %v2808
        %v2814 = vadd.f32 %v2166, %v2809
        %v2815 = vadd.f32 %v2167, %v2810
        %v2816 = vadd.f32 %v2168, %v2808
        %2820 = vrot.lane.b32.xlu0 %v2748, 126
        %v2821 = vpop.permute.xlu0 %2820
        %2822 = vrot.lane.b32.xlu0 %v2749, 126
        %v2823 = vpop.permute.xlu0 %2822
        %2824 = vrot.lane.b32.xlu0 %v2750, 126
        %v2825 = vpop.permute.xlu0 %2824
        %v2826 = vsel %vm2793, %v2821, %v2823
        %v2827 = vsel %vm2793, %v2823, %v2825
        %v2831 = vadd.f32 %v2814, %v2826
        %v2832 = vadd.f32 %v2815, %v2827
        %v2833 = vadd.f32 %v2816, %v2825
        %2837 = vrot.lane.b32.xlu0 %v2831, 124
        %v2838 = vpop.permute.xlu0 %2837
        %2839 = vrot.lane.b32.xlu0 %v2832, 124
        %v2840 = vpop.permute.xlu0 %2839
        %2841 = vrot.lane.b32.xlu0 %v2833, 124
        %v2842 = vpop.permute.xlu0 %2841
        %vm2843 = vcmask 1014784
        %v2844 = vsel %vm2843, %v2838, %v2840
        %v2845 = vsel %vm2843, %v2840, %v2842
        %v2848 = vadd.f32 %v2798, %v2844
        %v2849 = vadd.f32 %v2799, %v2845
        %s2850 = sld [smem:[#allocation2]]
        %v2851 = vstv %s2850
        %v2852 = vadd.f32 %v2848, %v2851
        %v2853 = vadd.f32 %v2849, %v2851
        %v2854 = vxor.u32 %v2852, 2147483648
        %v2855 = vxor.u32 %v2853, 2147483648
        %v2856 = vmul.f32 %v2854, 1.442695
        %v2857 = vpow.pop %v2856
        %v2858 = vmul.f32 %v2855, 1.442695
        %v2859 = vpow.pop %v2858
        %v2860 = vadd.f32 %v2857, 1.0
        %v2861 = vadd.f32 %v2859, 1.0
        %v2862 = vrcp.pop %v2860
        %v2863 = vmul.f32 %v2860, %v2862
        %v2864 = vsub.f32 1.0, %v2863
        %v2865 = vmul.f32 %v2862, %v2864
        %v2866 = vadd.f32 %v2862, %v2865
        %vm2867 = vweird.f32 %v2860
        %vm2868 = vweird.f32 %v2862
        %vm2869 = vmor %vm2867, %vm2868
        %v2870 = vsel %vm2869, %v2862, %v2866
        %v2871 = vand.u32 2147483647, %v2860
        %vm2872 = vcmp.eq.f32.partialorder %v2871, 8.507059e+37
        %v2873 = vand.u32 %v2860, 2147483648
        %v2874 = vor.u32 1.1754944e-38, %v2873
        %v2875 = vsel %vm2872, %v2874, %v2870
        %v2876 = vmul.f32 1.0, %v2875
        %v2877 = vrcp.pop %v2861
        %v2878 = vmul.f32 %v2861, %v2877
        %v2879 = vsub.f32 1.0, %v2878
        %v2880 = vmul.f32 %v2877, %v2879
        %v2881 = vadd.f32 %v2877, %v2880
        %vm2882 = vweird.f32 %v2861
        %vm2883 = vweird.f32 %v2877
        %vm2884 = vmor %vm2882, %vm2883
        %v2885 = vsel %vm2884, %v2877, %v2881
        %v2886 = vand.u32 2147483647, %v2861
        %vm2887 = vcmp.eq.f32.partialorder %v2886, 8.507059e+37
        %v2888 = vand.u32 %v2861, 2147483648
        %v2889 = vor.u32 1.1754944e-38, %v2888
        %v2890 = vsel %vm2887, %v2889, %v2885
        %v2891 = vmul.f32 1.0, %v2890
        %v2892 = vperm.slane %v2876, 0
        %v2893 = vperm.slane %v2891, 0
        %v2896 = vrot.slane %v2893, 4
        %v2897 = vsel %vm469, %v2892, %v2896
        %v2899 = vmul.f32 %v678, %v2897
        %2900 = vst [vmem:[%s461] sm:$0xff] %v2899
        %s2901 = sand.u32 %s297, 1
        %s2902 = scalar_lea.sflag [#allocation5], %s2901
        %s2903 = sand.u32 %s297, 1
        %s2904 = smul.addr %s2903, 8
        %s2905 = scalar_lea.vmem [#allocation10], %s2904
        // Predicated region
        $region81: #{tpu_custom_call.1} parent=67 // pred_check
          %p2906 = pneg %p307
        $region82: #{tpu_custom_call.1} parent=67 // pred_check_branch
          %2908 = sbr.rel (%p2906) target = $region84
        $region83: #{tpu_custom_call.1} parent=67 // pred_region
          %2910 = vsyncadd %s2902, 0
          %s2911 = smul.addr %s32, 2
          %s2912 = smul.addr %s2911, 4
          %s2913 = scalar_lea.hbm %s12, %s2912
          %s2915 = sshll.u32 %s2905, 4
          %s2916 = int_to_ptr.vmem [resolvable:$true] %s2915
          %s2917 = sshll.u32 %s2913, 4
          %s2918 = int_to_ptr.hbm [resolvable:$true] %s2917
          %2920 = dma.vmem_to_hbm [thread:$0]  %s2916, 128, %s2918, %s2902
        $region84: #{tpu_custom_call.1} parent=67 // pred_fallthru
          _
      $region68: #{tpu_custom_call.1} parent=5 // pred_fallthru
        _
      %p2921 = scmp.le.s32.totalorder 2, %s27
      // Predicated region
      $region85: #{tpu_custom_call.1} parent=5 // pred_check
        %p2922 = pneg %p2921
      $region86: #{tpu_custom_call.1} parent=5 // pred_check_branch
        %2924 = sbr.rel (%p2922) target = $region88
      $region87: #{tpu_custom_call.1} parent=5 // pred_region
        %s2925 = ssub.s32 %s27, 2
        // Predicated region
        $region89: #{tpu_custom_call.1} parent=87 // pred_check
          %p2926 = pneg %p313
        $region90: #{tpu_custom_call.1} parent=87 // pred_check_branch
          %2928 = sbr.rel (%p2926) target = $region92
        $region91: #{tpu_custom_call.1} parent=87 // pred_region
          %s2929 = sand.u32 %s298, 1
          %s2930 = scalar_lea.sflag [#allocation5], %s2929
          %s2931 = sand.u32 %s298, 1
          %s2932 = smul.addr %s2931, 8
          %s2933 = scalar_lea.vmem [#allocation10], %s2932
          %2935 = dma.done %s2930, 128
        $region92: #{tpu_custom_call.1} parent=87 // pred_fallthru
          _
      $region88: #{tpu_custom_call.1} parent=5 // pred_fallthru
        _
    $region6: #{tpu_custom_call.1} parent=1 // loop_footer
      %s31 = sadd.s32 1, %s27
    $region7: #{tpu_custom_call.1} parent=1 // loop_footer_branch
      %26 = sbr.rel target = $region3
    $region8: #{tpu_custom_call.1} parent=1 // loop_exit
      _
    %2936 = vsyncpa [#allocation4], 1
    %s2937 = scalar_lea.sflag [#allocation4], 1
    %2938 = vsyncpa %s2937, 1
    %2939 = vsyncpa [#allocation8], 1
    %2940 = vsyncpa [#allocation5], 1
    %s2941 = scalar_lea.sflag [#allocation5], 1
    %2942 = vsyncpa %s2941, 1
    %2943 = vsyncpa [#allocation6], 1
    %s2944 = scalar_lea.sflag [#allocation6], 1
    %2945 = vsyncpa %s2944, 1

</llo_original>
